<compile_context>
chip_gen: v7x
topology: tpu7x:2x2x1
jax: 0.10.0
libtpu: 0.0.40
codegen_flags: <defaults>
</compile_context>

<pallas_src>
import jax
import jax.numpy as jnp
from jax.experimental import pallas as pl
from jax.experimental.pallas import tpu as pltpu


def _bilinear_kernel(xT_ref, yT_ref, wT_ref, bias_ref, out_ref, acc_ref):
    # xT_ref  : (D, tb)    bf16  x^T, full feature dim, batch block on lanes
    # yT_ref  : (tj, tb)   bf16  rows j of y^T belonging to this K chunk
    # wT_ref  : (D, tj*D)  bf16  W_flat[o, j*D + i] = W[o, i, j], K-chunk cols
    # bias_ref: (D, 1)     f32
    # out_ref : (D, tb)    f32   out^T batch block
    # acc_ref : (D, tb)    f32   VMEM accumulator (persists across K steps)
    k = pl.program_id(1)

    @pl.when(k == 0)
    def _():
        acc_ref[...] = jnp.zeros_like(acc_ref)

    tj, tb = yT_ref.shape
    d = xT_ref.shape[0]

    # z^T[j*D + i, b] = y[b, j] * x[b, i]: each y^T row is sublane-broadcast
    # against the full x^T tile (bf16 multiply); the (tj, D, tb) -> (tj*D, tb)
    # reshape only merges sublane-direction dims (D % 8 == 0) -> layout-free.
    zT = (yT_ref[...][:, None, :] * xT_ref[...][None, :, :]).reshape(tj * d, tb)

    # Single MXU matmul per K chunk: (D, tk) @ (tk, tb) -> (D, tb), f32 acc.
    acc_ref[...] += jnp.dot(wT_ref[...], zT, preferred_element_type=jnp.float32)

    @pl.when(k == pl.num_programs(1) - 1)
    def _():
        out_ref[...] = (acc_ref[...] + bias_ref[...]).astype(out_ref.dtype)


def prepare_bilinear_params(weight, bias):
    """One-time repack of torch.nn.Bilinear params (cache it; do NOT redo per call):
       W[o, i, j] -> W_flat[o, j*D + i]   (bf16, MXU dtype)
       bias       -> (D, 1) f32 column (broadcasts over the lane/batch dim)."""
    d_out, d_in1, d_in2 = weight.shape
    assert d_out == d_in1 == d_in2, "MultiplicativeComposition uses a square Bilinear"
    w_flat = jnp.transpose(weight, (0, 2, 1)).reshape(d_out, d_in1 * d_in2)
    return w_flat.astype(jnp.bfloat16), bias.reshape(d_out, 1).astype(jnp.float32)


def _vmem_capacity_bytes():
    try:
        return int(pltpu.get_tpu_info().vmem_capacity_bytes)
    except Exception:
        return 64 * 1024 * 1024          # conservative (v7x-sized) fallback


def _chunk_vmem_bytes(d, tb, tj):
    tk = tj * d
    w    = 2 * (2 * d * tk)              # bf16 weight chunk, double-buffered
    z    = 2 * (2 * tk * tb)             # bf16 z chunk (+ headroom for 3-D temp)
    xin  = 2 * (2 * d * tb)              # bf16 x^T block, double-buffered
    yin  = 2 * (2 * tj * tb)             # bf16 y^T block, double-buffered
    outb = 2 * (4 * d * tb)              # f32 out^T block, double-buffered
    accb = 2 * (4 * d * tb)              # f32 accumulator + dot-result temp
    return w + z + xin + yin + outb + accb + 2 * (4 * d)


def _pick_j_block(d, tb, budget_bytes):
    """j rows per K chunk (contraction depth tk = tj*D).  tj must divide D and
    keep every block (8,128)-legal; prefer the largest chunk that fits the
    VMEM budget (a single chunk => the weight is DMA'd from HBM exactly once)."""
    valid = [tj for tj in range(d, 0, -1)
             if d % tj == 0 and (tj == d or (tj % 8 == 0 and (tj * d) % 128 == 0))]
    for tj in valid:                                  # descending
        if _chunk_vmem_bytes(d, tb, tj) <= budget_bytes:
            return tj
    return valid[-1]
    # TODO(synk): for very large D where even the smallest legal K chunk blows
    # the budget, add an output-feature (o) grid axis so the weight block
    # shrinks in both directions.


def _pick_batch_block(batch):
    """Batch tile (lane dim of the transposed layout): >=128 and lane-dense
    when the batch allows it; small batches become one padded-to-8 block."""
    if batch >= 256:
        return 256
    if batch >= 128:
        return 128
    return max(8, ((batch + 7) // 8) * 8)


def multiplicative_composition(x, y, w_flat, bias_col, *, block_b=None, block_j=None):
    """out[b, o] = sum_{i,j} x[b,i] * W[o,i,j] * y[b,j] + bias[o].

    x, y: (B, D) float32.  w_flat, bias_col: from prepare_bilinear_params."""
    B, D = x.shape
    assert y.shape == (B, D)
    assert w_flat.shape == (D, D * D) and bias_col.shape == (D, 1)

    capacity = _vmem_capacity_bytes()
    budget = min(int(capacity * 0.35), 40 * 1024 * 1024)

    tb = block_b if block_b is not None else _pick_batch_block(B)
    assert tb % 8 == 0
    Bp = ((B + tb - 1) // tb) * tb
    assert tb % 128 == 0 or Bp == tb, "batch tile must be lane-dense or a single block"

    tj = block_j if block_j is not None else _pick_j_block(D, tb, budget)
    assert D % tj == 0
    assert tj == D or (tj % 8 == 0 and (tj * D) % 128 == 0)
    tk = tj * D
    nb, nk = Bp // tb, D // tj

    # Batch-transposed bf16 inputs (batch on lanes); zero-pad batch to Bp.
    xb = x.astype(jnp.bfloat16)
    yb = y.astype(jnp.bfloat16)
    if Bp != B:
        pad = ((0, Bp - B), (0, 0))
        xb = jnp.pad(xb, pad)
        yb = jnp.pad(yb, pad)
    xT = xb.T                             # (D, Bp)
    yT = yb.T                             # (D, Bp)

    needed = _chunk_vmem_bytes(D, tb, tj)
    vmem_limit = min(max(needed * 5 // 4, 24 * 1024 * 1024), int(capacity * 0.8))

    # Weight is streamed once per batch block when nk > 1; with a single K
    # chunk its block index is constant and Pallas fetches it exactly once.
    w_reads = 1 if nk == 1 else nb
    flops = 2 * Bp * D * D * D + Bp * D * D + Bp * D
    bytes_accessed = (w_reads * 2 * D * D * D        # bf16 weight (incl. re-reads)
                      + 2 * Bp * D + 2 * Bp * D      # bf16 x^T, y^T
                      + 4 * Bp * D                   # f32 out^T
                      + 4 * D)                       # bias

    outT = pl.pallas_call(
        _bilinear_kernel,
        out_shape=jax.ShapeDtypeStruct((D, Bp), jnp.float32),
        grid=(nb, nk),
        in_specs=[
            pl.BlockSpec((D, tb), lambda b, k: (0, b)),        # x^T  (per batch block)
            pl.BlockSpec((tj, tb), lambda b, k: (k, b)),       # y^T  (j rows of K chunk)
            pl.BlockSpec((D, tk), lambda b, k: (0, k)),        # W_flat (K-chunk columns)
            pl.BlockSpec((D, 1), lambda b, k: (0, 0)),         # bias
        ],
        out_specs=pl.BlockSpec((D, tb), lambda b, k: (0, b)),  # out^T (per batch block)
        scratch_shapes=[pltpu.VMEM((D, tb), jnp.float32)],
        compiler_params=pltpu.CompilerParams(
            dimension_semantics=("parallel", "arbitrary"),
            vmem_limit_bytes=vmem_limit,
        ),
        cost_estimate=pl.CostEstimate(
            flops=flops, transcendentals=0, bytes_accessed=bytes_accessed),
    )(xT, yT, w_flat, bias_col)

    return outT.T[:B]                     # back to (B, D)


if __name__ == "__main__":
    B = 256   # batch
    D = 128   # representation_size (multiple of 128 keeps everything lane-dense)

    key = jax.random.PRNGKey(0)
    kx, ky, kw, kb = jax.random.split(key, 4)

    x = jax.random.normal(kx, (B, D), dtype=jnp.float32)
    y = jax.random.normal(ky, (B, D), dtype=jnp.float32)

    # torch.nn.Bilinear init: U(-1/sqrt(in1_features), 1/sqrt(in1_features))
    bound = 1.0 / float(D) ** 0.5
    weight = jax.random.uniform(kw, (D, D, D), jnp.float32, -bound, bound)
    bias = jax.random.uniform(kb, (D,), jnp.float32, -bound, bound)

    w_flat, bias_col = prepare_bilinear_params(weight, bias)   # one-time repack (cached)

    fwd = jax.jit(multiplicative_composition, static_argnames=("block_b", "block_j"))
    # Explicit small tiles so the demo exercises both grid axes (2 batch blocks
    # x 4 K chunks, accumulator init/finalize); defaults pick larger tiles.
    out = jax.block_until_ready(fwd(x, y, w_flat, bias_col, block_b=128, block_j=32))

    # Reference with the same bf16 roundings as the kernel: bf16 x*y products,
    # bf16 weights, f32 accumulation.
    xb = x.astype(jnp.bfloat16)
    yb = y.astype(jnp.bfloat16)
    z_ref = (xb[:, :, None] * yb[:, None, :]).astype(jnp.float32)   # z[b, i, j]
    wr = weight.astype(jnp.bfloat16).astype(jnp.float32)
    ref = jnp.einsum("bij,oij->bo", z_ref, wr,
                     precision=jax.lax.Precision.HIGHEST) + bias[None, :]

    assert out.shape == (B, D)
    max_err = jnp.max(jnp.abs(out - ref))
    assert jnp.allclose(out, ref, atol=5e-2, rtol=2e-2), (
        f"mismatch vs reference: max abs err {max_err}")

    print("KERNEL_OK")
</pallas_src>

<mosaic_0001>
module attributes {stable_mosaic.version = 11 : i64} {
  func.func @_bilinear_kernel(%arg0: i32, %arg1: i32, %arg2: memref<128x128xbf16, #tpu.memory_space<vmem>>, %arg3: memref<32x128xbf16, #tpu.memory_space<vmem>>, %arg4: memref<128x4096xbf16, #tpu.memory_space<vmem>>, %arg5: memref<128x1xf32, #tpu.memory_space<vmem>>, %arg6: memref<128x128xf32, #tpu.memory_space<vmem>>, %arg7: memref<128x128xf32, #tpu.memory_space<vmem>>) attributes {dimension_semantics = [#tpu.dimension_semantics<parallel>, #tpu.dimension_semantics<arbitrary>], iteration_bounds = array<i64: 2, 4>, scalar_prefetch = 0 : i64, scratch_operands = 1 : i64, tpu.core_type = #tpu.core_type<tc>, window_params = [{transform_indices = @transform_0, window_bounds = array<i64: 128, 128>}, {transform_indices = @transform_1, window_bounds = array<i64: 32, 128>}, {transform_indices = @transform_2, window_bounds = array<i64: 128, 4096>}, {pipeline_mode = #tpu.pipeline_mode<synchronous>, transform_indices = @transform_3, window_bounds = array<i64: 128, 1>}, {transform_indices = @transform_4, window_bounds = array<i64: 128, 128>}]} {
    %c0_i32 = arith.constant 0 : i32
    %0 = arith.cmpi eq, %arg1, %c0_i32 : i32
    %1 = arith.extui %0 : i1 to i32
    %c0_i32_0 = arith.constant 0 : i32
    %2 = arith.cmpi ne, %1, %c0_i32_0 : i32
    scf.if %2 {
      %cst_11 = arith.constant 0.000000e+00 : f32
      %19 = vector.broadcast %cst_11 : f32 to vector<128x128xf32>
      %c0_12 = arith.constant 0 : index
      %c0_13 = arith.constant 0 : index
      %20 = vector.load %arg7[%c0_12, %c0_13] : memref<128x128xf32, #tpu.memory_space<vmem>>, vector<128x128xf32>
      tpu.vector_store %arg7[%c0_12, %c0_13], %19 {strides = array<i32>} : memref<128x128xf32, #tpu.memory_space<vmem>>, vector<128x128xf32>,
    } else {
    }
    %c0 = arith.constant 0 : index
    %c0_1 = arith.constant 0 : index
    %3 = vector.load %arg3[%c0, %c0_1] : memref<32x128xbf16, #tpu.memory_space<vmem>>, vector<32x128xbf16>
    %4 = vector.shape_cast %3 : vector<32x128xbf16> to vector<32x1x128xbf16>
    %c0_2 = arith.constant 0 : index
    %c0_3 = arith.constant 0 : index
    %5 = vector.load %arg2[%c0_2, %c0_3] : memref<128x128xbf16, #tpu.memory_space<vmem>>, vector<128x128xbf16>
    %6 = vector.shape_cast %5 : vector<128x128xbf16> to vector<1x128x128xbf16>
    %7 = vector.broadcast %4 : vector<32x1x128xbf16> to vector<32x128x128xbf16>
    %8 = vector.broadcast %6 : vector<1x128x128xbf16> to vector<32x128x128xbf16>
    %9 = arith.mulf %7, %8 : vector<32x128x128xbf16>
    %10 = vector.shape_cast %9 : vector<32x128x128xbf16> to vector<4096x128xbf16>
    %c0_4 = arith.constant 0 : index
    %c0_5 = arith.constant 0 : index
    %11 = vector.load %arg7[%c0_4, %c0_5] : memref<128x128xf32, #tpu.memory_space<vmem>>, vector<128x128xf32>
    %c0_6 = arith.constant 0 : index
    %c0_7 = arith.constant 0 : index
    %12 = vector.load %arg4[%c0_6, %c0_7] : memref<128x4096xbf16, #tpu.memory_space<vmem>>, vector<128x4096xbf16>
    %cst = arith.constant dense<0.000000e+00> : vector<128x128xf32>
    %13 = tpu.matmul %12, %10, %cst {dimension_numbers = #tpu.dot_dimension_numbers<[1], [0], [0], [1], [0, 0, 1, 1], [], []>} : vector<128x4096xbf16>, vector<4096x128xbf16>, vector<128x128xf32> -> vector<128x128xf32>
    %14 = arith.addf %11, %13 : vector<128x128xf32>
    %c0_8 = arith.constant 0 : index
    %c0_9 = arith.constant 0 : index
    %15 = vector.load %arg7[%c0_8, %c0_9] : memref<128x128xf32, #tpu.memory_space<vmem>>, vector<128x128xf32>
    tpu.vector_store %arg7[%c0_8, %c0_9], %14 {strides = array<i32>} : memref<128x128xf32, #tpu.memory_space<vmem>>, vector<128x128xf32>,
    %c3_i32 = arith.constant 3 : i32
    %16 = arith.cmpi eq, %arg1, %c3_i32 : i32
    %17 = arith.extui %16 : i1 to i32
    %c0_i32_10 = arith.constant 0 : i32
    %18 = arith.cmpi ne, %17, %c0_i32_10 : i32
    scf.if %18 {
      %c0_11 = arith.constant 0 : index
      %c0_12 = arith.constant 0 : index
      %19 = vector.load %arg7[%c0_11, %c0_12] : memref<128x128xf32, #tpu.memory_space<vmem>>, vector<128x128xf32>
      %c0_13 = arith.constant 0 : index
      %c0_14 = arith.constant 0 : index
      %20 = vector.load %arg5[%c0_13, %c0_14] : memref<128x1xf32, #tpu.memory_space<vmem>>, vector<128x1xf32>
      %21 = vector.broadcast %20 : vector<128x1xf32> to vector<128x128xf32>
      %22 = arith.addf %19, %21 : vector<128x128xf32>
      %c0_15 = arith.constant 0 : index
      %c0_16 = arith.constant 0 : index
      %23 = vector.load %arg6[%c0_15, %c0_16] : memref<128x128xf32, #tpu.memory_space<vmem>>, vector<128x128xf32>
      tpu.vector_store %arg6[%c0_15, %c0_16], %22 {strides = array<i32>} : memref<128x128xf32, #tpu.memory_space<vmem>>, vector<128x128xf32>,
    } else {
    }
    return
  }
  func.func @transform_0(%arg0: i32, %arg1: i32) -> (i32, i32) {
    %c0_i32 = arith.constant 0 : i32
    %c0_i32_0 = arith.constant 0 : i32
    return %c0_i32, %arg0 : i32, i32
  }
  func.func @transform_1(%arg0: i32, %arg1: i32) -> (i32, i32) {
    %c0_i32 = arith.constant 0 : i32
    return %arg1, %arg0 : i32, i32
  }
  func.func @transform_2(%arg0: i32, %arg1: i32) -> (i32, i32) {
    %c0_i32 = arith.constant 0 : i32
    %c0_i32_0 = arith.constant 0 : i32
    return %c0_i32, %arg1 : i32, i32
  }
  func.func @transform_3(%arg0: i32, %arg1: i32) -> (i32, i32) {
    %c0_i32 = arith.constant 0 : i32
    %c0_i32_0 = arith.constant 0 : i32
    %c0_i32_1 = arith.constant 0 : i32
    return %c0_i32, %c0_i32_0 : i32, i32
  }
  func.func @transform_4(%arg0: i32, %arg1: i32) -> (i32, i32) {
    %c0_i32 = arith.constant 0 : i32
    %c0_i32_0 = arith.constant 0 : i32
    return %c0_i32, %arg0 : i32, i32
  }
}

</mosaic_0001>

<llo_original>
// kernel: multiplicative_composition.1
$region0: #{multiplicative_composition.1}
  #allocation0 [shape = 'u32[]', space=smem, size = 0x4, offset = 0x4, fixed_abs, tag = 'smem constant byte address 0x4 - core index']
  #allocation1 [shape = 'u32[144,128]{1,0:T(1,128)}', space=vmem, size = 0x12000, scoped, tag = 'internal scratch']
  #allocation2 [shape = 'f32[128,128]{1,0:T(8,128)}', space=vmem, size = 0x10000, scoped, tag = 'scratch operand']
  %s0 = inlined_call_operand.vmem [shape: bf16[128,256], index: 0, kind: input, shape index: {}]
  %s1 = inlined_call_operand.vmem [shape: bf16[128,256], index: 1, kind: input, shape index: {}]
  %s2 = inlined_call_operand.hbm [shape: bf16[128,16384], index: 2, kind: input, shape index: {}]
  %s3 = inlined_call_operand.vmem [shape: f32[128,1], index: 3, kind: input, shape index: {}]
  %s4 = inlined_call_operand.vmem [shape: f32[128,256], index: 4, kind: output, shape index: {}]
  %s5 = sld [smem:[#allocation0]]
  $region177: #{multiplicative_composition.1} parent=0
    _
  %s7 = ssub.s32 1, %s5
  %s8 = scalar_select 0, %s7, %s5
  $region1: #{multiplicative_composition.1} parent=0
    #allocation3 [shape = 'u8[65536]{0}', space=vmem, size = 0x10000, scoped, tag = 'input window, operand 0']
    #allocation4 [shape = 'u8[16384]{0}', space=vmem, size = 0x4000, scoped, tag = 'input window, operand 1']
    #allocation5 [shape = 'u8[2097152]{0}', space=vmem, size = 0x200000, scoped, tag = 'input window, operand 2']
    #allocation6 [shape = 's32[2]{0}', space=sflag, size = 0x8, scoped, tag = 'scoped memory for multiplicative_composition.1']
    #allocation7 [shape = 'u8[131072]{0}', space=vmem, size = 0x20000, scoped, tag = 'output window, operand 0']
    %9 = vsyncpa [#allocation6], 0
    %s10 = scalar_lea.sflag [#allocation6], 1
    %11 = vsyncpa %s10, 0
    loop: start=0, step=1, limit=10
    $region2: #{multiplicative_composition.1} parent=1 // loop_pre_header
      _
    $region3: #{multiplicative_composition.1} parent=1 // loop_header
      %s13 = sphi 0, %s17
      %p14 = scmp.ge.s32.totalorder %s13, 10
      %s20 = sphi 0, %s32
      %s21 = sphi 0, %s28
      %s22 = sphi 0, %s20
      %s23 = sphi 0, %s21
      %s24 = sphi 0, %s22
      %s25 = sphi 0, %s23
      %s35 = sphi 0, %s37
      %s38 = sphi 0, %s35
      %s39 = sphi 0, %s38
      %s55 = sphi 0, %s39
      %s63 = sphi 0, %s65
      %s66 = sphi 0, %s63
      %s67 = sphi 0, %s66
      %s83 = sphi 0, %s67
      %s89 = sphi 0, %s91
      %s92 = sphi 0, %s89
      %s93 = sphi 0, %s92
      %s109 = sphi 0, %s93
      %s113 = sphi 0, %s113
      %s115 = sphi 0, %s113
      %s116 = sphi 0, %s115
      %s130 = sphi 0, %s116
      %s136 = sphi 0, %s138
      %s139 = sphi 0, %s136
      %s140 = sphi 0, %s139
      %s156 = sphi 0, %s140
    $region4: #{multiplicative_composition.1} parent=1 // loop_header_branch
      %16 = sbr.rel (%p14) target = $region8
    $region5: #{multiplicative_composition.1} parent=1 // loop_body
      %s18 = ssub.s32 %s13, 1
      %s19 = ssub.s32 %s13, 2
      %s26 = sadd.s32 1, %s21
      %p27 = scmp.ge.s32.totalorder %s26, 4
      %s28 = scalar_select %p27, 0, %s26
      %s29 = sadd.s32 1, %s20
      %s30 = scalar_select %p27, %s29, %s20
      %p31 = scmp.ge.s32.totalorder %s30, 2
      %s32 = scalar_select %p31, 0, %s30
      %s33 = ssub.s32 %s20, %s32
      %p34 = scmp.eq.s32.totalorder %s33, 0
      %s36 = sadd.s32 %s35, 1
      %s37 = scalar_select %p34, %s35, %s36
      %p40 = pneg %p34
      %p41 = scmp.eq.s32.totalorder %s13, 7
      %p42 = por %p40, %p41
      %p43 = scmp.ne.s32.totalorder %s35, %s38
      %p44 = scmp.eq.s32.totalorder %s13, 0
      %p45 = por %p43, %p44
      %p46 = scmp.ne.s32.totalorder %s35, %s38
      %p47 = scmp.eq.s32.totalorder %s18, 7
      %p48 = por %p46, %p47
      %p49 = scmp.ne.s32.totalorder %s38, %s39
      %p50 = scmp.eq.s32.totalorder %s18, 0
      %p51 = por %p49, %p50
      %p52 = scmp.ne.s32.totalorder %s38, %s39
      %p53 = scmp.eq.s32.totalorder %s19, 7
      %p54 = por %p52, %p53
      %p56 = scmp.ne.s32.totalorder %s39, %s55
      %p57 = scmp.eq.s32.totalorder %s19, 0
      %p58 = por %p56, %p57
      %s59 = ssub.s32 %s21, %s28
      %s60 = ssub.s32 %s20, %s32
      %s61 = sor.u32 %s59, %s60
      %p62 = scmp.eq.s32.totalorder %s61, 0
      %s64 = sadd.s32 %s63, 1
      %s65 = scalar_select %p62, %s63, %s64
      %p68 = pneg %p62
      %p69 = scmp.eq.s32.totalorder %s13, 7
      %p70 = por %p68, %p69
      %p71 = scmp.ne.s32.totalorder %s63, %s66
      %p72 = scmp.eq.s32.totalorder %s13, 0
      %p73 = por %p71, %p72
      %p74 = scmp.ne.s32.totalorder %s63, %s66
      %p75 = scmp.eq.s32.totalorder %s18, 7
      %p76 = por %p74, %p75
      %p77 = scmp.ne.s32.totalorder %s66, %s67
      %p78 = scmp.eq.s32.totalorder %s18, 0
      %p79 = por %p77, %p78
      %p80 = scmp.ne.s32.totalorder %s66, %s67
      %p81 = scmp.eq.s32.totalorder %s19, 7
      %p82 = por %p80, %p81
      %p84 = scmp.ne.s32.totalorder %s67, %s83
      %p85 = scmp.eq.s32.totalorder %s19, 0
      %p86 = por %p84, %p85
      %s87 = ssub.s32 %s21, %s28
      %p88 = scmp.eq.s32.totalorder %s87, 0
      %s90 = sadd.s32 %s89, 1
      %s91 = scalar_select %p88, %s89, %s90
      %p94 = pneg %p88
      %p95 = scmp.eq.s32.totalorder %s13, 7
      %p96 = por %p94, %p95
      %p97 = scmp.ne.s32.totalorder %s89, %s92
      %p98 = scmp.eq.s32.totalorder %s13, 0
      %p99 = por %p97, %p98
      %p100 = scmp.ne.s32.totalorder %s89, %s92
      %p101 = scmp.eq.s32.totalorder %s18, 7
      %p102 = por %p100, %p101
      %p103 = scmp.ne.s32.totalorder %s92, %s93
      %p104 = scmp.eq.s32.totalorder %s18, 0
      %p105 = por %p103, %p104
      %p106 = scmp.ne.s32.totalorder %s92, %s93
      %p107 = scmp.eq.s32.totalorder %s19, 7
      %p108 = por %p106, %p107
      %p110 = scmp.ne.s32.totalorder %s93, %s109
      %p111 = scmp.eq.s32.totalorder %s19, 0
      %p112 = por %p110, %p111
      %s114 = sadd.s32 %s113, 1
      %p117 = scmp.eq.s32.totalorder %s13, 7
      %p118 = scmp.ne.s32.totalorder %s113, %s115
      %p119 = scmp.eq.s32.totalorder %s13, 0
      %p120 = por %p118, %p119
      %p121 = scmp.ne.s32.totalorder %s113, %s115
      %p122 = scmp.eq.s32.totalorder %s18, 7
      %p123 = por %p121, %p122
      %p124 = scmp.ne.s32.totalorder %s115, %s116
      %p125 = scmp.eq.s32.totalorder %s18, 0
      %p126 = por %p124, %p125
      %p127 = scmp.ne.s32.totalorder %s115, %s116
      %p128 = scmp.eq.s32.totalorder %s19, 7
      %p129 = por %p127, %p128
      %p131 = scmp.ne.s32.totalorder %s116, %s130
      %p132 = scmp.eq.s32.totalorder %s19, 0
      %p133 = por %p131, %p132
      %s134 = ssub.s32 %s20, %s32
      %p135 = scmp.eq.s32.totalorder %s134, 0
      %s137 = sadd.s32 %s136, 1
      %s138 = scalar_select %p135, %s136, %s137
      %p141 = pneg %p135
      %p142 = scmp.eq.s32.totalorder %s13, 7
      %p143 = por %p141, %p142
      %p144 = scmp.ne.s32.totalorder %s136, %s139
      %p145 = scmp.eq.s32.totalorder %s13, 0
      %p146 = por %p144, %p145
      %p147 = scmp.ne.s32.totalorder %s136, %s139
      %p148 = scmp.eq.s32.totalorder %s18, 7
      %p149 = por %p147, %p148
      %p150 = scmp.ne.s32.totalorder %s139, %s140
      %p151 = scmp.eq.s32.totalorder %s18, 0
      %p152 = por %p150, %p151
      %p153 = scmp.ne.s32.totalorder %s139, %s140
      %p154 = scmp.eq.s32.totalorder %s19, 7
      %p155 = por %p153, %p154
      %p157 = scmp.ne.s32.totalorder %s140, %s156
      %p158 = scmp.eq.s32.totalorder %s19, 0
      %p159 = por %p157, %p158
      %p160 = scmp.le.s32.totalorder 1, %s13
      %p161 = scmp.lt.s32.totalorder %s13, 9
      %p162 = pnand %p160, %p161
      %p163 = pneg %p162
      // Predicated region
      $region9: #{multiplicative_composition.1} parent=5 // pred_check
        _
      $region10: #{multiplicative_composition.1} parent=5 // pred_check_branch
        %165 = sbr.rel (%p162) target = $region12
      $region11: #{multiplicative_composition.1} parent=5 // pred_region
        %s166 = ssub.s32 %s13, 1
        // Predicated region
        $region13: #{multiplicative_composition.1} parent=11 // pred_check
          %p167 = pneg %p126
        $region14: #{multiplicative_composition.1} parent=11 // pred_check_branch
          %169 = sbr.rel (%p167) target = $region16
        $region15: #{multiplicative_composition.1} parent=11 // pred_region
          _
        $region16: #{multiplicative_composition.1} parent=11 // pred_fallthru
          _
      $region12: #{multiplicative_composition.1} parent=5 // pred_fallthru
        _
      %p170 = scmp.lt.s32.totalorder %s13, 8
      // Predicated region
      $region17: #{multiplicative_composition.1} parent=5 // pred_check
        %p171 = pneg %p170
      $region18: #{multiplicative_composition.1} parent=5 // pred_check_branch
        %173 = sbr.rel (%p171) target = $region20
      $region19: #{multiplicative_composition.1} parent=5 // pred_region
        // Predicated region
        $region21: #{multiplicative_composition.1} parent=19 // pred_check
          %p174 = pneg %p45
        $region22: #{multiplicative_composition.1} parent=19 // pred_check_branch
          %176 = sbr.rel (%p174) target = $region24
        $region23: #{multiplicative_composition.1} parent=19 // pred_region
          %s177 = sand.u32 %s35, 1
          %s178 = sand.u32 %s35, 1
          %s179 = smul.addr %s178, 64
          %s180 = scalar_lea.vmem [#allocation3], %s179
          %s181 = smul.addr %s20, 4
          %s182 = scalar_lea.vmem %s0, %s181
          // Predicated region
          $region25: #{multiplicative_composition.1} parent=23 // pred_check
            _
          $region26: #{multiplicative_composition.1} parent=23 // pred_check_branch
            %184 = sbr.rel (0) target = $region28
          $region27: #{multiplicative_composition.1} parent=23 // pred_region
            // Predicated region
            $region29: #{multiplicative_composition.1} parent=27 // pred_check
              _
            $region30: #{multiplicative_composition.1} parent=27 // pred_check_branch
              %186 = sbr.rel target = $region32
            $region31: #{multiplicative_composition.1} parent=27 // pred_region
              // Predicated region
              $region44: #{multiplicative_composition.1} parent=31 // pred_check
                _
              $region45: #{multiplicative_composition.1} parent=31 // pred_check_branch
                %231 = sbr.rel (0) target = $region47
              $region46: #{multiplicative_composition.1} parent=31 // pred_region
                loop: start=0, step=1, limit=1
                $region48: #{multiplicative_composition.1} parent=46 // loop_pre_header
                  _
                $region49: #{multiplicative_composition.1} parent=46 // loop_header
                  %s233 = sphi 0, %s237
                  %p234 = scmp.ge.s32.totalorder %s233, 1
                  %s238 = sphi %s182, %s182
                  %s239 = sphi %s180, %s180
                $region50: #{multiplicative_composition.1} parent=46 // loop_header_branch
                  %236 = sbr.rel (%p234) target = $region54
                $region51: #{multiplicative_composition.1} parent=46 // loop_body
                  _
                $region52: #{multiplicative_composition.1} parent=46 // loop_footer
                  %s237 = sadd.s32 1, %s233
                $region53: #{multiplicative_composition.1} parent=46 // loop_footer_branch
                  %232 = sbr.rel target = $region49
                $region54: #{multiplicative_composition.1} parent=46 // loop_exit
                  _
                loop: start=0, step=1, limit=1
                $region55: #{multiplicative_composition.1} parent=46 // loop_pre_header
                  _
                $region56: #{multiplicative_composition.1} parent=46 // loop_header
                  %s242 = sphi 0, %s246
                  %p243 = scmp.ge.s32.totalorder %s242, 1
                  %s247 = sphi %s182, %s182
                  %s248 = sphi %s180, %s180
                $region57: #{multiplicative_composition.1} parent=46 // loop_header_branch
                  %245 = sbr.rel (%p243) target = $region61
                $region58: #{multiplicative_composition.1} parent=46 // loop_body
                  %v249 = vld [vmem:[%s247] sm:$0xf]
                  %250 = vst [vmem:[%s248] sm:$0xf] %v249
                  %v251 = vld [vmem:[%s247 + $0x8] sm:$0xf]
                  %252 = vst [vmem:[%s248 + $0x4] sm:$0xf] %v251
                  %v253 = vld [vmem:[%s247 + $0x10] sm:$0xf]
                  %254 = vst [vmem:[%s248 + $0x8] sm:$0xf] %v253
                  %v255 = vld [vmem:[%s247 + $0x18] sm:$0xf]
                  %256 = vst [vmem:[%s248 + $0xc] sm:$0xf] %v255
                  %v257 = vld [vmem:[%s247 + $0x20] sm:$0xf]
                  %258 = vst [vmem:[%s248 + $0x10] sm:$0xf] %v257
                  %v259 = vld [vmem:[%s247 + $0x28] sm:$0xf]
                  %260 = vst [vmem:[%s248 + $0x14] sm:$0xf] %v259
                  %v261 = vld [vmem:[%s247 + $0x30] sm:$0xf]
                  %262 = vst [vmem:[%s248 + $0x18] sm:$0xf] %v261
                  %v263 = vld [vmem:[%s247 + $0x38] sm:$0xf]
                  %264 = vst [vmem:[%s248 + $0x1c] sm:$0xf] %v263
                  %v265 = vld [vmem:[%s247 + $0x40] sm:$0xf]
                  %266 = vst [vmem:[%s248 + $0x20] sm:$0xf] %v265
                  %v267 = vld [vmem:[%s247 + $0x48] sm:$0xf]
                  %268 = vst [vmem:[%s248 + $0x24] sm:$0xf] %v267
                  %v269 = vld [vmem:[%s247 + $0x50] sm:$0xf]
                  %270 = vst [vmem:[%s248 + $0x28] sm:$0xf] %v269
                  %v271 = vld [vmem:[%s247 + $0x58] sm:$0xf]
                  %272 = vst [vmem:[%s248 + $0x2c] sm:$0xf] %v271
                  %v273 = vld [vmem:[%s247 + $0x60] sm:$0xf]
                  %274 = vst [vmem:[%s248 + $0x30] sm:$0xf] %v273
                  %v275 = vld [vmem:[%s247 + $0x68] sm:$0xf]
                  %276 = vst [vmem:[%s248 + $0x34] sm:$0xf] %v275
                  %v277 = vld [vmem:[%s247 + $0x70] sm:$0xf]
                  %278 = vst [vmem:[%s248 + $0x38] sm:$0xf] %v277
                  %v279 = vld [vmem:[%s247 + $0x78] sm:$0xf]
                  %280 = vst [vmem:[%s248 + $0x3c] sm:$0xf] %v279
                $region59: #{multiplicative_composition.1} parent=46 // loop_footer
                  %s246 = sadd.s32 1, %s242
                $region60: #{multiplicative_composition.1} parent=46 // loop_footer_branch
                  %241 = sbr.rel target = $region56
                $region61: #{multiplicative_composition.1} parent=46 // loop_exit
                  _
              $region47: #{multiplicative_composition.1} parent=31 // pred_fallthru
                _
            $region32: #{multiplicative_composition.1} parent=27 // pred_fallthru
              _
            // Predicated region
            $region33: #{multiplicative_composition.1} parent=27 // pred_check
              _
            $region34: #{multiplicative_composition.1} parent=27 // pred_check_branch
              %188 = sbr.rel (0) target = $region36
            $region35: #{multiplicative_composition.1} parent=27 // pred_region
              loop: start=0, step=1, limit=1
              $region37: #{multiplicative_composition.1} parent=35 // loop_pre_header
                _
              $region38: #{multiplicative_composition.1} parent=35 // loop_header
                %s191 = sphi 0, %s195
                %p192 = scmp.ge.s32.totalorder %s191, 1
                %s196 = sphi %s182, %s182
                %s197 = sphi %s180, %s180
              $region39: #{multiplicative_composition.1} parent=35 // loop_header_branch
                %194 = sbr.rel (%p192) target = $region43
              $region40: #{multiplicative_composition.1} parent=35 // loop_body
                %v198 = vld [vmem:[%s196] sm:$0xf]
                %199 = vst [vmem:[%s197] sm:$0xf] %v198
                %v200 = vld [vmem:[%s196 + $0x8] sm:$0xf]
                %201 = vst [vmem:[%s197 + $0x4] sm:$0xf] %v200
                %v202 = vld [vmem:[%s196 + $0x10] sm:$0xf]
                %203 = vst [vmem:[%s197 + $0x8] sm:$0xf] %v202
                %v204 = vld [vmem:[%s196 + $0x18] sm:$0xf]
                %205 = vst [vmem:[%s197 + $0xc] sm:$0xf] %v204
                %v206 = vld [vmem:[%s196 + $0x20] sm:$0xf]
                %207 = vst [vmem:[%s197 + $0x10] sm:$0xf] %v206
                %v208 = vld [vmem:[%s196 + $0x28] sm:$0xf]
                %209 = vst [vmem:[%s197 + $0x14] sm:$0xf] %v208
                %v210 = vld [vmem:[%s196 + $0x30] sm:$0xf]
                %211 = vst [vmem:[%s197 + $0x18] sm:$0xf] %v210
                %v212 = vld [vmem:[%s196 + $0x38] sm:$0xf]
                %213 = vst [vmem:[%s197 + $0x1c] sm:$0xf] %v212
                %v214 = vld [vmem:[%s196 + $0x40] sm:$0xf]
                %215 = vst [vmem:[%s197 + $0x20] sm:$0xf] %v214
                %v216 = vld [vmem:[%s196 + $0x48] sm:$0xf]
                %217 = vst [vmem:[%s197 + $0x24] sm:$0xf] %v216
                %v218 = vld [vmem:[%s196 + $0x50] sm:$0xf]
                %219 = vst [vmem:[%s197 + $0x28] sm:$0xf] %v218
                %v220 = vld [vmem:[%s196 + $0x58] sm:$0xf]
                %221 = vst [vmem:[%s197 + $0x2c] sm:$0xf] %v220
                %v222 = vld [vmem:[%s196 + $0x60] sm:$0xf]
                %223 = vst [vmem:[%s197 + $0x30] sm:$0xf] %v222
                %v224 = vld [vmem:[%s196 + $0x68] sm:$0xf]
                %225 = vst [vmem:[%s197 + $0x34] sm:$0xf] %v224
                %v226 = vld [vmem:[%s196 + $0x70] sm:$0xf]
                %227 = vst [vmem:[%s197 + $0x38] sm:$0xf] %v226
                %v228 = vld [vmem:[%s196 + $0x78] sm:$0xf]
                %229 = vst [vmem:[%s197 + $0x3c] sm:$0xf] %v228
              $region41: #{multiplicative_composition.1} parent=35 // loop_footer
                %s195 = sadd.s32 1, %s191
              $region42: #{multiplicative_composition.1} parent=35 // loop_footer_branch
                %190 = sbr.rel target = $region38
              $region43: #{multiplicative_composition.1} parent=35 // loop_exit
                _
            $region36: #{multiplicative_composition.1} parent=27 // pred_fallthru
              _
          $region28: #{multiplicative_composition.1} parent=23 // pred_fallthru
            _
          %281 = vnop
        $region24: #{multiplicative_composition.1} parent=19 // pred_fallthru
          _
        // Predicated region
        $region62: #{multiplicative_composition.1} parent=19 // pred_check
          %p282 = pneg %p73
        $region63: #{multiplicative_composition.1} parent=19 // pred_check_branch
          %284 = sbr.rel (%p282) target = $region65
        $region64: #{multiplicative_composition.1} parent=19 // pred_region
          %s285 = sand.u32 %s63, 1
          %s286 = sand.u32 %s63, 1
          %s287 = smul.addr %s286, 16
          %s288 = scalar_lea.vmem [#allocation4], %s287
          %s289 = smul.u32 4, %s21
          %s290 = smul.addr %s289, 2
          %s291 = sadd.s32 %s20, %s290
          %s292 = smul.addr %s291, 4
          %s293 = scalar_lea.vmem %s1, %s292
          // Predicated region
          $region66: #{multiplicative_composition.1} parent=64 // pred_check
            _
          $region67: #{multiplicative_composition.1} parent=64 // pred_check_branch
            %295 = sbr.rel (0) target = $region69
          $region68: #{multiplicative_composition.1} parent=64 // pred_region
            // Predicated region
            $region70: #{multiplicative_composition.1} parent=68 // pred_check
              _
            $region71: #{multiplicative_composition.1} parent=68 // pred_check_branch
              %297 = sbr.rel target = $region73
            $region72: #{multiplicative_composition.1} parent=68 // pred_region
              // Predicated region
              $region85: #{multiplicative_composition.1} parent=72 // pred_check
                _
              $region86: #{multiplicative_composition.1} parent=72 // pred_check_branch
                %318 = sbr.rel (0) target = $region88
              $region87: #{multiplicative_composition.1} parent=72 // pred_region
                loop: start=0, step=1, limit=1
                $region89: #{multiplicative_composition.1} parent=87 // loop_pre_header
                  _
                $region90: #{multiplicative_composition.1} parent=87 // loop_header
                  %s320 = sphi 0, %s324
                  %p321 = scmp.ge.s32.totalorder %s320, 1
                  %s325 = sphi %s293, %s293
                  %s326 = sphi %s288, %s288
                $region91: #{multiplicative_composition.1} parent=87 // loop_header_branch
                  %323 = sbr.rel (%p321) target = $region95
                $region92: #{multiplicative_composition.1} parent=87 // loop_body
                  _
                $region93: #{multiplicative_composition.1} parent=87 // loop_footer
                  %s324 = sadd.s32 1, %s320
                $region94: #{multiplicative_composition.1} parent=87 // loop_footer_branch
                  %319 = sbr.rel target = $region90
                $region95: #{multiplicative_composition.1} parent=87 // loop_exit
                  _
                loop: start=0, step=1, limit=1
                $region96: #{multiplicative_composition.1} parent=87 // loop_pre_header
                  _
                $region97: #{multiplicative_composition.1} parent=87 // loop_header
                  %s329 = sphi 0, %s333
                  %p330 = scmp.ge.s32.totalorder %s329, 1
                  %s334 = sphi %s293, %s293
                  %s335 = sphi %s288, %s288
                $region98: #{multiplicative_composition.1} parent=87 // loop_header_branch
                  %332 = sbr.rel (%p330) target = $region102
                $region99: #{multiplicative_composition.1} parent=87 // loop_body
                  %v336 = vld [vmem:[%s334] sm:$0xf]
                  %337 = vst [vmem:[%s335] sm:$0xf] %v336
                  %v338 = vld [vmem:[%s334 + $0x8] sm:$0xf]
                  %339 = vst [vmem:[%s335 + $0x4] sm:$0xf] %v338
                  %v340 = vld [vmem:[%s334 + $0x10] sm:$0xf]
                  %341 = vst [vmem:[%s335 + $0x8] sm:$0xf] %v340
                  %v342 = vld [vmem:[%s334 + $0x18] sm:$0xf]
                  %343 = vst [vmem:[%s335 + $0xc] sm:$0xf] %v342
                $region100: #{multiplicative_composition.1} parent=87 // loop_footer
                  %s333 = sadd.s32 1, %s329
                $region101: #{multiplicative_composition.1} parent=87 // loop_footer_branch
                  %328 = sbr.rel target = $region97
                $region102: #{multiplicative_composition.1} parent=87 // loop_exit
                  _
              $region88: #{multiplicative_composition.1} parent=72 // pred_fallthru
                _
            $region73: #{multiplicative_composition.1} parent=68 // pred_fallthru
              _
            // Predicated region
            $region74: #{multiplicative_composition.1} parent=68 // pred_check
              _
            $region75: #{multiplicative_composition.1} parent=68 // pred_check_branch
              %299 = sbr.rel (0) target = $region77
            $region76: #{multiplicative_composition.1} parent=68 // pred_region
              loop: start=0, step=1, limit=1
              $region78: #{multiplicative_composition.1} parent=76 // loop_pre_header
                _
              $region79: #{multiplicative_composition.1} parent=76 // loop_header
                %s302 = sphi 0, %s306
                %p303 = scmp.ge.s32.totalorder %s302, 1
                %s307 = sphi %s293, %s293
                %s308 = sphi %s288, %s288
              $region80: #{multiplicative_composition.1} parent=76 // loop_header_branch
                %305 = sbr.rel (%p303) target = $region84
              $region81: #{multiplicative_composition.1} parent=76 // loop_body
                %v309 = vld [vmem:[%s307] sm:$0xf]
                %310 = vst [vmem:[%s308] sm:$0xf] %v309
                %v311 = vld [vmem:[%s307 + $0x8] sm:$0xf]
                %312 = vst [vmem:[%s308 + $0x4] sm:$0xf] %v311
                %v313 = vld [vmem:[%s307 + $0x10] sm:$0xf]
                %314 = vst [vmem:[%s308 + $0x8] sm:$0xf] %v313
                %v315 = vld [vmem:[%s307 + $0x18] sm:$0xf]
                %316 = vst [vmem:[%s308 + $0xc] sm:$0xf] %v315
              $region82: #{multiplicative_composition.1} parent=76 // loop_footer
                %s306 = sadd.s32 1, %s302
              $region83: #{multiplicative_composition.1} parent=76 // loop_footer_branch
                %301 = sbr.rel target = $region79
              $region84: #{multiplicative_composition.1} parent=76 // loop_exit
                _
            $region77: #{multiplicative_composition.1} parent=68 // pred_fallthru
              _
          $region69: #{multiplicative_composition.1} parent=64 // pred_fallthru
            _
          %344 = vnop
        $region65: #{multiplicative_composition.1} parent=19 // pred_fallthru
          _
        // Predicated region
        $region103: #{multiplicative_composition.1} parent=19 // pred_check
          %p345 = pneg %p99
        $region104: #{multiplicative_composition.1} parent=19 // pred_check_branch
          %347 = sbr.rel (%p345) target = $region106
        $region105: #{multiplicative_composition.1} parent=19 // pred_region
          %s348 = sand.u32 %s89, 1
          %s349 = scalar_lea.sflag [#allocation6], %s348
          %s350 = sand.u32 %s89, 1
          %s351 = smul.addr %s350, 2048
          %s352 = scalar_lea.vmem [#allocation5], %s351
          %s353 = smul.u32 32, %s21
          %s355 = ssub.s32 32768, 32768
          %356 = vsyncadd %s349, %s355
          %s357 = smul.addr %s353, 64
          %s358 = scalar_lea.hbm %s2, %s357
          %s359 = sshll.u32 %s352, 4
          %s360 = int_to_ptr.vmem [resolvable:$true] %s359
          %365 = dma.hbm_to_vmem [thread:$0]  %s358, 32768, %s360, %s349, 8192, 2048, 128
        $region106: #{multiplicative_composition.1} parent=19 // pred_fallthru
          _
      $region20: #{multiplicative_composition.1} parent=5 // pred_fallthru
        _
      %p366 = scmp.le.s32.totalorder 1, %s13
      %p367 = scmp.lt.s32.totalorder %s13, 9
      %p368 = pnand %p366, %p367
      %p369 = pneg %p368
      // Predicated region
      $region107: #{multiplicative_composition.1} parent=5 // pred_check
        _
      $region108: #{multiplicative_composition.1} parent=5 // pred_check_branch
        %371 = sbr.rel (%p368) target = $region110
      $region109: #{multiplicative_composition.1} parent=5 // pred_region
        %s372 = ssub.s32 %s13, 1
        %s373 = sand.u32 %s38, 1
        %s374 = sand.u32 %s38, 1
        %s375 = smul.addr %s374, 64
        %s376 = scalar_lea.vmem [#allocation3], %s375
        // Predicated region
        $region111: #{multiplicative_composition.1} parent=109 // pred_check
          %p377 = pneg %p51
        $region112: #{multiplicative_composition.1} parent=109 // pred_check_branch
          %379 = sbr.rel (%p377) target = $region114
        $region113: #{multiplicative_composition.1} parent=109 // pred_region
          _
        $region114: #{multiplicative_composition.1} parent=109 // pred_fallthru
          _
        %s380 = sand.u32 %s66, 1
        %s381 = sand.u32 %s66, 1
        %s382 = smul.addr %s381, 16
        %s383 = scalar_lea.vmem [#allocation4], %s382
        // Predicated region
        $region115: #{multiplicative_composition.1} parent=109 // pred_check
          %p384 = pneg %p79
        $region116: #{multiplicative_composition.1} parent=109 // pred_check_branch
          %386 = sbr.rel (%p384) target = $region118
        $region117: #{multiplicative_composition.1} parent=109 // pred_region
          _
        $region118: #{multiplicative_composition.1} parent=109 // pred_fallthru
          _
        %s387 = sand.u32 %s92, 1
        %s388 = scalar_lea.sflag [#allocation6], %s387
        %s389 = sand.u32 %s92, 1
        %s390 = smul.addr %s389, 2048
        %s391 = scalar_lea.vmem [#allocation5], %s390
        // Predicated region
        $region119: #{multiplicative_composition.1} parent=109 // pred_check
          %p392 = pneg %p105
        $region120: #{multiplicative_composition.1} parent=109 // pred_check_branch
          %394 = sbr.rel (%p392) target = $region122
        $region121: #{multiplicative_composition.1} parent=109 // pred_region
          %395 = dma.done %s388, 32768
        $region122: #{multiplicative_composition.1} parent=109 // pred_fallthru
          _
        %s396 = sand.u32 %s38, 1
        %s397 = sand.u32 %s38, 1
        %s398 = smul.addr %s397, 64
        %s399 = scalar_lea.vmem [#allocation3], %s398
        %p400 = pneg %p51
        %p401 = pneg %p48
        %s402 = sand.u32 %s66, 1
        %s403 = sand.u32 %s66, 1
        %s404 = smul.addr %s403, 16
        %s405 = scalar_lea.vmem [#allocation4], %s404
        %p406 = pneg %p79
        %p407 = pneg %p76
        %s408 = sand.u32 %s92, 1
        %s409 = scalar_lea.sflag [#allocation6], %s408
        %s410 = sand.u32 %s92, 1
        %s411 = smul.addr %s410, 2048
        %s412 = scalar_lea.vmem [#allocation5], %s411
        %p413 = pneg %p105
        %p414 = pneg %p102
        %p415 = pneg %p126
        %p416 = pneg %p123
        %p417 = pneg %p152
        %p418 = pneg %p149
        %s419 = sand.u32 %s139, 1
        %s420 = sand.u32 %s139, 1
        %s421 = smul.addr %s420, 128
        %s422 = scalar_lea.vmem [#allocation7], %s421
        %s423 = smul.u32 4, %s23
        %s424 = smul.u32 32, %s23
        %p426 = scmp.eq.s32.totalorder %s23, 0
        // Predicated region
        $region123: #{multiplicative_composition.1} parent=109 // pred_check
          %p427 = pneg %p426
        $region124: #{multiplicative_composition.1} parent=109 // pred_check_branch
          %429 = sbr.rel (%p427) target = $region126
        $region125: #{multiplicative_composition.1} parent=109 // pred_region
          %430 = vst [vmem:[#allocation2] sm:$0xff] 0.0
          %431 = vst [vmem:[#allocation2 + $0x8] sm:$0xff] 0.0
          %432 = vst [vmem:[#allocation2 + $0x10] sm:$0xff] 0.0
          %433 = vst [vmem:[#allocation2 + $0x18] sm:$0xff] 0.0
          %434 = vst [vmem:[#allocation2 + $0x20] sm:$0xff] 0.0
          %435 = vst [vmem:[#allocation2 + $0x28] sm:$0xff] 0.0
          %436 = vst [vmem:[#allocation2 + $0x30] sm:$0xff] 0.0
          %437 = vst [vmem:[#allocation2 + $0x38] sm:$0xff] 0.0
          %438 = vst [vmem:[#allocation2 + $0x40] sm:$0xff] 0.0
          %439 = vst [vmem:[#allocation2 + $0x48] sm:$0xff] 0.0
          %440 = vst [vmem:[#allocation2 + $0x50] sm:$0xff] 0.0
          %441 = vst [vmem:[#allocation2 + $0x58] sm:$0xff] 0.0
          %442 = vst [vmem:[#allocation2 + $0x60] sm:$0xff] 0.0
          %443 = vst [vmem:[#allocation2 + $0x68] sm:$0xff] 0.0
          %444 = vst [vmem:[#allocation2 + $0x70] sm:$0xff] 0.0
          %445 = vst [vmem:[#allocation2 + $0x78] sm:$0xff] 0.0
        $region126: #{multiplicative_composition.1} parent=109 // pred_fallthru
          _
        %v446 = vld [vmem:[%s383] sm:$0xf]
        %v447 = vld [vmem:[%s383 + $0x4] sm:$0xf]
        %v448 = vld [vmem:[%s383 + $0x8] sm:$0xf]
        %v449 = vld [vmem:[%s383 + $0xc] sm:$0xf]
        %v455 = vunpack.c.l.s4 1966171168
        %v456 = vunpack.c.0.s8 %v455
        %v457 = vlaneseq
        %v458 = vshrl.u32 %v457, 7
        %v459 = vsub.s32 %v456, %v458
        %v460 = vrot.slane %v446, %v459
        %v461 = vcombine.high %v460, %v460
        %v463 = vunpack.c.l.s4 1966171168
        %v464 = vunpack.c.0.s8 %v463
        %v465 = vlaneseq
        %v466 = vshrl.u32 %v465, 7
        %v467 = vsub.s32 %v464, %v466
        %v468 = vrot.slane %v460, %v467
        %v470 = vunpack.c.l.s4 1966171168
        %v471 = vunpack.c.0.s8 %v470
        %v472 = vlaneseq
        %v473 = vshrl.u32 %v472, 7
        %v474 = vsub.s32 %v471, %v473
        %v475 = vrot.slane %v461, %v474
        %v476 = vcombine.high %v468, %v468
        %v477 = vcombine.high %v475, %v475
        %v479 = vunpack.c.l.s4 1966171168
        %v480 = vunpack.c.0.s8 %v479
        %v481 = vlaneseq
        %v482 = vshrl.u32 %v481, 7
        %v483 = vsub.s32 %v480, %v482
        %v484 = vrot.slane %v447, %v483
        %v485 = vcombine.high %v484, %v484
        %v487 = vunpack.c.l.s4 1966171168
        %v488 = vunpack.c.0.s8 %v487
        %v489 = vlaneseq
        %v490 = vshrl.u32 %v489, 7
        %v491 = vsub.s32 %v488, %v490
        %v492 = vrot.slane %v484, %v491
        %v494 = vunpack.c.l.s4 1966171168
        %v495 = vunpack.c.0.s8 %v494
        %v496 = vlaneseq
        %v497 = vshrl.u32 %v496, 7
        %v498 = vsub.s32 %v495, %v497
        %v499 = vrot.slane %v485, %v498
        %v500 = vcombine.high %v492, %v492
        %v501 = vcombine.high %v499, %v499
        %v503 = vunpack.c.l.s4 1966171168
        %v504 = vunpack.c.0.s8 %v503
        %v505 = vlaneseq
        %v506 = vshrl.u32 %v505, 7
        %v507 = vsub.s32 %v504, %v506
        %v508 = vrot.slane %v448, %v507
        %v509 = vcombine.high %v508, %v508
        %v511 = vunpack.c.l.s4 1966171168
        %v512 = vunpack.c.0.s8 %v511
        %v513 = vlaneseq
        %v514 = vshrl.u32 %v513, 7
        %v515 = vsub.s32 %v512, %v514
        %v516 = vrot.slane %v508, %v515
        %v518 = vunpack.c.l.s4 1966171168
        %v519 = vunpack.c.0.s8 %v518
        %v520 = vlaneseq
        %v521 = vshrl.u32 %v520, 7
        %v522 = vsub.s32 %v519, %v521
        %v523 = vrot.slane %v509, %v522
        %v524 = vcombine.high %v516, %v516
        %v525 = vcombine.high %v523, %v523
        %v527 = vunpack.c.l.s4 1966171168
        %v528 = vunpack.c.0.s8 %v527
        %v529 = vlaneseq
        %v530 = vshrl.u32 %v529, 7
        %v531 = vsub.s32 %v528, %v530
        %v532 = vrot.slane %v449, %v531
        %v533 = vcombine.high %v532, %v532
        %v535 = vunpack.c.l.s4 1966171168
        %v536 = vunpack.c.0.s8 %v535
        %v537 = vlaneseq
        %v538 = vshrl.u32 %v537, 7
        %v539 = vsub.s32 %v536, %v538
        %v540 = vrot.slane %v532, %v539
        %v542 = vunpack.c.l.s4 1966171168
        %v543 = vunpack.c.0.s8 %v542
        %v544 = vlaneseq
        %v545 = vshrl.u32 %v544, 7
        %v546 = vsub.s32 %v543, %v545
        %v547 = vrot.slane %v533, %v546
        %v548 = vcombine.high %v540, %v540
        %v549 = vcombine.high %v547, %v547
        %v550 = vunpack.i.l.s16 %v468
        %v551 = vunpack.i.h.s16 %v468
        %v552 = vunpack.i.l.s16 %v475
        %v553 = vunpack.i.h.s16 %v475
        %v554 = vunpack.i.l.s16 %v476
        %v555 = vunpack.i.h.s16 %v476
        %v556 = vunpack.i.l.s16 %v477
        %v557 = vunpack.i.h.s16 %v477
        %v558 = vunpack.i.l.s16 %v492
        %v559 = vunpack.i.h.s16 %v492
        %v560 = vunpack.i.l.s16 %v499
        %v561 = vunpack.i.h.s16 %v499
        %v562 = vunpack.i.l.s16 %v500
        %v563 = vunpack.i.h.s16 %v500
        %v564 = vunpack.i.l.s16 %v501
        %v565 = vunpack.i.h.s16 %v501
        %v566 = vunpack.i.l.s16 %v516
        %v567 = vunpack.i.h.s16 %v516
        %v568 = vunpack.i.l.s16 %v523
        %v569 = vunpack.i.h.s16 %v523
        %v570 = vunpack.i.l.s16 %v524
        %v571 = vunpack.i.h.s16 %v524
        %v572 = vunpack.i.l.s16 %v525
        %v573 = vunpack.i.h.s16 %v525
        %v574 = vunpack.i.l.s16 %v540
        %v575 = vunpack.i.h.s16 %v540
        %v576 = vunpack.i.l.s16 %v547
        %v577 = vunpack.i.h.s16 %v547
        %v578 = vunpack.i.l.s16 %v548
        %v579 = vunpack.i.h.s16 %v548
        %v580 = vunpack.i.l.s16 %v549
        %v581 = vunpack.i.h.s16 %v549
        %v582 = vld [vmem:[%s376] sm:$0xf]
        %v583 = vld [vmem:[%s376 + $0x4] sm:$0xf]
        %v584 = vld [vmem:[%s376 + $0x8] sm:$0xf]
        %v585 = vld [vmem:[%s376 + $0xc] sm:$0xf]
        %v586 = vld [vmem:[%s376 + $0x10] sm:$0xf]
        %v587 = vld [vmem:[%s376 + $0x14] sm:$0xf]
        %v588 = vld [vmem:[%s376 + $0x18] sm:$0xf]
        %v589 = vld [vmem:[%s376 + $0x1c] sm:$0xf]
        %v590 = vld [vmem:[%s376 + $0x20] sm:$0xf]
        %v591 = vld [vmem:[%s376 + $0x24] sm:$0xf]
        %v592 = vld [vmem:[%s376 + $0x28] sm:$0xf]
        %v593 = vld [vmem:[%s376 + $0x2c] sm:$0xf]
        %v594 = vld [vmem:[%s376 + $0x30] sm:$0xf]
        %v595 = vld [vmem:[%s376 + $0x34] sm:$0xf]
        %v596 = vld [vmem:[%s376 + $0x38] sm:$0xf]
        %v597 = vld [vmem:[%s376 + $0x3c] sm:$0xf]
        %v598 = vpack.i.b16 %v550, %v550
        %v599 = vpack.i.b16 %v551, %v551
        %v600 = vpack.i.b16 %v552, %v552
        %v601 = vpack.i.b16 %v553, %v553
        %v602 = vpack.i.b16 %v554, %v554
        %v603 = vpack.i.b16 %v555, %v555
        %v604 = vpack.i.b16 %v556, %v556
        %v605 = vpack.i.b16 %v557, %v557
        %v606 = vpack.i.b16 %v558, %v558
        %v607 = vpack.i.b16 %v559, %v559
        %v608 = vpack.i.b16 %v560, %v560
        %v609 = vpack.i.b16 %v561, %v561
        %v610 = vpack.i.b16 %v562, %v562
        %v611 = vpack.i.b16 %v563, %v563
        %v612 = vpack.i.b16 %v564, %v564
        %v613 = vpack.i.b16 %v565, %v565
        %v614 = vpack.i.b16 %v566, %v566
        %v615 = vpack.i.b16 %v567, %v567
        %v616 = vpack.i.b16 %v568, %v568
        %v617 = vpack.i.b16 %v569, %v569
        %v618 = vpack.i.b16 %v570, %v570
        %v619 = vpack.i.b16 %v571, %v571
        %v620 = vpack.i.b16 %v572, %v572
        %v621 = vpack.i.b16 %v573, %v573
        %v622 = vpack.i.b16 %v574, %v574
        %v623 = vpack.i.b16 %v575, %v575
        %v624 = vpack.i.b16 %v576, %v576
        %v625 = vpack.i.b16 %v577, %v577
        %v626 = vpack.i.b16 %v578, %v578
        %v627 = vpack.i.b16 %v579, %v579
        %v628 = vpack.i.b16 %v580, %v580
        %v629 = vpack.i.b16 %v581, %v581
        %v630 = vlaneseq
        %v631 = vshrl.u32 %v630, 7
        %v632 = vsub.s32 0, %v631
        %v633 = vrot.slane %v598, %v632
        %v634 = vlaneseq
        %v635 = vshrl.u32 %v634, 7
        %v636 = vsub.s32 0, %v635
        %v637 = vrot.slane %v599, %v636
        %v638 = vlaneseq
        %v639 = vshrl.u32 %v638, 7
        %v640 = vsub.s32 0, %v639
        %v641 = vrot.slane %v600, %v640
        %v642 = vlaneseq
        %v643 = vshrl.u32 %v642, 7
        %v644 = vsub.s32 0, %v643
        %v645 = vrot.slane %v601, %v644
        %v646 = vlaneseq
        %v647 = vshrl.u32 %v646, 7
        %v648 = vsub.s32 0, %v647
        %v649 = vrot.slane %v602, %v648
        %v650 = vlaneseq
        %v651 = vshrl.u32 %v650, 7
        %v652 = vsub.s32 0, %v651
        %v653 = vrot.slane %v603, %v652
        %v654 = vlaneseq
        %v655 = vshrl.u32 %v654, 7
        %v656 = vsub.s32 0, %v655
        %v657 = vrot.slane %v604, %v656
        %v658 = vlaneseq
        %v659 = vshrl.u32 %v658, 7
        %v660 = vsub.s32 0, %v659
        %v661 = vrot.slane %v605, %v660
        %v662 = vlaneseq
        %v663 = vshrl.u32 %v662, 7
        %v664 = vsub.s32 0, %v663
        %v665 = vrot.slane %v606, %v664
        %v666 = vlaneseq
        %v667 = vshrl.u32 %v666, 7
        %v668 = vsub.s32 0, %v667
        %v669 = vrot.slane %v607, %v668
        %v670 = vlaneseq
        %v671 = vshrl.u32 %v670, 7
        %v672 = vsub.s32 0, %v671
        %v673 = vrot.slane %v608, %v672
        %v674 = vlaneseq
        %v675 = vshrl.u32 %v674, 7
        %v676 = vsub.s32 0, %v675
        %v677 = vrot.slane %v609, %v676
        %v678 = vlaneseq
        %v679 = vshrl.u32 %v678, 7
        %v680 = vsub.s32 0, %v679
        %v681 = vrot.slane %v610, %v680
        %v682 = vlaneseq
        %v683 = vshrl.u32 %v682, 7
        %v684 = vsub.s32 0, %v683
        %v685 = vrot.slane %v611, %v684
        %v686 = vlaneseq
        %v687 = vshrl.u32 %v686, 7
        %v688 = vsub.s32 0, %v687
        %v689 = vrot.slane %v612, %v688
        %v690 = vlaneseq
        %v691 = vshrl.u32 %v690, 7
        %v692 = vsub.s32 0, %v691
        %v693 = vrot.slane %v613, %v692
        %v694 = vlaneseq
        %v695 = vshrl.u32 %v694, 7
        %v696 = vsub.s32 0, %v695
        %v697 = vrot.slane %v614, %v696
        %v698 = vlaneseq
        %v699 = vshrl.u32 %v698, 7
        %v700 = vsub.s32 0, %v699
        %v701 = vrot.slane %v615, %v700
        %v702 = vlaneseq
        %v703 = vshrl.u32 %v702, 7
        %v704 = vsub.s32 0, %v703
        %v705 = vrot.slane %v616, %v704
        %v706 = vlaneseq
        %v707 = vshrl.u32 %v706, 7
        %v708 = vsub.s32 0, %v707
        %v709 = vrot.slane %v617, %v708
        %v710 = vlaneseq
        %v711 = vshrl.u32 %v710, 7
        %v712 = vsub.s32 0, %v711
        %v713 = vrot.slane %v618, %v712
        %v714 = vlaneseq
        %v715 = vshrl.u32 %v714, 7
        %v716 = vsub.s32 0, %v715
        %v717 = vrot.slane %v619, %v716
        %v718 = vlaneseq
        %v719 = vshrl.u32 %v718, 7
        %v720 = vsub.s32 0, %v719
        %v721 = vrot.slane %v620, %v720
        %v722 = vlaneseq
        %v723 = vshrl.u32 %v722, 7
        %v724 = vsub.s32 0, %v723
        %v725 = vrot.slane %v621, %v724
        %v726 = vlaneseq
        %v727 = vshrl.u32 %v726, 7
        %v728 = vsub.s32 0, %v727
        %v729 = vrot.slane %v622, %v728
        %v730 = vlaneseq
        %v731 = vshrl.u32 %v730, 7
        %v732 = vsub.s32 0, %v731
        %v733 = vrot.slane %v623, %v732
        %v734 = vlaneseq
        %v735 = vshrl.u32 %v734, 7
        %v736 = vsub.s32 0, %v735
        %v737 = vrot.slane %v624, %v736
        %v738 = vlaneseq
        %v739 = vshrl.u32 %v738, 7
        %v740 = vsub.s32 0, %v739
        %v741 = vrot.slane %v625, %v740
        %v742 = vlaneseq
        %v743 = vshrl.u32 %v742, 7
        %v744 = vsub.s32 0, %v743
        %v745 = vrot.slane %v626, %v744
        %v746 = vlaneseq
        %v747 = vshrl.u32 %v746, 7
        %v748 = vsub.s32 0, %v747
        %v749 = vrot.slane %v627, %v748
        %v750 = vlaneseq
        %v751 = vshrl.u32 %v750, 7
        %v752 = vsub.s32 0, %v751
        %v753 = vrot.slane %v628, %v752
        %v754 = vlaneseq
        %v755 = vshrl.u32 %v754, 7
        %v756 = vsub.s32 0, %v755
        %v757 = vrot.slane %v629, %v756
        %v759 = vpack.i.b16 %v633, %v633
        %v761 = vlaneseq
        %v762 = vshrl.u32 %v761, 7
        %v763 = vsub.s32 0, %v762
        %v764 = vrot.slane %v759, %v763
        %v766 = vpack.i.b16 %v637, %v637
        %v768 = vlaneseq
        %v769 = vshrl.u32 %v768, 7
        %v770 = vsub.s32 0, %v769
        %v771 = vrot.slane %v766, %v770
        %v773 = vpack.i.b16 %v641, %v641
        %v775 = vlaneseq
        %v776 = vshrl.u32 %v775, 7
        %v777 = vsub.s32 0, %v776
        %v778 = vrot.slane %v773, %v777
        %v780 = vpack.i.b16 %v645, %v645
        %v782 = vlaneseq
        %v783 = vshrl.u32 %v782, 7
        %v784 = vsub.s32 0, %v783
        %v785 = vrot.slane %v780, %v784
        %v787 = vpack.i.b16 %v649, %v649
        %v789 = vlaneseq
        %v790 = vshrl.u32 %v789, 7
        %v791 = vsub.s32 0, %v790
        %v792 = vrot.slane %v787, %v791
        %v794 = vpack.i.b16 %v653, %v653
        %v796 = vlaneseq
        %v797 = vshrl.u32 %v796, 7
        %v798 = vsub.s32 0, %v797
        %v799 = vrot.slane %v794, %v798
        %v801 = vpack.i.b16 %v657, %v657
        %v803 = vlaneseq
        %v804 = vshrl.u32 %v803, 7
        %v805 = vsub.s32 0, %v804
        %v806 = vrot.slane %v801, %v805
        %v808 = vpack.i.b16 %v661, %v661
        %v810 = vlaneseq
        %v811 = vshrl.u32 %v810, 7
        %v812 = vsub.s32 0, %v811
        %v813 = vrot.slane %v808, %v812
        %v815 = vpack.i.b16 %v665, %v665
        %v817 = vlaneseq
        %v818 = vshrl.u32 %v817, 7
        %v819 = vsub.s32 0, %v818
        %v820 = vrot.slane %v815, %v819
        %v822 = vpack.i.b16 %v669, %v669
        %v824 = vlaneseq
        %v825 = vshrl.u32 %v824, 7
        %v826 = vsub.s32 0, %v825
        %v827 = vrot.slane %v822, %v826
        %v829 = vpack.i.b16 %v673, %v673
        %v831 = vlaneseq
        %v832 = vshrl.u32 %v831, 7
        %v833 = vsub.s32 0, %v832
        %v834 = vrot.slane %v829, %v833
        %v836 = vpack.i.b16 %v677, %v677
        %v838 = vlaneseq
        %v839 = vshrl.u32 %v838, 7
        %v840 = vsub.s32 0, %v839
        %v841 = vrot.slane %v836, %v840
        %v843 = vpack.i.b16 %v681, %v681
        %v845 = vlaneseq
        %v846 = vshrl.u32 %v845, 7
        %v847 = vsub.s32 0, %v846
        %v848 = vrot.slane %v843, %v847
        %v850 = vpack.i.b16 %v685, %v685
        %v852 = vlaneseq
        %v853 = vshrl.u32 %v852, 7
        %v854 = vsub.s32 0, %v853
        %v855 = vrot.slane %v850, %v854
        %v857 = vpack.i.b16 %v689, %v689
        %v859 = vlaneseq
        %v860 = vshrl.u32 %v859, 7
        %v861 = vsub.s32 0, %v860
        %v862 = vrot.slane %v857, %v861
        %v864 = vpack.i.b16 %v693, %v693
        %v866 = vlaneseq
        %v867 = vshrl.u32 %v866, 7
        %v868 = vsub.s32 0, %v867
        %v869 = vrot.slane %v864, %v868
        %v871 = vpack.i.b16 %v697, %v697
        %v873 = vlaneseq
        %v874 = vshrl.u32 %v873, 7
        %v875 = vsub.s32 0, %v874
        %v876 = vrot.slane %v871, %v875
        %v878 = vpack.i.b16 %v701, %v701
        %v880 = vlaneseq
        %v881 = vshrl.u32 %v880, 7
        %v882 = vsub.s32 0, %v881
        %v883 = vrot.slane %v878, %v882
        %v885 = vpack.i.b16 %v705, %v705
        %v887 = vlaneseq
        %v888 = vshrl.u32 %v887, 7
        %v889 = vsub.s32 0, %v888
        %v890 = vrot.slane %v885, %v889
        %v892 = vpack.i.b16 %v709, %v709
        %v894 = vlaneseq
        %v895 = vshrl.u32 %v894, 7
        %v896 = vsub.s32 0, %v895
        %v897 = vrot.slane %v892, %v896
        %v899 = vpack.i.b16 %v713, %v713
        %v901 = vlaneseq
        %v902 = vshrl.u32 %v901, 7
        %v903 = vsub.s32 0, %v902
        %v904 = vrot.slane %v899, %v903
        %v906 = vpack.i.b16 %v717, %v717
        %v908 = vlaneseq
        %v909 = vshrl.u32 %v908, 7
        %v910 = vsub.s32 0, %v909
        %v911 = vrot.slane %v906, %v910
        %v913 = vpack.i.b16 %v721, %v721
        %v915 = vlaneseq
        %v916 = vshrl.u32 %v915, 7
        %v917 = vsub.s32 0, %v916
        %v918 = vrot.slane %v913, %v917
        %v920 = vpack.i.b16 %v725, %v725
        %v922 = vlaneseq
        %v923 = vshrl.u32 %v922, 7
        %v924 = vsub.s32 0, %v923
        %v925 = vrot.slane %v920, %v924
        %v927 = vpack.i.b16 %v729, %v729
        %v929 = vlaneseq
        %v930 = vshrl.u32 %v929, 7
        %v931 = vsub.s32 0, %v930
        %v932 = vrot.slane %v927, %v931
        %v934 = vpack.i.b16 %v733, %v733
        %v936 = vlaneseq
        %v937 = vshrl.u32 %v936, 7
        %v938 = vsub.s32 0, %v937
        %v939 = vrot.slane %v934, %v938
        %v941 = vpack.i.b16 %v737, %v737
        %v943 = vlaneseq
        %v944 = vshrl.u32 %v943, 7
        %v945 = vsub.s32 0, %v944
        %v946 = vrot.slane %v941, %v945
        %v948 = vpack.i.b16 %v741, %v741
        %v950 = vlaneseq
        %v951 = vshrl.u32 %v950, 7
        %v952 = vsub.s32 0, %v951
        %v953 = vrot.slane %v948, %v952
        %v955 = vpack.i.b16 %v745, %v745
        %v957 = vlaneseq
        %v958 = vshrl.u32 %v957, 7
        %v959 = vsub.s32 0, %v958
        %v960 = vrot.slane %v955, %v959
        %v962 = vpack.i.b16 %v749, %v749
        %v964 = vlaneseq
        %v965 = vshrl.u32 %v964, 7
        %v966 = vsub.s32 0, %v965
        %v967 = vrot.slane %v962, %v966
        %v969 = vpack.i.b16 %v753, %v753
        %v971 = vlaneseq
        %v972 = vshrl.u32 %v971, 7
        %v973 = vsub.s32 0, %v972
        %v974 = vrot.slane %v969, %v973
        %v976 = vpack.i.b16 %v757, %v757
        %v978 = vlaneseq
        %v979 = vshrl.u32 %v978, 7
        %v980 = vsub.s32 0, %v979
        %v981 = vrot.slane %v976, %v980
        %v998 = vunpack.c.l.b16 %v582
        %v999 = vunpack.c.l.b16 %v583
        %v1000 = vunpack.c.l.b16 %v584
        %v1001 = vunpack.c.l.b16 %v585
        %v1002 = vunpack.c.l.b16 %v586
        %v1003 = vunpack.c.l.b16 %v587
        %v1004 = vunpack.c.l.b16 %v588
        %v1005 = vunpack.c.l.b16 %v589
        %v1006 = vunpack.c.l.b16 %v590
        %v1007 = vunpack.c.l.b16 %v591
        %v1008 = vunpack.c.l.b16 %v592
        %v1009 = vunpack.c.l.b16 %v593
        %v1010 = vunpack.c.l.b16 %v594
        %v1011 = vunpack.c.l.b16 %v595
        %v1012 = vunpack.c.l.b16 %v596
        %v1013 = vunpack.c.l.b16 %v597
        %v1014 = vpack.c.b16 %v999, %v998
        %v1015 = vpack.c.b16 %v1001, %v1000
        %v1016 = vpack.c.b16 %v1003, %v1002
        %v1017 = vpack.c.b16 %v1005, %v1004
        %v1018 = vpack.c.b16 %v1007, %v1006
        %v1019 = vpack.c.b16 %v1009, %v1008
        %v1020 = vpack.c.b16 %v1011, %v1010
        %v1021 = vpack.c.b16 %v1013, %v1012
        %v1030 = vmul.bf16 %v764, %v1014
        %v1031 = vmul.bf16 %v764, %v1015
        %v1032 = vmul.bf16 %v764, %v1016
        %v1033 = vmul.bf16 %v764, %v1017
        %v1034 = vmul.bf16 %v764, %v1018
        %v1035 = vmul.bf16 %v764, %v1019
        %v1036 = vmul.bf16 %v764, %v1020
        %v1037 = vmul.bf16 %v764, %v1021
        %v1038 = vmul.bf16 %v771, %v1014
        %v1039 = vmul.bf16 %v771, %v1015
        %v1040 = vmul.bf16 %v771, %v1016
        %v1041 = vmul.bf16 %v771, %v1017
        %v1042 = vmul.bf16 %v771, %v1018
        %v1043 = vmul.bf16 %v771, %v1019
        %v1044 = vmul.bf16 %v771, %v1020
        %v1045 = vmul.bf16 %v771, %v1021
        %v1046 = vmul.bf16 %v778, %v1014
        %v1047 = vmul.bf16 %v778, %v1015
        %v1048 = vmul.bf16 %v778, %v1016
        %v1049 = vmul.bf16 %v778, %v1017
        %v1050 = vmul.bf16 %v778, %v1018
        %v1051 = vmul.bf16 %v778, %v1019
        %v1052 = vmul.bf16 %v778, %v1020
        %v1053 = vmul.bf16 %v778, %v1021
        %v1054 = vmul.bf16 %v785, %v1014
        %v1055 = vmul.bf16 %v785, %v1015
        %v1056 = vmul.bf16 %v785, %v1016
        %v1057 = vmul.bf16 %v785, %v1017
        %v1058 = vmul.bf16 %v785, %v1018
        %v1059 = vmul.bf16 %v785, %v1019
        %v1060 = vmul.bf16 %v785, %v1020
        %v1061 = vmul.bf16 %v785, %v1021
        %v1062 = vmul.bf16 %v792, %v1014
        %v1063 = vmul.bf16 %v792, %v1015
        %v1064 = vmul.bf16 %v792, %v1016
        %v1065 = vmul.bf16 %v792, %v1017
        %v1066 = vmul.bf16 %v792, %v1018
        %v1067 = vmul.bf16 %v792, %v1019
        %v1068 = vmul.bf16 %v792, %v1020
        %v1069 = vmul.bf16 %v792, %v1021
        %v1070 = vmul.bf16 %v799, %v1014
        %v1071 = vmul.bf16 %v799, %v1015
        %v1072 = vmul.bf16 %v799, %v1016
        %v1073 = vmul.bf16 %v799, %v1017
        %v1074 = vmul.bf16 %v799, %v1018
        %v1075 = vmul.bf16 %v799, %v1019
        %v1076 = vmul.bf16 %v799, %v1020
        %v1077 = vmul.bf16 %v799, %v1021
        %v1078 = vmul.bf16 %v806, %v1014
        %v1079 = vmul.bf16 %v806, %v1015
        %v1080 = vmul.bf16 %v806, %v1016
        %v1081 = vmul.bf16 %v806, %v1017
        %v1082 = vmul.bf16 %v806, %v1018
        %v1083 = vmul.bf16 %v806, %v1019
        %v1084 = vmul.bf16 %v806, %v1020
        %v1085 = vmul.bf16 %v806, %v1021
        %v1086 = vmul.bf16 %v813, %v1014
        %v1087 = vmul.bf16 %v813, %v1015
        %v1088 = vmul.bf16 %v813, %v1016
        %v1089 = vmul.bf16 %v813, %v1017
        %v1090 = vmul.bf16 %v813, %v1018
        %v1091 = vmul.bf16 %v813, %v1019
        %v1092 = vmul.bf16 %v813, %v1020
        %v1093 = vmul.bf16 %v813, %v1021
        %v1094 = vmul.bf16 %v820, %v1014
        %v1095 = vmul.bf16 %v820, %v1015
        %v1096 = vmul.bf16 %v820, %v1016
        %v1097 = vmul.bf16 %v820, %v1017
        %v1098 = vmul.bf16 %v820, %v1018
        %v1099 = vmul.bf16 %v820, %v1019
        %v1100 = vmul.bf16 %v820, %v1020
        %v1101 = vmul.bf16 %v820, %v1021
        %v1102 = vmul.bf16 %v827, %v1014
        %v1103 = vmul.bf16 %v827, %v1015
        %v1104 = vmul.bf16 %v827, %v1016
        %v1105 = vmul.bf16 %v827, %v1017
        %v1106 = vmul.bf16 %v827, %v1018
        %v1107 = vmul.bf16 %v827, %v1019
        %v1108 = vmul.bf16 %v827, %v1020
        %v1109 = vmul.bf16 %v827, %v1021
        %v1110 = vmul.bf16 %v834, %v1014
        %v1111 = vmul.bf16 %v834, %v1015
        %v1112 = vmul.bf16 %v834, %v1016
        %v1113 = vmul.bf16 %v834, %v1017
        %v1114 = vmul.bf16 %v834, %v1018
        %v1115 = vmul.bf16 %v834, %v1019
        %v1116 = vmul.bf16 %v834, %v1020
        %v1117 = vmul.bf16 %v834, %v1021
        %v1118 = vmul.bf16 %v841, %v1014
        %v1119 = vmul.bf16 %v841, %v1015
        %v1120 = vmul.bf16 %v841, %v1016
        %v1121 = vmul.bf16 %v841, %v1017
        %v1122 = vmul.bf16 %v841, %v1018
        %v1123 = vmul.bf16 %v841, %v1019
        %v1124 = vmul.bf16 %v841, %v1020
        %v1125 = vmul.bf16 %v841, %v1021
        %v1126 = vmul.bf16 %v848, %v1014
        %v1127 = vmul.bf16 %v848, %v1015
        %v1128 = vmul.bf16 %v848, %v1016
        %v1129 = vmul.bf16 %v848, %v1017
        %v1130 = vmul.bf16 %v848, %v1018
        %v1131 = vmul.bf16 %v848, %v1019
        %v1132 = vmul.bf16 %v848, %v1020
        %v1133 = vmul.bf16 %v848, %v1021
        %v1134 = vmul.bf16 %v855, %v1014
        %v1135 = vmul.bf16 %v855, %v1015
        %v1136 = vmul.bf16 %v855, %v1016
        %v1137 = vmul.bf16 %v855, %v1017
        %v1138 = vmul.bf16 %v855, %v1018
        %v1139 = vmul.bf16 %v855, %v1019
        %v1140 = vmul.bf16 %v855, %v1020
        %v1141 = vmul.bf16 %v855, %v1021
        %v1142 = vmul.bf16 %v862, %v1014
        %v1143 = vmul.bf16 %v862, %v1015
        %v1144 = vmul.bf16 %v862, %v1016
        %v1145 = vmul.bf16 %v862, %v1017
        %v1146 = vmul.bf16 %v862, %v1018
        %v1147 = vmul.bf16 %v862, %v1019
        %v1148 = vmul.bf16 %v862, %v1020
        %v1149 = vmul.bf16 %v862, %v1021
        %v1150 = vmul.bf16 %v869, %v1014
        %v1151 = vmul.bf16 %v869, %v1015
        %v1152 = vmul.bf16 %v869, %v1016
        %v1153 = vmul.bf16 %v869, %v1017
        %v1154 = vmul.bf16 %v869, %v1018
        %v1155 = vmul.bf16 %v869, %v1019
        %v1156 = vmul.bf16 %v869, %v1020
        %v1157 = vmul.bf16 %v869, %v1021
        %v1158 = vmul.bf16 %v876, %v1014
        %v1159 = vmul.bf16 %v876, %v1015
        %v1160 = vmul.bf16 %v876, %v1016
        %v1161 = vmul.bf16 %v876, %v1017
        %v1162 = vmul.bf16 %v876, %v1018
        %v1163 = vmul.bf16 %v876, %v1019
        %v1164 = vmul.bf16 %v876, %v1020
        %v1165 = vmul.bf16 %v876, %v1021
        %v1166 = vmul.bf16 %v883, %v1014
        %v1167 = vmul.bf16 %v883, %v1015
        %v1168 = vmul.bf16 %v883, %v1016
        %v1169 = vmul.bf16 %v883, %v1017
        %v1170 = vmul.bf16 %v883, %v1018
        %v1171 = vmul.bf16 %v883, %v1019
        %v1172 = vmul.bf16 %v883, %v1020
        %v1173 = vmul.bf16 %v883, %v1021
        %v1174 = vmul.bf16 %v890, %v1014
        %v1175 = vmul.bf16 %v890, %v1015
        %v1176 = vmul.bf16 %v890, %v1016
        %v1177 = vmul.bf16 %v890, %v1017
        %v1178 = vmul.bf16 %v890, %v1018
        %v1179 = vmul.bf16 %v890, %v1019
        %v1180 = vmul.bf16 %v890, %v1020
        %v1181 = vmul.bf16 %v890, %v1021
        %v1182 = vmul.bf16 %v897, %v1014
        %v1183 = vmul.bf16 %v897, %v1015
        %v1184 = vmul.bf16 %v897, %v1016
        %v1185 = vmul.bf16 %v897, %v1017
        %v1186 = vmul.bf16 %v897, %v1018
        %v1187 = vmul.bf16 %v897, %v1019
        %v1188 = vmul.bf16 %v897, %v1020
        %v1189 = vmul.bf16 %v897, %v1021
        %v1190 = vmul.bf16 %v904, %v1014
        %v1191 = vmul.bf16 %v904, %v1015
        %v1192 = vmul.bf16 %v904, %v1016
        %v1193 = vmul.bf16 %v904, %v1017
        %v1194 = vmul.bf16 %v904, %v1018
        %v1195 = vmul.bf16 %v904, %v1019
        %v1196 = vmul.bf16 %v904, %v1020
        %v1197 = vmul.bf16 %v904, %v1021
        %v1198 = vmul.bf16 %v911, %v1014
        %v1199 = vmul.bf16 %v911, %v1015
        %v1200 = vmul.bf16 %v911, %v1016
        %v1201 = vmul.bf16 %v911, %v1017
        %v1202 = vmul.bf16 %v911, %v1018
        %v1203 = vmul.bf16 %v911, %v1019
        %v1204 = vmul.bf16 %v911, %v1020
        %v1205 = vmul.bf16 %v911, %v1021
        %v1206 = vmul.bf16 %v918, %v1014
        %v1207 = vmul.bf16 %v918, %v1015
        %v1208 = vmul.bf16 %v918, %v1016
        %v1209 = vmul.bf16 %v918, %v1017
        %v1210 = vmul.bf16 %v918, %v1018
        %v1211 = vmul.bf16 %v918, %v1019
        %v1212 = vmul.bf16 %v918, %v1020
        %v1213 = vmul.bf16 %v918, %v1021
        %v1214 = vmul.bf16 %v925, %v1014
        %v1215 = vmul.bf16 %v925, %v1015
        %v1216 = vmul.bf16 %v925, %v1016
        %v1217 = vmul.bf16 %v925, %v1017
        %v1218 = vmul.bf16 %v925, %v1018
        %v1219 = vmul.bf16 %v925, %v1019
        %v1220 = vmul.bf16 %v925, %v1020
        %v1221 = vmul.bf16 %v925, %v1021
        %v1222 = vmul.bf16 %v932, %v1014
        %v1223 = vmul.bf16 %v932, %v1015
        %v1224 = vmul.bf16 %v932, %v1016
        %v1225 = vmul.bf16 %v932, %v1017
        %v1226 = vmul.bf16 %v932, %v1018
        %v1227 = vmul.bf16 %v932, %v1019
        %v1228 = vmul.bf16 %v932, %v1020
        %v1229 = vmul.bf16 %v932, %v1021
        %v1230 = vmul.bf16 %v939, %v1014
        %v1231 = vmul.bf16 %v939, %v1015
        %v1232 = vmul.bf16 %v939, %v1016
        %v1233 = vmul.bf16 %v939, %v1017
        %v1234 = vmul.bf16 %v939, %v1018
        %v1235 = vmul.bf16 %v939, %v1019
        %v1236 = vmul.bf16 %v939, %v1020
        %v1237 = vmul.bf16 %v939, %v1021
        %v1238 = vmul.bf16 %v946, %v1014
        %v1239 = vmul.bf16 %v946, %v1015
        %v1240 = vmul.bf16 %v946, %v1016
        %v1241 = vmul.bf16 %v946, %v1017
        %v1242 = vmul.bf16 %v946, %v1018
        %v1243 = vmul.bf16 %v946, %v1019
        %v1244 = vmul.bf16 %v946, %v1020
        %v1245 = vmul.bf16 %v946, %v1021
        %v1246 = vmul.bf16 %v953, %v1014
        %v1247 = vmul.bf16 %v953, %v1015
        %v1248 = vmul.bf16 %v953, %v1016
        %v1249 = vmul.bf16 %v953, %v1017
        %v1250 = vmul.bf16 %v953, %v1018
        %v1251 = vmul.bf16 %v953, %v1019
        %v1252 = vmul.bf16 %v953, %v1020
        %v1253 = vmul.bf16 %v953, %v1021
        %v1254 = vmul.bf16 %v960, %v1014
        %v1255 = vmul.bf16 %v960, %v1015
        %v1256 = vmul.bf16 %v960, %v1016
        %v1257 = vmul.bf16 %v960, %v1017
        %v1258 = vmul.bf16 %v960, %v1018
        %v1259 = vmul.bf16 %v960, %v1019
        %v1260 = vmul.bf16 %v960, %v1020
        %v1261 = vmul.bf16 %v960, %v1021
        %v1262 = vmul.bf16 %v967, %v1014
        %v1263 = vmul.bf16 %v967, %v1015
        %v1264 = vmul.bf16 %v967, %v1016
        %v1265 = vmul.bf16 %v967, %v1017
        %v1266 = vmul.bf16 %v967, %v1018
        %v1267 = vmul.bf16 %v967, %v1019
        %v1268 = vmul.bf16 %v967, %v1020
        %v1269 = vmul.bf16 %v967, %v1021
        %v1270 = vmul.bf16 %v974, %v1014
        %v1271 = vmul.bf16 %v974, %v1015
        %v1272 = vmul.bf16 %v974, %v1016
        %v1273 = vmul.bf16 %v974, %v1017
        %v1274 = vmul.bf16 %v974, %v1018
        %v1275 = vmul.bf16 %v974, %v1019
        %v1276 = vmul.bf16 %v974, %v1020
        %v1277 = vmul.bf16 %v974, %v1021
        %v1278 = vmul.bf16 %v981, %v1014
        %v1279 = vmul.bf16 %v981, %v1015
        %v1280 = vmul.bf16 %v981, %v1016
        %v1281 = vmul.bf16 %v981, %v1017
        %v1282 = vmul.bf16 %v981, %v1018
        %v1283 = vmul.bf16 %v981, %v1019
        %v1284 = vmul.bf16 %v981, %v1020
        %v1285 = vmul.bf16 %v981, %v1021
        %v1286 = vld [vmem:[#allocation2] sm:$0xff]
        %v1287 = vld [vmem:[#allocation2 + $0x8] sm:$0xff]
        %v1288 = vld [vmem:[#allocation2 + $0x10] sm:$0xff]
        %v1289 = vld [vmem:[#allocation2 + $0x18] sm:$0xff]
        %v1290 = vld [vmem:[#allocation2 + $0x20] sm:$0xff]
        %v1291 = vld [vmem:[#allocation2 + $0x28] sm:$0xff]
        %v1292 = vld [vmem:[#allocation2 + $0x30] sm:$0xff]
        %v1293 = vld [vmem:[#allocation2 + $0x38] sm:$0xff]
        %v1294 = vld [vmem:[#allocation2 + $0x40] sm:$0xff]
        %v1295 = vld [vmem:[#allocation2 + $0x48] sm:$0xff]
        %v1296 = vld [vmem:[#allocation2 + $0x50] sm:$0xff]
        %v1297 = vld [vmem:[#allocation2 + $0x58] sm:$0xff]
        %v1298 = vld [vmem:[#allocation2 + $0x60] sm:$0xff]
        %v1299 = vld [vmem:[#allocation2 + $0x68] sm:$0xff]
        %v1300 = vld [vmem:[#allocation2 + $0x70] sm:$0xff]
        %v1301 = vld [vmem:[#allocation2 + $0x78] sm:$0xff]
        %v1302 = vld [vmem:[%s391] sm:$0xff]
        %v1303 = vld [vmem:[%s391 + $0x8] sm:$0xff]
        %v1304 = vld [vmem:[%s391 + $0x10] sm:$0xff]
        %v1305 = vld [vmem:[%s391 + $0x18] sm:$0xff]
        %v1306 = vld [vmem:[%s391 + $0x20] sm:$0xff]
        %v1307 = vld [vmem:[%s391 + $0x28] sm:$0xff]
        %v1308 = vld [vmem:[%s391 + $0x30] sm:$0xff]
        %v1309 = vld [vmem:[%s391 + $0x38] sm:$0xff]
        %v1310 = vld [vmem:[%s391 + $0x40] sm:$0xff]
        %v1311 = vld [vmem:[%s391 + $0x48] sm:$0xff]
        %v1312 = vld [vmem:[%s391 + $0x50] sm:$0xff]
        %v1313 = vld [vmem:[%s391 + $0x58] sm:$0xff]
        %v1314 = vld [vmem:[%s391 + $0x60] sm:$0xff]
        %v1315 = vld [vmem:[%s391 + $0x68] sm:$0xff]
        %v1316 = vld [vmem:[%s391 + $0x70] sm:$0xff]
        %v1317 = vld [vmem:[%s391 + $0x78] sm:$0xff]
        %v1318 = vld [vmem:[%s391 + $0x80] sm:$0xff]
        %v1319 = vld [vmem:[%s391 + $0x88] sm:$0xff]
        %v1320 = vld [vmem:[%s391 + $0x90] sm:$0xff]
        %v1321 = vld [vmem:[%s391 + $0x98] sm:$0xff]
        %v1322 = vld [vmem:[%s391 + $0xa0] sm:$0xff]
        %v1323 = vld [vmem:[%s391 + $0xa8] sm:$0xff]
        %v1324 = vld [vmem:[%s391 + $0xb0] sm:$0xff]
        %v1325 = vld [vmem:[%s391 + $0xb8] sm:$0xff]
        %v1326 = vld [vmem:[%s391 + $0xc0] sm:$0xff]
        %v1327 = vld [vmem:[%s391 + $0xc8] sm:$0xff]
        %v1328 = vld [vmem:[%s391 + $0xd0] sm:$0xff]
        %v1329 = vld [vmem:[%s391 + $0xd8] sm:$0xff]
        %v1330 = vld [vmem:[%s391 + $0xe0] sm:$0xff]
        %v1331 = vld [vmem:[%s391 + $0xe8] sm:$0xff]
        %v1332 = vld [vmem:[%s391 + $0xf0] sm:$0xff]
        %v1333 = vld [vmem:[%s391 + $0xf8] sm:$0xff]
        %v1334 = vld [vmem:[%s391 + $0x100] sm:$0xff]
        %v1335 = vld [vmem:[%s391 + $0x108] sm:$0xff]
        %v1336 = vld [vmem:[%s391 + $0x110] sm:$0xff]
        %v1337 = vld [vmem:[%s391 + $0x118] sm:$0xff]
        %v1338 = vld [vmem:[%s391 + $0x120] sm:$0xff]
        %v1339 = vld [vmem:[%s391 + $0x128] sm:$0xff]
        %v1340 = vld [vmem:[%s391 + $0x130] sm:$0xff]
        %v1341 = vld [vmem:[%s391 + $0x138] sm:$0xff]
        %v1342 = vld [vmem:[%s391 + $0x140] sm:$0xff]
        %v1343 = vld [vmem:[%s391 + $0x148] sm:$0xff]
        %v1344 = vld [vmem:[%s391 + $0x150] sm:$0xff]
        %v1345 = vld [vmem:[%s391 + $0x158] sm:$0xff]
        %v1346 = vld [vmem:[%s391 + $0x160] sm:$0xff]
        %v1347 = vld [vmem:[%s391 + $0x168] sm:$0xff]
        %v1348 = vld [vmem:[%s391 + $0x170] sm:$0xff]
        %v1349 = vld [vmem:[%s391 + $0x178] sm:$0xff]
        %v1350 = vld [vmem:[%s391 + $0x180] sm:$0xff]
        %v1351 = vld [vmem:[%s391 + $0x188] sm:$0xff]
        %v1352 = vld [vmem:[%s391 + $0x190] sm:$0xff]
        %v1353 = vld [vmem:[%s391 + $0x198] sm:$0xff]
        %v1354 = vld [vmem:[%s391 + $0x1a0] sm:$0xff]
        %v1355 = vld [vmem:[%s391 + $0x1a8] sm:$0xff]
        %v1356 = vld [vmem:[%s391 + $0x1b0] sm:$0xff]
        %v1357 = vld [vmem:[%s391 + $0x1b8] sm:$0xff]
        %v1358 = vld [vmem:[%s391 + $0x1c0] sm:$0xff]
        %v1359 = vld [vmem:[%s391 + $0x1c8] sm:$0xff]
        %v1360 = vld [vmem:[%s391 + $0x1d0] sm:$0xff]
        %v1361 = vld [vmem:[%s391 + $0x1d8] sm:$0xff]
        %v1362 = vld [vmem:[%s391 + $0x1e0] sm:$0xff]
        %v1363 = vld [vmem:[%s391 + $0x1e8] sm:$0xff]
        %v1364 = vld [vmem:[%s391 + $0x1f0] sm:$0xff]
        %v1365 = vld [vmem:[%s391 + $0x1f8] sm:$0xff]
        %v1366 = vld [vmem:[%s391 + $0x200] sm:$0xff]
        %v1367 = vld [vmem:[%s391 + $0x208] sm:$0xff]
        %v1368 = vld [vmem:[%s391 + $0x210] sm:$0xff]
        %v1369 = vld [vmem:[%s391 + $0x218] sm:$0xff]
        %v1370 = vld [vmem:[%s391 + $0x220] sm:$0xff]
        %v1371 = vld [vmem:[%s391 + $0x228] sm:$0xff]
        %v1372 = vld [vmem:[%s391 + $0x230] sm:$0xff]
        %v1373 = vld [vmem:[%s391 + $0x238] sm:$0xff]
        %v1374 = vld [vmem:[%s391 + $0x240] sm:$0xff]
        %v1375 = vld [vmem:[%s391 + $0x248] sm:$0xff]
        %v1376 = vld [vmem:[%s391 + $0x250] sm:$0xff]
        %v1377 = vld [vmem:[%s391 + $0x258] sm:$0xff]
        %v1378 = vld [vmem:[%s391 + $0x260] sm:$0xff]
        %v1379 = vld [vmem:[%s391 + $0x268] sm:$0xff]
        %v1380 = vld [vmem:[%s391 + $0x270] sm:$0xff]
        %v1381 = vld [vmem:[%s391 + $0x278] sm:$0xff]
        %v1382 = vld [vmem:[%s391 + $0x280] sm:$0xff]
        %v1383 = vld [vmem:[%s391 + $0x288] sm:$0xff]
        %v1384 = vld [vmem:[%s391 + $0x290] sm:$0xff]
        %v1385 = vld [vmem:[%s391 + $0x298] sm:$0xff]
        %v1386 = vld [vmem:[%s391 + $0x2a0] sm:$0xff]
        %v1387 = vld [vmem:[%s391 + $0x2a8] sm:$0xff]
        %v1388 = vld [vmem:[%s391 + $0x2b0] sm:$0xff]
        %v1389 = vld [vmem:[%s391 + $0x2b8] sm:$0xff]
        %v1390 = vld [vmem:[%s391 + $0x2c0] sm:$0xff]
        %v1391 = vld [vmem:[%s391 + $0x2c8] sm:$0xff]
        %v1392 = vld [vmem:[%s391 + $0x2d0] sm:$0xff]
        %v1393 = vld [vmem:[%s391 + $0x2d8] sm:$0xff]
        %v1394 = vld [vmem:[%s391 + $0x2e0] sm:$0xff]
        %v1395 = vld [vmem:[%s391 + $0x2e8] sm:$0xff]
        %v1396 = vld [vmem:[%s391 + $0x2f0] sm:$0xff]
        %v1397 = vld [vmem:[%s391 + $0x2f8] sm:$0xff]
        %v1398 = vld [vmem:[%s391 + $0x300] sm:$0xff]
        %v1399 = vld [vmem:[%s391 + $0x308] sm:$0xff]
        %v1400 = vld [vmem:[%s391 + $0x310] sm:$0xff]
        %v1401 = vld [vmem:[%s391 + $0x318] sm:$0xff]
        %v1402 = vld [vmem:[%s391 + $0x320] sm:$0xff]
        %v1403 = vld [vmem:[%s391 + $0x328] sm:$0xff]
        %v1404 = vld [vmem:[%s391 + $0x330] sm:$0xff]
        %v1405 = vld [vmem:[%s391 + $0x338] sm:$0xff]
        %v1406 = vld [vmem:[%s391 + $0x340] sm:$0xff]
        %v1407 = vld [vmem:[%s391 + $0x348] sm:$0xff]
        %v1408 = vld [vmem:[%s391 + $0x350] sm:$0xff]
        %v1409 = vld [vmem:[%s391 + $0x358] sm:$0xff]
        %v1410 = vld [vmem:[%s391 + $0x360] sm:$0xff]
        %v1411 = vld [vmem:[%s391 + $0x368] sm:$0xff]
        %v1412 = vld [vmem:[%s391 + $0x370] sm:$0xff]
        %v1413 = vld [vmem:[%s391 + $0x378] sm:$0xff]
        %v1414 = vld [vmem:[%s391 + $0x380] sm:$0xff]
        %v1415 = vld [vmem:[%s391 + $0x388] sm:$0xff]
        %v1416 = vld [vmem:[%s391 + $0x390] sm:$0xff]
        %v1417 = vld [vmem:[%s391 + $0x398] sm:$0xff]
        %v1418 = vld [vmem:[%s391 + $0x3a0] sm:$0xff]
        %v1419 = vld [vmem:[%s391 + $0x3a8] sm:$0xff]
        %v1420 = vld [vmem:[%s391 + $0x3b0] sm:$0xff]
        %v1421 = vld [vmem:[%s391 + $0x3b8] sm:$0xff]
        %v1422 = vld [vmem:[%s391 + $0x3c0] sm:$0xff]
        %v1423 = vld [vmem:[%s391 + $0x3c8] sm:$0xff]
        %v1424 = vld [vmem:[%s391 + $0x3d0] sm:$0xff]
        %v1425 = vld [vmem:[%s391 + $0x3d8] sm:$0xff]
        %v1426 = vld [vmem:[%s391 + $0x3e0] sm:$0xff]
        %v1427 = vld [vmem:[%s391 + $0x3e8] sm:$0xff]
        %v1428 = vld [vmem:[%s391 + $0x3f0] sm:$0xff]
        %v1429 = vld [vmem:[%s391 + $0x3f8] sm:$0xff]
        %v1430 = vld [vmem:[%s391 + $0x400] sm:$0xff]
        %v1431 = vld [vmem:[%s391 + $0x408] sm:$0xff]
        %v1432 = vld [vmem:[%s391 + $0x410] sm:$0xff]
        %v1433 = vld [vmem:[%s391 + $0x418] sm:$0xff]
        %v1434 = vld [vmem:[%s391 + $0x420] sm:$0xff]
        %v1435 = vld [vmem:[%s391 + $0x428] sm:$0xff]
        %v1436 = vld [vmem:[%s391 + $0x430] sm:$0xff]
        %v1437 = vld [vmem:[%s391 + $0x438] sm:$0xff]
        %v1438 = vld [vmem:[%s391 + $0x440] sm:$0xff]
        %v1439 = vld [vmem:[%s391 + $0x448] sm:$0xff]
        %v1440 = vld [vmem:[%s391 + $0x450] sm:$0xff]
        %v1441 = vld [vmem:[%s391 + $0x458] sm:$0xff]
        %v1442 = vld [vmem:[%s391 + $0x460] sm:$0xff]
        %v1443 = vld [vmem:[%s391 + $0x468] sm:$0xff]
        %v1444 = vld [vmem:[%s391 + $0x470] sm:$0xff]
        %v1445 = vld [vmem:[%s391 + $0x478] sm:$0xff]
        %v1446 = vld [vmem:[%s391 + $0x480] sm:$0xff]
        %v1447 = vld [vmem:[%s391 + $0x488] sm:$0xff]
        %v1448 = vld [vmem:[%s391 + $0x490] sm:$0xff]
        %v1449 = vld [vmem:[%s391 + $0x498] sm:$0xff]
        %v1450 = vld [vmem:[%s391 + $0x4a0] sm:$0xff]
        %v1451 = vld [vmem:[%s391 + $0x4a8] sm:$0xff]
        %v1452 = vld [vmem:[%s391 + $0x4b0] sm:$0xff]
        %v1453 = vld [vmem:[%s391 + $0x4b8] sm:$0xff]
        %v1454 = vld [vmem:[%s391 + $0x4c0] sm:$0xff]
        %v1455 = vld [vmem:[%s391 + $0x4c8] sm:$0xff]
        %v1456 = vld [vmem:[%s391 + $0x4d0] sm:$0xff]
        %v1457 = vld [vmem:[%s391 + $0x4d8] sm:$0xff]
        %v1458 = vld [vmem:[%s391 + $0x4e0] sm:$0xff]
        %v1459 = vld [vmem:[%s391 + $0x4e8] sm:$0xff]
        %v1460 = vld [vmem:[%s391 + $0x4f0] sm:$0xff]
        %v1461 = vld [vmem:[%s391 + $0x4f8] sm:$0xff]
        %v1462 = vld [vmem:[%s391 + $0x500] sm:$0xff]
        %v1463 = vld [vmem:[%s391 + $0x508] sm:$0xff]
        %v1464 = vld [vmem:[%s391 + $0x510] sm:$0xff]
        %v1465 = vld [vmem:[%s391 + $0x518] sm:$0xff]
        %v1466 = vld [vmem:[%s391 + $0x520] sm:$0xff]
        %v1467 = vld [vmem:[%s391 + $0x528] sm:$0xff]
        %v1468 = vld [vmem:[%s391 + $0x530] sm:$0xff]
        %v1469 = vld [vmem:[%s391 + $0x538] sm:$0xff]
        %v1470 = vld [vmem:[%s391 + $0x540] sm:$0xff]
        %v1471 = vld [vmem:[%s391 + $0x548] sm:$0xff]
        %v1472 = vld [vmem:[%s391 + $0x550] sm:$0xff]
        %v1473 = vld [vmem:[%s391 + $0x558] sm:$0xff]
        %v1474 = vld [vmem:[%s391 + $0x560] sm:$0xff]
        %v1475 = vld [vmem:[%s391 + $0x568] sm:$0xff]
        %v1476 = vld [vmem:[%s391 + $0x570] sm:$0xff]
        %v1477 = vld [vmem:[%s391 + $0x578] sm:$0xff]
        %v1478 = vld [vmem:[%s391 + $0x580] sm:$0xff]
        %v1479 = vld [vmem:[%s391 + $0x588] sm:$0xff]
        %v1480 = vld [vmem:[%s391 + $0x590] sm:$0xff]
        %v1481 = vld [vmem:[%s391 + $0x598] sm:$0xff]
        %v1482 = vld [vmem:[%s391 + $0x5a0] sm:$0xff]
        %v1483 = vld [vmem:[%s391 + $0x5a8] sm:$0xff]
        %v1484 = vld [vmem:[%s391 + $0x5b0] sm:$0xff]
        %v1485 = vld [vmem:[%s391 + $0x5b8] sm:$0xff]
        %v1486 = vld [vmem:[%s391 + $0x5c0] sm:$0xff]
        %v1487 = vld [vmem:[%s391 + $0x5c8] sm:$0xff]
        %v1488 = vld [vmem:[%s391 + $0x5d0] sm:$0xff]
        %v1489 = vld [vmem:[%s391 + $0x5d8] sm:$0xff]
        %v1490 = vld [vmem:[%s391 + $0x5e0] sm:$0xff]
        %v1491 = vld [vmem:[%s391 + $0x5e8] sm:$0xff]
        %v1492 = vld [vmem:[%s391 + $0x5f0] sm:$0xff]
        %v1493 = vld [vmem:[%s391 + $0x5f8] sm:$0xff]
        %v1494 = vld [vmem:[%s391 + $0x600] sm:$0xff]
        %v1495 = vld [vmem:[%s391 + $0x608] sm:$0xff]
        %v1496 = vld [vmem:[%s391 + $0x610] sm:$0xff]
        %v1497 = vld [vmem:[%s391 + $0x618] sm:$0xff]
        %v1498 = vld [vmem:[%s391 + $0x620] sm:$0xff]
        %v1499 = vld [vmem:[%s391 + $0x628] sm:$0xff]
        %v1500 = vld [vmem:[%s391 + $0x630] sm:$0xff]
        %v1501 = vld [vmem:[%s391 + $0x638] sm:$0xff]
        %v1502 = vld [vmem:[%s391 + $0x640] sm:$0xff]
        %v1503 = vld [vmem:[%s391 + $0x648] sm:$0xff]
        %v1504 = vld [vmem:[%s391 + $0x650] sm:$0xff]
        %v1505 = vld [vmem:[%s391 + $0x658] sm:$0xff]
        %v1506 = vld [vmem:[%s391 + $0x660] sm:$0xff]
        %v1507 = vld [vmem:[%s391 + $0x668] sm:$0xff]
        %v1508 = vld [vmem:[%s391 + $0x670] sm:$0xff]
        %v1509 = vld [vmem:[%s391 + $0x678] sm:$0xff]
        %v1510 = vld [vmem:[%s391 + $0x680] sm:$0xff]
        %v1511 = vld [vmem:[%s391 + $0x688] sm:$0xff]
        %v1512 = vld [vmem:[%s391 + $0x690] sm:$0xff]
        %v1513 = vld [vmem:[%s391 + $0x698] sm:$0xff]
        %v1514 = vld [vmem:[%s391 + $0x6a0] sm:$0xff]
        %v1515 = vld [vmem:[%s391 + $0x6a8] sm:$0xff]
        %v1516 = vld [vmem:[%s391 + $0x6b0] sm:$0xff]
        %v1517 = vld [vmem:[%s391 + $0x6b8] sm:$0xff]
        %v1518 = vld [vmem:[%s391 + $0x6c0] sm:$0xff]
        %v1519 = vld [vmem:[%s391 + $0x6c8] sm:$0xff]
        %v1520 = vld [vmem:[%s391 + $0x6d0] sm:$0xff]
        %v1521 = vld [vmem:[%s391 + $0x6d8] sm:$0xff]
        %v1522 = vld [vmem:[%s391 + $0x6e0] sm:$0xff]
        %v1523 = vld [vmem:[%s391 + $0x6e8] sm:$0xff]
        %v1524 = vld [vmem:[%s391 + $0x6f0] sm:$0xff]
        %v1525 = vld [vmem:[%s391 + $0x6f8] sm:$0xff]
        %v1526 = vld [vmem:[%s391 + $0x700] sm:$0xff]
        %v1527 = vld [vmem:[%s391 + $0x708] sm:$0xff]
        %v1528 = vld [vmem:[%s391 + $0x710] sm:$0xff]
        %v1529 = vld [vmem:[%s391 + $0x718] sm:$0xff]
        %v1530 = vld [vmem:[%s391 + $0x720] sm:$0xff]
        %v1531 = vld [vmem:[%s391 + $0x728] sm:$0xff]
        %v1532 = vld [vmem:[%s391 + $0x730] sm:$0xff]
        %v1533 = vld [vmem:[%s391 + $0x738] sm:$0xff]
        %v1534 = vld [vmem:[%s391 + $0x740] sm:$0xff]
        %v1535 = vld [vmem:[%s391 + $0x748] sm:$0xff]
        %v1536 = vld [vmem:[%s391 + $0x750] sm:$0xff]
        %v1537 = vld [vmem:[%s391 + $0x758] sm:$0xff]
        %v1538 = vld [vmem:[%s391 + $0x760] sm:$0xff]
        %v1539 = vld [vmem:[%s391 + $0x768] sm:$0xff]
        %v1540 = vld [vmem:[%s391 + $0x770] sm:$0xff]
        %v1541 = vld [vmem:[%s391 + $0x778] sm:$0xff]
        %v1542 = vld [vmem:[%s391 + $0x780] sm:$0xff]
        %v1543 = vld [vmem:[%s391 + $0x788] sm:$0xff]
        %v1544 = vld [vmem:[%s391 + $0x790] sm:$0xff]
        %v1545 = vld [vmem:[%s391 + $0x798] sm:$0xff]
        %v1546 = vld [vmem:[%s391 + $0x7a0] sm:$0xff]
        %v1547 = vld [vmem:[%s391 + $0x7a8] sm:$0xff]
        %v1548 = vld [vmem:[%s391 + $0x7b0] sm:$0xff]
        %v1549 = vld [vmem:[%s391 + $0x7b8] sm:$0xff]
        %v1550 = vld [vmem:[%s391 + $0x7c0] sm:$0xff]
        %v1551 = vld [vmem:[%s391 + $0x7c8] sm:$0xff]
        %v1552 = vld [vmem:[%s391 + $0x7d0] sm:$0xff]
        %v1553 = vld [vmem:[%s391 + $0x7d8] sm:$0xff]
        %v1554 = vld [vmem:[%s391 + $0x7e0] sm:$0xff]
        %v1555 = vld [vmem:[%s391 + $0x7e8] sm:$0xff]
        %v1556 = vld [vmem:[%s391 + $0x7f0] sm:$0xff]
        %v1557 = vld [vmem:[%s391 + $0x7f8] sm:$0xff]
        %v1814 = vunpack.c.l.b16 %v1302
        %v1815 = vunpack.c.h.b16 %v1302
        %v1816 = vunpack.c.l.b16 %v1303
        %v1817 = vunpack.c.h.b16 %v1303
        %v1818 = vunpack.c.l.b16 %v1304
        %v1819 = vunpack.c.h.b16 %v1304
        %v1820 = vunpack.c.l.b16 %v1305
        %v1821 = vunpack.c.h.b16 %v1305
        %v1822 = vunpack.c.l.b16 %v1306
        %v1823 = vunpack.c.h.b16 %v1306
        %v1824 = vunpack.c.l.b16 %v1307
        %v1825 = vunpack.c.h.b16 %v1307
        %v1826 = vunpack.c.l.b16 %v1308
        %v1827 = vunpack.c.h.b16 %v1308
        %v1828 = vunpack.c.l.b16 %v1309
        %v1829 = vunpack.c.h.b16 %v1309
        %v1830 = vunpack.c.l.b16 %v1310
        %v1831 = vunpack.c.h.b16 %v1310
        %v1832 = vunpack.c.l.b16 %v1311
        %v1833 = vunpack.c.h.b16 %v1311
        %v1834 = vunpack.c.l.b16 %v1312
        %v1835 = vunpack.c.h.b16 %v1312
        %v1836 = vunpack.c.l.b16 %v1313
        %v1837 = vunpack.c.h.b16 %v1313
        %v1838 = vunpack.c.l.b16 %v1314
        %v1839 = vunpack.c.h.b16 %v1314
        %v1840 = vunpack.c.l.b16 %v1315
        %v1841 = vunpack.c.h.b16 %v1315
        %v1842 = vunpack.c.l.b16 %v1316
        %v1843 = vunpack.c.h.b16 %v1316
        %v1844 = vunpack.c.l.b16 %v1317
        %v1845 = vunpack.c.h.b16 %v1317
        %v1846 = vunpack.c.l.b16 %v1318
        %v1847 = vunpack.c.h.b16 %v1318
        %v1848 = vunpack.c.l.b16 %v1319
        %v1849 = vunpack.c.h.b16 %v1319
        %v1850 = vunpack.c.l.b16 %v1320
        %v1851 = vunpack.c.h.b16 %v1320
        %v1852 = vunpack.c.l.b16 %v1321
        %v1853 = vunpack.c.h.b16 %v1321
        %v1854 = vunpack.c.l.b16 %v1322
        %v1855 = vunpack.c.h.b16 %v1322
        %v1856 = vunpack.c.l.b16 %v1323
        %v1857 = vunpack.c.h.b16 %v1323
        %v1858 = vunpack.c.l.b16 %v1324
        %v1859 = vunpack.c.h.b16 %v1324
        %v1860 = vunpack.c.l.b16 %v1325
        %v1861 = vunpack.c.h.b16 %v1325
        %v1862 = vunpack.c.l.b16 %v1326
        %v1863 = vunpack.c.h.b16 %v1326
        %v1864 = vunpack.c.l.b16 %v1327
        %v1865 = vunpack.c.h.b16 %v1327
        %v1866 = vunpack.c.l.b16 %v1328
        %v1867 = vunpack.c.h.b16 %v1328
        %v1868 = vunpack.c.l.b16 %v1329
        %v1869 = vunpack.c.h.b16 %v1329
        %v1870 = vunpack.c.l.b16 %v1330
        %v1871 = vunpack.c.h.b16 %v1330
        %v1872 = vunpack.c.l.b16 %v1331
        %v1873 = vunpack.c.h.b16 %v1331
        %v1874 = vunpack.c.l.b16 %v1332
        %v1875 = vunpack.c.h.b16 %v1332
        %v1876 = vunpack.c.l.b16 %v1333
        %v1877 = vunpack.c.h.b16 %v1333
        %v1878 = vunpack.c.l.b16 %v1334
        %v1879 = vunpack.c.h.b16 %v1334
        %v1880 = vunpack.c.l.b16 %v1335
        %v1881 = vunpack.c.h.b16 %v1335
        %v1882 = vunpack.c.l.b16 %v1336
        %v1883 = vunpack.c.h.b16 %v1336
        %v1884 = vunpack.c.l.b16 %v1337
        %v1885 = vunpack.c.h.b16 %v1337
        %v1886 = vunpack.c.l.b16 %v1338
        %v1887 = vunpack.c.h.b16 %v1338
        %v1888 = vunpack.c.l.b16 %v1339
        %v1889 = vunpack.c.h.b16 %v1339
        %v1890 = vunpack.c.l.b16 %v1340
        %v1891 = vunpack.c.h.b16 %v1340
        %v1892 = vunpack.c.l.b16 %v1341
        %v1893 = vunpack.c.h.b16 %v1341
        %v1894 = vunpack.c.l.b16 %v1342
        %v1895 = vunpack.c.h.b16 %v1342
        %v1896 = vunpack.c.l.b16 %v1343
        %v1897 = vunpack.c.h.b16 %v1343
        %v1898 = vunpack.c.l.b16 %v1344
        %v1899 = vunpack.c.h.b16 %v1344
        %v1900 = vunpack.c.l.b16 %v1345
        %v1901 = vunpack.c.h.b16 %v1345
        %v1902 = vunpack.c.l.b16 %v1346
        %v1903 = vunpack.c.h.b16 %v1346
        %v1904 = vunpack.c.l.b16 %v1347
        %v1905 = vunpack.c.h.b16 %v1347
        %v1906 = vunpack.c.l.b16 %v1348
        %v1907 = vunpack.c.h.b16 %v1348
        %v1908 = vunpack.c.l.b16 %v1349
        %v1909 = vunpack.c.h.b16 %v1349
        %v1910 = vunpack.c.l.b16 %v1350
        %v1911 = vunpack.c.h.b16 %v1350
        %v1912 = vunpack.c.l.b16 %v1351
        %v1913 = vunpack.c.h.b16 %v1351
        %v1914 = vunpack.c.l.b16 %v1352
        %v1915 = vunpack.c.h.b16 %v1352
        %v1916 = vunpack.c.l.b16 %v1353
        %v1917 = vunpack.c.h.b16 %v1353
        %v1918 = vunpack.c.l.b16 %v1354
        %v1919 = vunpack.c.h.b16 %v1354
        %v1920 = vunpack.c.l.b16 %v1355
        %v1921 = vunpack.c.h.b16 %v1355
        %v1922 = vunpack.c.l.b16 %v1356
        %v1923 = vunpack.c.h.b16 %v1356
        %v1924 = vunpack.c.l.b16 %v1357
        %v1925 = vunpack.c.h.b16 %v1357
        %v1926 = vunpack.c.l.b16 %v1358
        %v1927 = vunpack.c.h.b16 %v1358
        %v1928 = vunpack.c.l.b16 %v1359
        %v1929 = vunpack.c.h.b16 %v1359
        %v1930 = vunpack.c.l.b16 %v1360
        %v1931 = vunpack.c.h.b16 %v1360
        %v1932 = vunpack.c.l.b16 %v1361
        %v1933 = vunpack.c.h.b16 %v1361
        %v1934 = vunpack.c.l.b16 %v1362
        %v1935 = vunpack.c.h.b16 %v1362
        %v1936 = vunpack.c.l.b16 %v1363
        %v1937 = vunpack.c.h.b16 %v1363
        %v1938 = vunpack.c.l.b16 %v1364
        %v1939 = vunpack.c.h.b16 %v1364
        %v1940 = vunpack.c.l.b16 %v1365
        %v1941 = vunpack.c.h.b16 %v1365
        %v1942 = vunpack.c.l.b16 %v1366
        %v1943 = vunpack.c.h.b16 %v1366
        %v1944 = vunpack.c.l.b16 %v1367
        %v1945 = vunpack.c.h.b16 %v1367
        %v1946 = vunpack.c.l.b16 %v1368
        %v1947 = vunpack.c.h.b16 %v1368
        %v1948 = vunpack.c.l.b16 %v1369
        %v1949 = vunpack.c.h.b16 %v1369
        %v1950 = vunpack.c.l.b16 %v1370
        %v1951 = vunpack.c.h.b16 %v1370
        %v1952 = vunpack.c.l.b16 %v1371
        %v1953 = vunpack.c.h.b16 %v1371
        %v1954 = vunpack.c.l.b16 %v1372
        %v1955 = vunpack.c.h.b16 %v1372
        %v1956 = vunpack.c.l.b16 %v1373
        %v1957 = vunpack.c.h.b16 %v1373
        %v1958 = vunpack.c.l.b16 %v1374
        %v1959 = vunpack.c.h.b16 %v1374
        %v1960 = vunpack.c.l.b16 %v1375
        %v1961 = vunpack.c.h.b16 %v1375
        %v1962 = vunpack.c.l.b16 %v1376
        %v1963 = vunpack.c.h.b16 %v1376
        %v1964 = vunpack.c.l.b16 %v1377
        %v1965 = vunpack.c.h.b16 %v1377
        %v1966 = vunpack.c.l.b16 %v1378
        %v1967 = vunpack.c.h.b16 %v1378
        %v1968 = vunpack.c.l.b16 %v1379
        %v1969 = vunpack.c.h.b16 %v1379
        %v1970 = vunpack.c.l.b16 %v1380
        %v1971 = vunpack.c.h.b16 %v1380
        %v1972 = vunpack.c.l.b16 %v1381
        %v1973 = vunpack.c.h.b16 %v1381
        %v1974 = vunpack.c.l.b16 %v1382
        %v1975 = vunpack.c.h.b16 %v1382
        %v1976 = vunpack.c.l.b16 %v1383
        %v1977 = vunpack.c.h.b16 %v1383
        %v1978 = vunpack.c.l.b16 %v1384
        %v1979 = vunpack.c.h.b16 %v1384
        %v1980 = vunpack.c.l.b16 %v1385
        %v1981 = vunpack.c.h.b16 %v1385
        %v1982 = vunpack.c.l.b16 %v1386
        %v1983 = vunpack.c.h.b16 %v1386
        %v1984 = vunpack.c.l.b16 %v1387
        %v1985 = vunpack.c.h.b16 %v1387
        %v1986 = vunpack.c.l.b16 %v1388
        %v1987 = vunpack.c.h.b16 %v1388
        %v1988 = vunpack.c.l.b16 %v1389
        %v1989 = vunpack.c.h.b16 %v1389
        %v1990 = vunpack.c.l.b16 %v1390
        %v1991 = vunpack.c.h.b16 %v1390
        %v1992 = vunpack.c.l.b16 %v1391
        %v1993 = vunpack.c.h.b16 %v1391
        %v1994 = vunpack.c.l.b16 %v1392
        %v1995 = vunpack.c.h.b16 %v1392
        %v1996 = vunpack.c.l.b16 %v1393
        %v1997 = vunpack.c.h.b16 %v1393
        %v1998 = vunpack.c.l.b16 %v1394
        %v1999 = vunpack.c.h.b16 %v1394
        %v2000 = vunpack.c.l.b16 %v1395
        %v2001 = vunpack.c.h.b16 %v1395
        %v2002 = vunpack.c.l.b16 %v1396
        %v2003 = vunpack.c.h.b16 %v1396
        %v2004 = vunpack.c.l.b16 %v1397
        %v2005 = vunpack.c.h.b16 %v1397
        %v2006 = vunpack.c.l.b16 %v1398
        %v2007 = vunpack.c.h.b16 %v1398
        %v2008 = vunpack.c.l.b16 %v1399
        %v2009 = vunpack.c.h.b16 %v1399
        %v2010 = vunpack.c.l.b16 %v1400
        %v2011 = vunpack.c.h.b16 %v1400
        %v2012 = vunpack.c.l.b16 %v1401
        %v2013 = vunpack.c.h.b16 %v1401
        %v2014 = vunpack.c.l.b16 %v1402
        %v2015 = vunpack.c.h.b16 %v1402
        %v2016 = vunpack.c.l.b16 %v1403
        %v2017 = vunpack.c.h.b16 %v1403
        %v2018 = vunpack.c.l.b16 %v1404
        %v2019 = vunpack.c.h.b16 %v1404
        %v2020 = vunpack.c.l.b16 %v1405
        %v2021 = vunpack.c.h.b16 %v1405
        %v2022 = vunpack.c.l.b16 %v1406
        %v2023 = vunpack.c.h.b16 %v1406
        %v2024 = vunpack.c.l.b16 %v1407
        %v2025 = vunpack.c.h.b16 %v1407
        %v2026 = vunpack.c.l.b16 %v1408
        %v2027 = vunpack.c.h.b16 %v1408
        %v2028 = vunpack.c.l.b16 %v1409
        %v2029 = vunpack.c.h.b16 %v1409
        %v2030 = vunpack.c.l.b16 %v1410
        %v2031 = vunpack.c.h.b16 %v1410
        %v2032 = vunpack.c.l.b16 %v1411
        %v2033 = vunpack.c.h.b16 %v1411
        %v2034 = vunpack.c.l.b16 %v1412
        %v2035 = vunpack.c.h.b16 %v1412
        %v2036 = vunpack.c.l.b16 %v1413
        %v2037 = vunpack.c.h.b16 %v1413
        %v2038 = vunpack.c.l.b16 %v1414
        %v2039 = vunpack.c.h.b16 %v1414
        %v2040 = vunpack.c.l.b16 %v1415
        %v2041 = vunpack.c.h.b16 %v1415
        %v2042 = vunpack.c.l.b16 %v1416
        %v2043 = vunpack.c.h.b16 %v1416
        %v2044 = vunpack.c.l.b16 %v1417
        %v2045 = vunpack.c.h.b16 %v1417
        %v2046 = vunpack.c.l.b16 %v1418
        %v2047 = vunpack.c.h.b16 %v1418
        %v2048 = vunpack.c.l.b16 %v1419
        %v2049 = vunpack.c.h.b16 %v1419
        %v2050 = vunpack.c.l.b16 %v1420
        %v2051 = vunpack.c.h.b16 %v1420
        %v2052 = vunpack.c.l.b16 %v1421
        %v2053 = vunpack.c.h.b16 %v1421
        %v2054 = vunpack.c.l.b16 %v1422
        %v2055 = vunpack.c.h.b16 %v1422
        %v2056 = vunpack.c.l.b16 %v1423
        %v2057 = vunpack.c.h.b16 %v1423
        %v2058 = vunpack.c.l.b16 %v1424
        %v2059 = vunpack.c.h.b16 %v1424
        %v2060 = vunpack.c.l.b16 %v1425
        %v2061 = vunpack.c.h.b16 %v1425
        %v2062 = vunpack.c.l.b16 %v1426
        %v2063 = vunpack.c.h.b16 %v1426
        %v2064 = vunpack.c.l.b16 %v1427
        %v2065 = vunpack.c.h.b16 %v1427
        %v2066 = vunpack.c.l.b16 %v1428
        %v2067 = vunpack.c.h.b16 %v1428
        %v2068 = vunpack.c.l.b16 %v1429
        %v2069 = vunpack.c.h.b16 %v1429
        %v2070 = vunpack.c.l.b16 %v1430
        %v2071 = vunpack.c.h.b16 %v1430
        %v2072 = vunpack.c.l.b16 %v1431
        %v2073 = vunpack.c.h.b16 %v1431
        %v2074 = vunpack.c.l.b16 %v1432
        %v2075 = vunpack.c.h.b16 %v1432
        %v2076 = vunpack.c.l.b16 %v1433
        %v2077 = vunpack.c.h.b16 %v1433
        %v2078 = vunpack.c.l.b16 %v1434
        %v2079 = vunpack.c.h.b16 %v1434
        %v2080 = vunpack.c.l.b16 %v1435
        %v2081 = vunpack.c.h.b16 %v1435
        %v2082 = vunpack.c.l.b16 %v1436
        %v2083 = vunpack.c.h.b16 %v1436
        %v2084 = vunpack.c.l.b16 %v1437
        %v2085 = vunpack.c.h.b16 %v1437
        %v2086 = vunpack.c.l.b16 %v1438
        %v2087 = vunpack.c.h.b16 %v1438
        %v2088 = vunpack.c.l.b16 %v1439
        %v2089 = vunpack.c.h.b16 %v1439
        %v2090 = vunpack.c.l.b16 %v1440
        %v2091 = vunpack.c.h.b16 %v1440
        %v2092 = vunpack.c.l.b16 %v1441
        %v2093 = vunpack.c.h.b16 %v1441
        %v2094 = vunpack.c.l.b16 %v1442
        %v2095 = vunpack.c.h.b16 %v1442
        %v2096 = vunpack.c.l.b16 %v1443
        %v2097 = vunpack.c.h.b16 %v1443
        %v2098 = vunpack.c.l.b16 %v1444
        %v2099 = vunpack.c.h.b16 %v1444
        %v2100 = vunpack.c.l.b16 %v1445
        %v2101 = vunpack.c.h.b16 %v1445
        %v2102 = vunpack.c.l.b16 %v1446
        %v2103 = vunpack.c.h.b16 %v1446
        %v2104 = vunpack.c.l.b16 %v1447
        %v2105 = vunpack.c.h.b16 %v1447
        %v2106 = vunpack.c.l.b16 %v1448
        %v2107 = vunpack.c.h.b16 %v1448
        %v2108 = vunpack.c.l.b16 %v1449
        %v2109 = vunpack.c.h.b16 %v1449
        %v2110 = vunpack.c.l.b16 %v1450
        %v2111 = vunpack.c.h.b16 %v1450
        %v2112 = vunpack.c.l.b16 %v1451
        %v2113 = vunpack.c.h.b16 %v1451
        %v2114 = vunpack.c.l.b16 %v1452
        %v2115 = vunpack.c.h.b16 %v1452
        %v2116 = vunpack.c.l.b16 %v1453
        %v2117 = vunpack.c.h.b16 %v1453
        %v2118 = vunpack.c.l.b16 %v1454
        %v2119 = vunpack.c.h.b16 %v1454
        %v2120 = vunpack.c.l.b16 %v1455
        %v2121 = vunpack.c.h.b16 %v1455
        %v2122 = vunpack.c.l.b16 %v1456
        %v2123 = vunpack.c.h.b16 %v1456
        %v2124 = vunpack.c.l.b16 %v1457
        %v2125 = vunpack.c.h.b16 %v1457
        %v2126 = vunpack.c.l.b16 %v1458
        %v2127 = vunpack.c.h.b16 %v1458
        %v2128 = vunpack.c.l.b16 %v1459
        %v2129 = vunpack.c.h.b16 %v1459
        %v2130 = vunpack.c.l.b16 %v1460
        %v2131 = vunpack.c.h.b16 %v1460
        %v2132 = vunpack.c.l.b16 %v1461
        %v2133 = vunpack.c.h.b16 %v1461
        %v2134 = vunpack.c.l.b16 %v1462
        %v2135 = vunpack.c.h.b16 %v1462
        %v2136 = vunpack.c.l.b16 %v1463
        %v2137 = vunpack.c.h.b16 %v1463
        %v2138 = vunpack.c.l.b16 %v1464
        %v2139 = vunpack.c.h.b16 %v1464
        %v2140 = vunpack.c.l.b16 %v1465
        %v2141 = vunpack.c.h.b16 %v1465
        %v2142 = vunpack.c.l.b16 %v1466
        %v2143 = vunpack.c.h.b16 %v1466
        %v2144 = vunpack.c.l.b16 %v1467
        %v2145 = vunpack.c.h.b16 %v1467
        %v2146 = vunpack.c.l.b16 %v1468
        %v2147 = vunpack.c.h.b16 %v1468
        %v2148 = vunpack.c.l.b16 %v1469
        %v2149 = vunpack.c.h.b16 %v1469
        %v2150 = vunpack.c.l.b16 %v1470
        %v2151 = vunpack.c.h.b16 %v1470
        %v2152 = vunpack.c.l.b16 %v1471
        %v2153 = vunpack.c.h.b16 %v1471
        %v2154 = vunpack.c.l.b16 %v1472
        %v2155 = vunpack.c.h.b16 %v1472
        %v2156 = vunpack.c.l.b16 %v1473
        %v2157 = vunpack.c.h.b16 %v1473
        %v2158 = vunpack.c.l.b16 %v1474
        %v2159 = vunpack.c.h.b16 %v1474
        %v2160 = vunpack.c.l.b16 %v1475
        %v2161 = vunpack.c.h.b16 %v1475
        %v2162 = vunpack.c.l.b16 %v1476
        %v2163 = vunpack.c.h.b16 %v1476
        %v2164 = vunpack.c.l.b16 %v1477
        %v2165 = vunpack.c.h.b16 %v1477
        %v2166 = vunpack.c.l.b16 %v1478
        %v2167 = vunpack.c.h.b16 %v1478
        %v2168 = vunpack.c.l.b16 %v1479
        %v2169 = vunpack.c.h.b16 %v1479
        %v2170 = vunpack.c.l.b16 %v1480
        %v2171 = vunpack.c.h.b16 %v1480
        %v2172 = vunpack.c.l.b16 %v1481
        %v2173 = vunpack.c.h.b16 %v1481
        %v2174 = vunpack.c.l.b16 %v1482
        %v2175 = vunpack.c.h.b16 %v1482
        %v2176 = vunpack.c.l.b16 %v1483
        %v2177 = vunpack.c.h.b16 %v1483
        %v2178 = vunpack.c.l.b16 %v1484
        %v2179 = vunpack.c.h.b16 %v1484
        %v2180 = vunpack.c.l.b16 %v1485
        %v2181 = vunpack.c.h.b16 %v1485
        %v2182 = vunpack.c.l.b16 %v1486
        %v2183 = vunpack.c.h.b16 %v1486
        %v2184 = vunpack.c.l.b16 %v1487
        %v2185 = vunpack.c.h.b16 %v1487
        %v2186 = vunpack.c.l.b16 %v1488
        %v2187 = vunpack.c.h.b16 %v1488
        %v2188 = vunpack.c.l.b16 %v1489
        %v2189 = vunpack.c.h.b16 %v1489
        %v2190 = vunpack.c.l.b16 %v1490
        %v2191 = vunpack.c.h.b16 %v1490
        %v2192 = vunpack.c.l.b16 %v1491
        %v2193 = vunpack.c.h.b16 %v1491
        %v2194 = vunpack.c.l.b16 %v1492
        %v2195 = vunpack.c.h.b16 %v1492
        %v2196 = vunpack.c.l.b16 %v1493
        %v2197 = vunpack.c.h.b16 %v1493
        %v2198 = vunpack.c.l.b16 %v1494
        %v2199 = vunpack.c.h.b16 %v1494
        %v2200 = vunpack.c.l.b16 %v1495
        %v2201 = vunpack.c.h.b16 %v1495
        %v2202 = vunpack.c.l.b16 %v1496
        %v2203 = vunpack.c.h.b16 %v1496
        %v2204 = vunpack.c.l.b16 %v1497
        %v2205 = vunpack.c.h.b16 %v1497
        %v2206 = vunpack.c.l.b16 %v1498
        %v2207 = vunpack.c.h.b16 %v1498
        %v2208 = vunpack.c.l.b16 %v1499
        %v2209 = vunpack.c.h.b16 %v1499
        %v2210 = vunpack.c.l.b16 %v1500
        %v2211 = vunpack.c.h.b16 %v1500
        %v2212 = vunpack.c.l.b16 %v1501
        %v2213 = vunpack.c.h.b16 %v1501
        %v2214 = vunpack.c.l.b16 %v1502
        %v2215 = vunpack.c.h.b16 %v1502
        %v2216 = vunpack.c.l.b16 %v1503
        %v2217 = vunpack.c.h.b16 %v1503
        %v2218 = vunpack.c.l.b16 %v1504
        %v2219 = vunpack.c.h.b16 %v1504
        %v2220 = vunpack.c.l.b16 %v1505
        %v2221 = vunpack.c.h.b16 %v1505
        %v2222 = vunpack.c.l.b16 %v1506
        %v2223 = vunpack.c.h.b16 %v1506
        %v2224 = vunpack.c.l.b16 %v1507
        %v2225 = vunpack.c.h.b16 %v1507
        %v2226 = vunpack.c.l.b16 %v1508
        %v2227 = vunpack.c.h.b16 %v1508
        %v2228 = vunpack.c.l.b16 %v1509
        %v2229 = vunpack.c.h.b16 %v1509
        %v2230 = vunpack.c.l.b16 %v1510
        %v2231 = vunpack.c.h.b16 %v1510
        %v2232 = vunpack.c.l.b16 %v1511
        %v2233 = vunpack.c.h.b16 %v1511
        %v2234 = vunpack.c.l.b16 %v1512
        %v2235 = vunpack.c.h.b16 %v1512
        %v2236 = vunpack.c.l.b16 %v1513
        %v2237 = vunpack.c.h.b16 %v1513
        %v2238 = vunpack.c.l.b16 %v1514
        %v2239 = vunpack.c.h.b16 %v1514
        %v2240 = vunpack.c.l.b16 %v1515
        %v2241 = vunpack.c.h.b16 %v1515
        %v2242 = vunpack.c.l.b16 %v1516
        %v2243 = vunpack.c.h.b16 %v1516
        %v2244 = vunpack.c.l.b16 %v1517
        %v2245 = vunpack.c.h.b16 %v1517
        %v2246 = vunpack.c.l.b16 %v1518
        %v2247 = vunpack.c.h.b16 %v1518
        %v2248 = vunpack.c.l.b16 %v1519
        %v2249 = vunpack.c.h.b16 %v1519
        %v2250 = vunpack.c.l.b16 %v1520
        %v2251 = vunpack.c.h.b16 %v1520
        %v2252 = vunpack.c.l.b16 %v1521
        %v2253 = vunpack.c.h.b16 %v1521
        %v2254 = vunpack.c.l.b16 %v1522
        %v2255 = vunpack.c.h.b16 %v1522
        %v2256 = vunpack.c.l.b16 %v1523
        %v2257 = vunpack.c.h.b16 %v1523
        %v2258 = vunpack.c.l.b16 %v1524
        %v2259 = vunpack.c.h.b16 %v1524
        %v2260 = vunpack.c.l.b16 %v1525
        %v2261 = vunpack.c.h.b16 %v1525
        %v2262 = vunpack.c.l.b16 %v1526
        %v2263 = vunpack.c.h.b16 %v1526
        %v2264 = vunpack.c.l.b16 %v1527
        %v2265 = vunpack.c.h.b16 %v1527
        %v2266 = vunpack.c.l.b16 %v1528
        %v2267 = vunpack.c.h.b16 %v1528
        %v2268 = vunpack.c.l.b16 %v1529
        %v2269 = vunpack.c.h.b16 %v1529
        %v2270 = vunpack.c.l.b16 %v1530
        %v2271 = vunpack.c.h.b16 %v1530
        %v2272 = vunpack.c.l.b16 %v1531
        %v2273 = vunpack.c.h.b16 %v1531
        %v2274 = vunpack.c.l.b16 %v1532
        %v2275 = vunpack.c.h.b16 %v1532
        %v2276 = vunpack.c.l.b16 %v1533
        %v2277 = vunpack.c.h.b16 %v1533
        %v2278 = vunpack.c.l.b16 %v1534
        %v2279 = vunpack.c.h.b16 %v1534
        %v2280 = vunpack.c.l.b16 %v1535
        %v2281 = vunpack.c.h.b16 %v1535
        %v2282 = vunpack.c.l.b16 %v1536
        %v2283 = vunpack.c.h.b16 %v1536
        %v2284 = vunpack.c.l.b16 %v1537
        %v2285 = vunpack.c.h.b16 %v1537
        %v2286 = vunpack.c.l.b16 %v1538
        %v2287 = vunpack.c.h.b16 %v1538
        %v2288 = vunpack.c.l.b16 %v1539
        %v2289 = vunpack.c.h.b16 %v1539
        %v2290 = vunpack.c.l.b16 %v1540
        %v2291 = vunpack.c.h.b16 %v1540
        %v2292 = vunpack.c.l.b16 %v1541
        %v2293 = vunpack.c.h.b16 %v1541
        %v2294 = vunpack.c.l.b16 %v1542
        %v2295 = vunpack.c.h.b16 %v1542
        %v2296 = vunpack.c.l.b16 %v1543
        %v2297 = vunpack.c.h.b16 %v1543
        %v2298 = vunpack.c.l.b16 %v1544
        %v2299 = vunpack.c.h.b16 %v1544
        %v2300 = vunpack.c.l.b16 %v1545
        %v2301 = vunpack.c.h.b16 %v1545
        %v2302 = vunpack.c.l.b16 %v1546
        %v2303 = vunpack.c.h.b16 %v1546
        %v2304 = vunpack.c.l.b16 %v1547
        %v2305 = vunpack.c.h.b16 %v1547
        %v2306 = vunpack.c.l.b16 %v1548
        %v2307 = vunpack.c.h.b16 %v1548
        %v2308 = vunpack.c.l.b16 %v1549
        %v2309 = vunpack.c.h.b16 %v1549
        %v2310 = vunpack.c.l.b16 %v1550
        %v2311 = vunpack.c.h.b16 %v1550
        %v2312 = vunpack.c.l.b16 %v1551
        %v2313 = vunpack.c.h.b16 %v1551
        %v2314 = vunpack.c.l.b16 %v1552
        %v2315 = vunpack.c.h.b16 %v1552
        %v2316 = vunpack.c.l.b16 %v1553
        %v2317 = vunpack.c.h.b16 %v1553
        %v2318 = vunpack.c.l.b16 %v1554
        %v2319 = vunpack.c.h.b16 %v1554
        %v2320 = vunpack.c.l.b16 %v1555
        %v2321 = vunpack.c.h.b16 %v1555
        %v2322 = vunpack.c.l.b16 %v1556
        %v2323 = vunpack.c.h.b16 %v1556
        %v2324 = vunpack.c.l.b16 %v1557
        %v2325 = vunpack.c.h.b16 %v1557
        %v2326 = vpack.c.b16 %v1846, %v1814
        %v2327 = vpack.c.b16 %v1847, %v1815
        %v2328 = vpack.c.b16 %v1848, %v1816
        %v2329 = vpack.c.b16 %v1849, %v1817
        %v2330 = vpack.c.b16 %v1850, %v1818
        %v2331 = vpack.c.b16 %v1851, %v1819
        %v2332 = vpack.c.b16 %v1852, %v1820
        %v2333 = vpack.c.b16 %v1853, %v1821
        %v2334 = vpack.c.b16 %v1854, %v1822
        %v2335 = vpack.c.b16 %v1855, %v1823
        %v2336 = vpack.c.b16 %v1856, %v1824
        %v2337 = vpack.c.b16 %v1857, %v1825
        %v2338 = vpack.c.b16 %v1858, %v1826
        %v2339 = vpack.c.b16 %v1859, %v1827
        %v2340 = vpack.c.b16 %v1860, %v1828
        %v2341 = vpack.c.b16 %v1861, %v1829
        %v2342 = vpack.c.b16 %v1862, %v1830
        %v2343 = vpack.c.b16 %v1863, %v1831
        %v2344 = vpack.c.b16 %v1864, %v1832
        %v2345 = vpack.c.b16 %v1865, %v1833
        %v2346 = vpack.c.b16 %v1866, %v1834
        %v2347 = vpack.c.b16 %v1867, %v1835
        %v2348 = vpack.c.b16 %v1868, %v1836
        %v2349 = vpack.c.b16 %v1869, %v1837
        %v2350 = vpack.c.b16 %v1870, %v1838
        %v2351 = vpack.c.b16 %v1871, %v1839
        %v2352 = vpack.c.b16 %v1872, %v1840
        %v2353 = vpack.c.b16 %v1873, %v1841
        %v2354 = vpack.c.b16 %v1874, %v1842
        %v2355 = vpack.c.b16 %v1875, %v1843
        %v2356 = vpack.c.b16 %v1876, %v1844
        %v2357 = vpack.c.b16 %v1877, %v1845
        %v2358 = vpack.c.b16 %v1910, %v1878
        %v2359 = vpack.c.b16 %v1911, %v1879
        %v2360 = vpack.c.b16 %v1912, %v1880
        %v2361 = vpack.c.b16 %v1913, %v1881
        %v2362 = vpack.c.b16 %v1914, %v1882
        %v2363 = vpack.c.b16 %v1915, %v1883
        %v2364 = vpack.c.b16 %v1916, %v1884
        %v2365 = vpack.c.b16 %v1917, %v1885
        %v2366 = vpack.c.b16 %v1918, %v1886
        %v2367 = vpack.c.b16 %v1919, %v1887
        %v2368 = vpack.c.b16 %v1920, %v1888
        %v2369 = vpack.c.b16 %v1921, %v1889
        %v2370 = vpack.c.b16 %v1922, %v1890
        %v2371 = vpack.c.b16 %v1923, %v1891
        %v2372 = vpack.c.b16 %v1924, %v1892
        %v2373 = vpack.c.b16 %v1925, %v1893
        %v2374 = vpack.c.b16 %v1926, %v1894
        %v2375 = vpack.c.b16 %v1927, %v1895
        %v2376 = vpack.c.b16 %v1928, %v1896
        %v2377 = vpack.c.b16 %v1929, %v1897
        %v2378 = vpack.c.b16 %v1930, %v1898
        %v2379 = vpack.c.b16 %v1931, %v1899
        %v2380 = vpack.c.b16 %v1932, %v1900
        %v2381 = vpack.c.b16 %v1933, %v1901
        %v2382 = vpack.c.b16 %v1934, %v1902
        %v2383 = vpack.c.b16 %v1935, %v1903
        %v2384 = vpack.c.b16 %v1936, %v1904
        %v2385 = vpack.c.b16 %v1937, %v1905
        %v2386 = vpack.c.b16 %v1938, %v1906
        %v2387 = vpack.c.b16 %v1939, %v1907
        %v2388 = vpack.c.b16 %v1940, %v1908
        %v2389 = vpack.c.b16 %v1941, %v1909
        %v2390 = vpack.c.b16 %v1974, %v1942
        %v2391 = vpack.c.b16 %v1975, %v1943
        %v2392 = vpack.c.b16 %v1976, %v1944
        %v2393 = vpack.c.b16 %v1977, %v1945
        %v2394 = vpack.c.b16 %v1978, %v1946
        %v2395 = vpack.c.b16 %v1979, %v1947
        %v2396 = vpack.c.b16 %v1980, %v1948
        %v2397 = vpack.c.b16 %v1981, %v1949
        %v2398 = vpack.c.b16 %v1982, %v1950
        %v2399 = vpack.c.b16 %v1983, %v1951
        %v2400 = vpack.c.b16 %v1984, %v1952
        %v2401 = vpack.c.b16 %v1985, %v1953
        %v2402 = vpack.c.b16 %v1986, %v1954
        %v2403 = vpack.c.b16 %v1987, %v1955
        %v2404 = vpack.c.b16 %v1988, %v1956
        %v2405 = vpack.c.b16 %v1989, %v1957
        %v2406 = vpack.c.b16 %v1990, %v1958
        %v2407 = vpack.c.b16 %v1991, %v1959
        %v2408 = vpack.c.b16 %v1992, %v1960
        %v2409 = vpack.c.b16 %v1993, %v1961
        %v2410 = vpack.c.b16 %v1994, %v1962
        %v2411 = vpack.c.b16 %v1995, %v1963
        %v2412 = vpack.c.b16 %v1996, %v1964
        %v2413 = vpack.c.b16 %v1997, %v1965
        %v2414 = vpack.c.b16 %v1998, %v1966
        %v2415 = vpack.c.b16 %v1999, %v1967
        %v2416 = vpack.c.b16 %v2000, %v1968
        %v2417 = vpack.c.b16 %v2001, %v1969
        %v2418 = vpack.c.b16 %v2002, %v1970
        %v2419 = vpack.c.b16 %v2003, %v1971
        %v2420 = vpack.c.b16 %v2004, %v1972
        %v2421 = vpack.c.b16 %v2005, %v1973
        %v2422 = vpack.c.b16 %v2038, %v2006
        %v2423 = vpack.c.b16 %v2039, %v2007
        %v2424 = vpack.c.b16 %v2040, %v2008
        %v2425 = vpack.c.b16 %v2041, %v2009
        %v2426 = vpack.c.b16 %v2042, %v2010
        %v2427 = vpack.c.b16 %v2043, %v2011
        %v2428 = vpack.c.b16 %v2044, %v2012
        %v2429 = vpack.c.b16 %v2045, %v2013
        %v2430 = vpack.c.b16 %v2046, %v2014
        %v2431 = vpack.c.b16 %v2047, %v2015
        %v2432 = vpack.c.b16 %v2048, %v2016
        %v2433 = vpack.c.b16 %v2049, %v2017
        %v2434 = vpack.c.b16 %v2050, %v2018
        %v2435 = vpack.c.b16 %v2051, %v2019
        %v2436 = vpack.c.b16 %v2052, %v2020
        %v2437 = vpack.c.b16 %v2053, %v2021
        %v2438 = vpack.c.b16 %v2054, %v2022
        %v2439 = vpack.c.b16 %v2055, %v2023
        %v2440 = vpack.c.b16 %v2056, %v2024
        %v2441 = vpack.c.b16 %v2057, %v2025
        %v2442 = vpack.c.b16 %v2058, %v2026
        %v2443 = vpack.c.b16 %v2059, %v2027
        %v2444 = vpack.c.b16 %v2060, %v2028
        %v2445 = vpack.c.b16 %v2061, %v2029
        %v2446 = vpack.c.b16 %v2062, %v2030
        %v2447 = vpack.c.b16 %v2063, %v2031
        %v2448 = vpack.c.b16 %v2064, %v2032
        %v2449 = vpack.c.b16 %v2065, %v2033
        %v2450 = vpack.c.b16 %v2066, %v2034
        %v2451 = vpack.c.b16 %v2067, %v2035
        %v2452 = vpack.c.b16 %v2068, %v2036
        %v2453 = vpack.c.b16 %v2069, %v2037
        %v2454 = vpack.c.b16 %v2102, %v2070
        %v2455 = vpack.c.b16 %v2103, %v2071
        %v2456 = vpack.c.b16 %v2104, %v2072
        %v2457 = vpack.c.b16 %v2105, %v2073
        %v2458 = vpack.c.b16 %v2106, %v2074
        %v2459 = vpack.c.b16 %v2107, %v2075
        %v2460 = vpack.c.b16 %v2108, %v2076
        %v2461 = vpack.c.b16 %v2109, %v2077
        %v2462 = vpack.c.b16 %v2110, %v2078
        %v2463 = vpack.c.b16 %v2111, %v2079
        %v2464 = vpack.c.b16 %v2112, %v2080
        %v2465 = vpack.c.b16 %v2113, %v2081
        %v2466 = vpack.c.b16 %v2114, %v2082
        %v2467 = vpack.c.b16 %v2115, %v2083
        %v2468 = vpack.c.b16 %v2116, %v2084
        %v2469 = vpack.c.b16 %v2117, %v2085
        %v2470 = vpack.c.b16 %v2118, %v2086
        %v2471 = vpack.c.b16 %v2119, %v2087
        %v2472 = vpack.c.b16 %v2120, %v2088
        %v2473 = vpack.c.b16 %v2121, %v2089
        %v2474 = vpack.c.b16 %v2122, %v2090
        %v2475 = vpack.c.b16 %v2123, %v2091
        %v2476 = vpack.c.b16 %v2124, %v2092
        %v2477 = vpack.c.b16 %v2125, %v2093
        %v2478 = vpack.c.b16 %v2126, %v2094
        %v2479 = vpack.c.b16 %v2127, %v2095
        %v2480 = vpack.c.b16 %v2128, %v2096
        %v2481 = vpack.c.b16 %v2129, %v2097
        %v2482 = vpack.c.b16 %v2130, %v2098
        %v2483 = vpack.c.b16 %v2131, %v2099
        %v2484 = vpack.c.b16 %v2132, %v2100
        %v2485 = vpack.c.b16 %v2133, %v2101
        %v2486 = vpack.c.b16 %v2166, %v2134
        %v2487 = vpack.c.b16 %v2167, %v2135
        %v2488 = vpack.c.b16 %v2168, %v2136
        %v2489 = vpack.c.b16 %v2169, %v2137
        %v2490 = vpack.c.b16 %v2170, %v2138
        %v2491 = vpack.c.b16 %v2171, %v2139
        %v2492 = vpack.c.b16 %v2172, %v2140
        %v2493 = vpack.c.b16 %v2173, %v2141
        %v2494 = vpack.c.b16 %v2174, %v2142
        %v2495 = vpack.c.b16 %v2175, %v2143
        %v2496 = vpack.c.b16 %v2176, %v2144
        %v2497 = vpack.c.b16 %v2177, %v2145
        %v2498 = vpack.c.b16 %v2178, %v2146
        %v2499 = vpack.c.b16 %v2179, %v2147
        %v2500 = vpack.c.b16 %v2180, %v2148
        %v2501 = vpack.c.b16 %v2181, %v2149
        %v2502 = vpack.c.b16 %v2182, %v2150
        %v2503 = vpack.c.b16 %v2183, %v2151
        %v2504 = vpack.c.b16 %v2184, %v2152
        %v2505 = vpack.c.b16 %v2185, %v2153
        %v2506 = vpack.c.b16 %v2186, %v2154
        %v2507 = vpack.c.b16 %v2187, %v2155
        %v2508 = vpack.c.b16 %v2188, %v2156
        %v2509 = vpack.c.b16 %v2189, %v2157
        %v2510 = vpack.c.b16 %v2190, %v2158
        %v2511 = vpack.c.b16 %v2191, %v2159
        %v2512 = vpack.c.b16 %v2192, %v2160
        %v2513 = vpack.c.b16 %v2193, %v2161
        %v2514 = vpack.c.b16 %v2194, %v2162
        %v2515 = vpack.c.b16 %v2195, %v2163
        %v2516 = vpack.c.b16 %v2196, %v2164
        %v2517 = vpack.c.b16 %v2197, %v2165
        %v2518 = vpack.c.b16 %v2230, %v2198
        %v2519 = vpack.c.b16 %v2231, %v2199
        %v2520 = vpack.c.b16 %v2232, %v2200
        %v2521 = vpack.c.b16 %v2233, %v2201
        %v2522 = vpack.c.b16 %v2234, %v2202
        %v2523 = vpack.c.b16 %v2235, %v2203
        %v2524 = vpack.c.b16 %v2236, %v2204
        %v2525 = vpack.c.b16 %v2237, %v2205
        %v2526 = vpack.c.b16 %v2238, %v2206
        %v2527 = vpack.c.b16 %v2239, %v2207
        %v2528 = vpack.c.b16 %v2240, %v2208
        %v2529 = vpack.c.b16 %v2241, %v2209
        %v2530 = vpack.c.b16 %v2242, %v2210
        %v2531 = vpack.c.b16 %v2243, %v2211
        %v2532 = vpack.c.b16 %v2244, %v2212
        %v2533 = vpack.c.b16 %v2245, %v2213
        %v2534 = vpack.c.b16 %v2246, %v2214
        %v2535 = vpack.c.b16 %v2247, %v2215
        %v2536 = vpack.c.b16 %v2248, %v2216
        %v2537 = vpack.c.b16 %v2249, %v2217
        %v2538 = vpack.c.b16 %v2250, %v2218
        %v2539 = vpack.c.b16 %v2251, %v2219
        %v2540 = vpack.c.b16 %v2252, %v2220
        %v2541 = vpack.c.b16 %v2253, %v2221
        %v2542 = vpack.c.b16 %v2254, %v2222
        %v2543 = vpack.c.b16 %v2255, %v2223
        %v2544 = vpack.c.b16 %v2256, %v2224
        %v2545 = vpack.c.b16 %v2257, %v2225
        %v2546 = vpack.c.b16 %v2258, %v2226
        %v2547 = vpack.c.b16 %v2259, %v2227
        %v2548 = vpack.c.b16 %v2260, %v2228
        %v2549 = vpack.c.b16 %v2261, %v2229
        %v2550 = vpack.c.b16 %v2294, %v2262
        %v2551 = vpack.c.b16 %v2295, %v2263
        %v2552 = vpack.c.b16 %v2296, %v2264
        %v2553 = vpack.c.b16 %v2297, %v2265
        %v2554 = vpack.c.b16 %v2298, %v2266
        %v2555 = vpack.c.b16 %v2299, %v2267
        %v2556 = vpack.c.b16 %v2300, %v2268
        %v2557 = vpack.c.b16 %v2301, %v2269
        %v2558 = vpack.c.b16 %v2302, %v2270
        %v2559 = vpack.c.b16 %v2303, %v2271
        %v2560 = vpack.c.b16 %v2304, %v2272
        %v2561 = vpack.c.b16 %v2305, %v2273
        %v2562 = vpack.c.b16 %v2306, %v2274
        %v2563 = vpack.c.b16 %v2307, %v2275
        %v2564 = vpack.c.b16 %v2308, %v2276
        %v2565 = vpack.c.b16 %v2309, %v2277
        %v2566 = vpack.c.b16 %v2310, %v2278
        %v2567 = vpack.c.b16 %v2311, %v2279
        %v2568 = vpack.c.b16 %v2312, %v2280
        %v2569 = vpack.c.b16 %v2313, %v2281
        %v2570 = vpack.c.b16 %v2314, %v2282
        %v2571 = vpack.c.b16 %v2315, %v2283
        %v2572 = vpack.c.b16 %v2316, %v2284
        %v2573 = vpack.c.b16 %v2317, %v2285
        %v2574 = vpack.c.b16 %v2318, %v2286
        %v2575 = vpack.c.b16 %v2319, %v2287
        %v2576 = vpack.c.b16 %v2320, %v2288
        %v2577 = vpack.c.b16 %v2321, %v2289
        %v2578 = vpack.c.b16 %v2322, %v2290
        %v2579 = vpack.c.b16 %v2323, %v2291
        %v2580 = vpack.c.b16 %v2324, %v2292
        %v2581 = vpack.c.b16 %v2325, %v2293
        %2838 = vmatprep.subr.bf16.mxu0 0
        %2839 = vmatpush1.bf16.msra.mxu0 %v1030
        %2840 = vmatprep.subr.bf16.mxu0 0
        %2841 = vmatpush1.bf16.msra.mxu0 %v1031
        %2842 = vmatprep.subr.bf16.mxu0 0
        %2843 = vmatpush1.bf16.msra.mxu0 %v1032
        %2844 = vmatprep.subr.bf16.mxu0 0
        %2845 = vmatpush1.bf16.msra.mxu0 %v1033
        %2846 = vmatprep.subr.bf16.mxu0 0
        %2847 = vmatpush1.bf16.msra.mxu0 %v1034
        %2848 = vmatprep.subr.bf16.mxu0 0
        %2849 = vmatpush1.bf16.msra.mxu0 %v1035
        %2850 = vmatprep.subr.bf16.mxu0 0
        %2851 = vmatpush1.bf16.msra.mxu0 %v1036
        %2852 = vmatprep.subr.bf16.mxu0 0
        %2853 = vmatpush1.bf16.msra.mxu0 %v1037
        %2854 = vmatprep.subr.bf16.mxu0 0
        %2855 = vmatpush1.bf16.msra.mxu0 %v1038
        %2856 = vmatprep.subr.bf16.mxu0 0
        %2857 = vmatpush1.bf16.msra.mxu0 %v1039
        %2858 = vmatprep.subr.bf16.mxu0 0
        %2859 = vmatpush1.bf16.msra.mxu0 %v1040
        %2860 = vmatprep.subr.bf16.mxu0 0
        %2861 = vmatpush1.bf16.msra.mxu0 %v1041
        %2862 = vmatprep.subr.bf16.mxu0 0
        %2863 = vmatpush1.bf16.msra.mxu0 %v1042
        %2864 = vmatprep.subr.bf16.mxu0 0
        %2865 = vmatpush1.bf16.msra.mxu0 %v1043
        %2866 = vmatprep.subr.bf16.mxu0 0
        %2867 = vmatpush1.bf16.msra.mxu0 %v1044
        %2868 = vmatprep.subr.bf16.mxu0 0
        %2869 = vmatpush1.bf16.msra.mxu0 %v1045
        %2870 = vmatprep.mubr.bf16.mxu0 %v2327
        %2871 = vmatmul.mubr.bf16.gmra.mrb[0].mxu0 %v2326
        %v2872 = vpop.f32.mrb[0].mxu0
        %v2873 = vadd.f32 0.0, %v2872
        %v2874 = vpop.f32.mrb[0].mxu0
        %v2875 = vpop.f32.mrb[0].mxu0
        %v2876 = vadd.f32 0.0, %v2875
        %v2877 = vpop.f32.mrb[0].mxu0
        %2878 = vmatprep.mubr.bf16.mxu0 %v2359
        %2879 = vmatmul.mubr.bf16.gmra.mrb[0].mxu0 %v2358
        %v2880 = vpop.f32.mrb[0].mxu0
        %v2881 = vadd.f32 0.0, %v2880
        %v2882 = vpop.f32.mrb[0].mxu0
        %v2883 = vpop.f32.mrb[0].mxu0
        %v2884 = vadd.f32 0.0, %v2883
        %v2885 = vpop.f32.mrb[0].mxu0
        %2886 = vmatprep.mubr.bf16.mxu0 %v2391
        %2887 = vmatmul.mubr.bf16.gmra.mrb[0].mxu0 %v2390
        %v2888 = vpop.f32.mrb[0].mxu0
        %v2889 = vadd.f32 0.0, %v2888
        %v2890 = vpop.f32.mrb[0].mxu0
        %v2891 = vpop.f32.mrb[0].mxu0
        %v2892 = vadd.f32 0.0, %v2891
        %v2893 = vpop.f32.mrb[0].mxu0
        %2894 = vmatprep.mubr.bf16.mxu0 %v2423
        %2895 = vmatmul.mubr.bf16.gmra.mrb[0].mxu0 %v2422
        %v2896 = vpop.f32.mrb[0].mxu0
        %v2897 = vadd.f32 0.0, %v2896
        %v2898 = vpop.f32.mrb[0].mxu0
        %v2899 = vpop.f32.mrb[0].mxu0
        %v2900 = vadd.f32 0.0, %v2899
        %v2901 = vpop.f32.mrb[0].mxu0
        %2902 = vmatprep.mubr.bf16.mxu0 %v2455
        %2903 = vmatmul.mubr.bf16.gmra.mrb[0].mxu0 %v2454
        %v2904 = vpop.f32.mrb[0].mxu0
        %v2905 = vadd.f32 0.0, %v2904
        %v2906 = vpop.f32.mrb[0].mxu0
        %v2907 = vpop.f32.mrb[0].mxu0
        %v2908 = vadd.f32 0.0, %v2907
        %v2909 = vpop.f32.mrb[0].mxu0
        %2910 = vmatprep.mubr.bf16.mxu0 %v2487
        %2911 = vmatmul.mubr.bf16.gmra.mrb[0].mxu0 %v2486
        %v2912 = vpop.f32.mrb[0].mxu0
        %v2913 = vadd.f32 0.0, %v2912
        %v2914 = vpop.f32.mrb[0].mxu0
        %v2915 = vpop.f32.mrb[0].mxu0
        %v2916 = vadd.f32 0.0, %v2915
        %v2917 = vpop.f32.mrb[0].mxu0
        %2918 = vmatprep.mubr.bf16.mxu0 %v2519
        %2919 = vmatmul.mubr.bf16.gmra.mrb[0].mxu0 %v2518
        %v2920 = vpop.f32.mrb[0].mxu0
        %v2921 = vadd.f32 0.0, %v2920
        %v2922 = vpop.f32.mrb[0].mxu0
        %v2923 = vpop.f32.mrb[0].mxu0
        %v2924 = vadd.f32 0.0, %v2923
        %v2925 = vpop.f32.mrb[0].mxu0
        %2926 = vmatprep.mubr.bf16.mxu0 %v2551
        %2927 = vmatmul.mubr.bf16.gmra.mrb[0].mxu0 %v2550
        %v2928 = vpop.f32.mrb[0].mxu0
        %v2929 = vadd.f32 0.0, %v2928
        %v2930 = vpop.f32.mrb[0].mxu0
        %v2931 = vpop.f32.mrb[0].mxu0
        %v2932 = vadd.f32 0.0, %v2931
        %v2933 = vpop.f32.mrb[0].mxu0
        %2934 = vdwg.mxu0
        %2935 = vmatprep.subr.bf16.mxu0 0
        %2936 = vmatpush1.bf16.msra.mxu0 %v1046
        %2937 = vmatprep.subr.bf16.mxu0 0
        %2938 = vmatpush1.bf16.msra.mxu0 %v1047
        %2939 = vmatprep.subr.bf16.mxu0 0
        %2940 = vmatpush1.bf16.msra.mxu0 %v1048
        %2941 = vmatprep.subr.bf16.mxu0 0
        %2942 = vmatpush1.bf16.msra.mxu0 %v1049
        %2943 = vmatprep.subr.bf16.mxu0 0
        %2944 = vmatpush1.bf16.msra.mxu0 %v1050
        %2945 = vmatprep.subr.bf16.mxu0 0
        %2946 = vmatpush1.bf16.msra.mxu0 %v1051
        %2947 = vmatprep.subr.bf16.mxu0 0
        %2948 = vmatpush1.bf16.msra.mxu0 %v1052
        %2949 = vmatprep.subr.bf16.mxu0 0
        %2950 = vmatpush1.bf16.msra.mxu0 %v1053
        %2951 = vmatprep.subr.bf16.mxu0 0
        %2952 = vmatpush1.bf16.msra.mxu0 %v1054
        %2953 = vmatprep.subr.bf16.mxu0 0
        %2954 = vmatpush1.bf16.msra.mxu0 %v1055
        %2955 = vmatprep.subr.bf16.mxu0 0
        %2956 = vmatpush1.bf16.msra.mxu0 %v1056
        %2957 = vmatprep.subr.bf16.mxu0 0
        %2958 = vmatpush1.bf16.msra.mxu0 %v1057
        %2959 = vmatprep.subr.bf16.mxu0 0
        %2960 = vmatpush1.bf16.msra.mxu0 %v1058
        %2961 = vmatprep.subr.bf16.mxu0 0
        %2962 = vmatpush1.bf16.msra.mxu0 %v1059
        %2963 = vmatprep.subr.bf16.mxu0 0
        %2964 = vmatpush1.bf16.msra.mxu0 %v1060
        %2965 = vmatprep.subr.bf16.mxu0 0
        %2966 = vmatpush1.bf16.msra.mxu0 %v1061
        %2967 = vmatprep.mubr.bf16.mxu0 %v2329
        %2968 = vmatmul.mubr.bf16.gmra.mrb[0].mxu0 %v2328
        %v2969 = vpop.f32.mrb[0].mxu0
        %v2970 = vadd.f32 %v2873, %v2969
        %v2971 = vpop.f32.mrb[0].mxu0
        %v2972 = vpop.f32.mrb[0].mxu0
        %v2973 = vadd.f32 %v2876, %v2972
        %v2974 = vpop.f32.mrb[0].mxu0
        %2975 = vmatprep.mubr.bf16.mxu0 %v2361
        %2976 = vmatmul.mubr.bf16.gmra.mrb[0].mxu0 %v2360
        %v2977 = vpop.f32.mrb[0].mxu0
        %v2978 = vadd.f32 %v2881, %v2977
        %v2979 = vpop.f32.mrb[0].mxu0
        %v2980 = vpop.f32.mrb[0].mxu0
        %v2981 = vadd.f32 %v2884, %v2980
        %v2982 = vpop.f32.mrb[0].mxu0
        %2983 = vmatprep.mubr.bf16.mxu0 %v2393
        %2984 = vmatmul.mubr.bf16.gmra.mrb[0].mxu0 %v2392
        %v2985 = vpop.f32.mrb[0].mxu0
        %v2986 = vadd.f32 %v2889, %v2985
        %v2987 = vpop.f32.mrb[0].mxu0
        %v2988 = vpop.f32.mrb[0].mxu0
        %v2989 = vadd.f32 %v2892, %v2988
        %v2990 = vpop.f32.mrb[0].mxu0
        %2991 = vmatprep.mubr.bf16.mxu0 %v2425
        %2992 = vmatmul.mubr.bf16.gmra.mrb[0].mxu0 %v2424
        %v2993 = vpop.f32.mrb[0].mxu0
        %v2994 = vadd.f32 %v2897, %v2993
        %v2995 = vpop.f32.mrb[0].mxu0
        %v2996 = vpop.f32.mrb[0].mxu0
        %v2997 = vadd.f32 %v2900, %v2996
        %v2998 = vpop.f32.mrb[0].mxu0
        %2999 = vmatprep.mubr.bf16.mxu0 %v2457
        %3000 = vmatmul.mubr.bf16.gmra.mrb[0].mxu0 %v2456
        %v3001 = vpop.f32.mrb[0].mxu0
        %v3002 = vadd.f32 %v2905, %v3001
        %v3003 = vpop.f32.mrb[0].mxu0
        %v3004 = vpop.f32.mrb[0].mxu0
        %v3005 = vadd.f32 %v2908, %v3004
        %v3006 = vpop.f32.mrb[0].mxu0
        %3007 = vmatprep.mubr.bf16.mxu0 %v2489
        %3008 = vmatmul.mubr.bf16.gmra.mrb[0].mxu0 %v2488
        %v3009 = vpop.f32.mrb[0].mxu0
        %v3010 = vadd.f32 %v2913, %v3009
        %v3011 = vpop.f32.mrb[0].mxu0
        %v3012 = vpop.f32.mrb[0].mxu0
        %v3013 = vadd.f32 %v2916, %v3012
        %v3014 = vpop.f32.mrb[0].mxu0
        %3015 = vmatprep.mubr.bf16.mxu0 %v2521
        %3016 = vmatmul.mubr.bf16.gmra.mrb[0].mxu0 %v2520
        %v3017 = vpop.f32.mrb[0].mxu0
        %v3018 = vadd.f32 %v2921, %v3017
        %v3019 = vpop.f32.mrb[0].mxu0
        %v3020 = vpop.f32.mrb[0].mxu0
        %v3021 = vadd.f32 %v2924, %v3020
        %v3022 = vpop.f32.mrb[0].mxu0
        %3023 = vmatprep.mubr.bf16.mxu0 %v2553
        %3024 = vmatmul.mubr.bf16.gmra.mrb[0].mxu0 %v2552
        %v3025 = vpop.f32.mrb[0].mxu0
        %v3026 = vadd.f32 %v2929, %v3025
        %v3027 = vpop.f32.mrb[0].mxu0
        %v3028 = vpop.f32.mrb[0].mxu0
        %v3029 = vadd.f32 %v2932, %v3028
        %v3030 = vpop.f32.mrb[0].mxu0
        %3031 = vdwg.mxu0
        %3032 = vmatprep.subr.bf16.mxu0 0
        %3033 = vmatpush1.bf16.msra.mxu0 %v1062
        %3034 = vmatprep.subr.bf16.mxu0 0
        %3035 = vmatpush1.bf16.msra.mxu0 %v1063
        %3036 = vmatprep.subr.bf16.mxu0 0
        %3037 = vmatpush1.bf16.msra.mxu0 %v1064
        %3038 = vmatprep.subr.bf16.mxu0 0
        %3039 = vmatpush1.bf16.msra.mxu0 %v1065
        %3040 = vmatprep.subr.bf16.mxu0 0
        %3041 = vmatpush1.bf16.msra.mxu0 %v1066
        %3042 = vmatprep.subr.bf16.mxu0 0
        %3043 = vmatpush1.bf16.msra.mxu0 %v1067
        %3044 = vmatprep.subr.bf16.mxu0 0
        %3045 = vmatpush1.bf16.msra.mxu0 %v1068
        %3046 = vmatprep.subr.bf16.mxu0 0
        %3047 = vmatpush1.bf16.msra.mxu0 %v1069
        %3048 = vmatprep.subr.bf16.mxu0 0
        %3049 = vmatpush1.bf16.msra.mxu0 %v1070
        %3050 = vmatprep.subr.bf16.mxu0 0
        %3051 = vmatpush1.bf16.msra.mxu0 %v1071
        %3052 = vmatprep.subr.bf16.mxu0 0
        %3053 = vmatpush1.bf16.msra.mxu0 %v1072
        %3054 = vmatprep.subr.bf16.mxu0 0
        %3055 = vmatpush1.bf16.msra.mxu0 %v1073
        %3056 = vmatprep.subr.bf16.mxu0 0
        %3057 = vmatpush1.bf16.msra.mxu0 %v1074
        %3058 = vmatprep.subr.bf16.mxu0 0
        %3059 = vmatpush1.bf16.msra.mxu0 %v1075
        %3060 = vmatprep.subr.bf16.mxu0 0
        %3061 = vmatpush1.bf16.msra.mxu0 %v1076
        %3062 = vmatprep.subr.bf16.mxu0 0
        %3063 = vmatpush1.bf16.msra.mxu0 %v1077
        %3064 = vmatprep.mubr.bf16.mxu0 %v2331
        %3065 = vmatmul.mubr.bf16.gmra.mrb[0].mxu0 %v2330
        %v3066 = vpop.f32.mrb[0].mxu0
        %v3067 = vadd.f32 %v2970, %v3066
        %v3068 = vpop.f32.mrb[0].mxu0
        %v3069 = vpop.f32.mrb[0].mxu0
        %v3070 = vadd.f32 %v2973, %v3069
        %v3071 = vpop.f32.mrb[0].mxu0
        %3072 = vmatprep.mubr.bf16.mxu0 %v2363
        %3073 = vmatmul.mubr.bf16.gmra.mrb[0].mxu0 %v2362
        %v3074 = vpop.f32.mrb[0].mxu0
        %v3075 = vadd.f32 %v2978, %v3074
        %v3076 = vpop.f32.mrb[0].mxu0
        %v3077 = vpop.f32.mrb[0].mxu0
        %v3078 = vadd.f32 %v2981, %v3077
        %v3079 = vpop.f32.mrb[0].mxu0
        %3080 = vmatprep.mubr.bf16.mxu0 %v2395
        %3081 = vmatmul.mubr.bf16.gmra.mrb[0].mxu0 %v2394
        %v3082 = vpop.f32.mrb[0].mxu0
        %v3083 = vadd.f32 %v2986, %v3082
        %v3084 = vpop.f32.mrb[0].mxu0
        %v3085 = vpop.f32.mrb[0].mxu0
        %v3086 = vadd.f32 %v2989, %v3085
        %v3087 = vpop.f32.mrb[0].mxu0
        %3088 = vmatprep.mubr.bf16.mxu0 %v2427
        %3089 = vmatmul.mubr.bf16.gmra.mrb[0].mxu0 %v2426
        %v3090 = vpop.f32.mrb[0].mxu0
        %v3091 = vadd.f32 %v2994, %v3090
        %v3092 = vpop.f32.mrb[0].mxu0
        %v3093 = vpop.f32.mrb[0].mxu0
        %v3094 = vadd.f32 %v2997, %v3093
        %v3095 = vpop.f32.mrb[0].mxu0
        %3096 = vmatprep.mubr.bf16.mxu0 %v2459
        %3097 = vmatmul.mubr.bf16.gmra.mrb[0].mxu0 %v2458
        %v3098 = vpop.f32.mrb[0].mxu0
        %v3099 = vadd.f32 %v3002, %v3098
        %v3100 = vpop.f32.mrb[0].mxu0
        %v3101 = vpop.f32.mrb[0].mxu0
        %v3102 = vadd.f32 %v3005, %v3101
        %v3103 = vpop.f32.mrb[0].mxu0
        %3104 = vmatprep.mubr.bf16.mxu0 %v2491
        %3105 = vmatmul.mubr.bf16.gmra.mrb[0].mxu0 %v2490
        %v3106 = vpop.f32.mrb[0].mxu0
        %v3107 = vadd.f32 %v3010, %v3106
        %v3108 = vpop.f32.mrb[0].mxu0
        %v3109 = vpop.f32.mrb[0].mxu0
        %v3110 = vadd.f32 %v3013, %v3109
        %v3111 = vpop.f32.mrb[0].mxu0
        %3112 = vmatprep.mubr.bf16.mxu0 %v2523
        %3113 = vmatmul.mubr.bf16.gmra.mrb[0].mxu0 %v2522
        %v3114 = vpop.f32.mrb[0].mxu0
        %v3115 = vadd.f32 %v3018, %v3114
        %v3116 = vpop.f32.mrb[0].mxu0
        %v3117 = vpop.f32.mrb[0].mxu0
        %v3118 = vadd.f32 %v3021, %v3117
        %v3119 = vpop.f32.mrb[0].mxu0
        %3120 = vmatprep.mubr.bf16.mxu0 %v2555
        %3121 = vmatmul.mubr.bf16.gmra.mrb[0].mxu0 %v2554
        %v3122 = vpop.f32.mrb[0].mxu0
        %v3123 = vadd.f32 %v3026, %v3122
        %v3124 = vpop.f32.mrb[0].mxu0
        %v3125 = vpop.f32.mrb[0].mxu0
        %v3126 = vadd.f32 %v3029, %v3125
        %v3127 = vpop.f32.mrb[0].mxu0
        %3128 = vdwg.mxu0
        %3129 = vmatprep.subr.bf16.mxu0 0
        %3130 = vmatpush1.bf16.msra.mxu0 %v1078
        %3131 = vmatprep.subr.bf16.mxu0 0
        %3132 = vmatpush1.bf16.msra.mxu0 %v1079
        %3133 = vmatprep.subr.bf16.mxu0 0
        %3134 = vmatpush1.bf16.msra.mxu0 %v1080
        %3135 = vmatprep.subr.bf16.mxu0 0
        %3136 = vmatpush1.bf16.msra.mxu0 %v1081
        %3137 = vmatprep.subr.bf16.mxu0 0
        %3138 = vmatpush1.bf16.msra.mxu0 %v1082
        %3139 = vmatprep.subr.bf16.mxu0 0
        %3140 = vmatpush1.bf16.msra.mxu0 %v1083
        %3141 = vmatprep.subr.bf16.mxu0 0
        %3142 = vmatpush1.bf16.msra.mxu0 %v1084
        %3143 = vmatprep.subr.bf16.mxu0 0
        %3144 = vmatpush1.bf16.msra.mxu0 %v1085
        %3145 = vmatprep.subr.bf16.mxu0 0
        %3146 = vmatpush1.bf16.msra.mxu0 %v1086
        %3147 = vmatprep.subr.bf16.mxu0 0
        %3148 = vmatpush1.bf16.msra.mxu0 %v1087
        %3149 = vmatprep.subr.bf16.mxu0 0
        %3150 = vmatpush1.bf16.msra.mxu0 %v1088
        %3151 = vmatprep.subr.bf16.mxu0 0
        %3152 = vmatpush1.bf16.msra.mxu0 %v1089
        %3153 = vmatprep.subr.bf16.mxu0 0
        %3154 = vmatpush1.bf16.msra.mxu0 %v1090
        %3155 = vmatprep.subr.bf16.mxu0 0
        %3156 = vmatpush1.bf16.msra.mxu0 %v1091
        %3157 = vmatprep.subr.bf16.mxu0 0
        %3158 = vmatpush1.bf16.msra.mxu0 %v1092
        %3159 = vmatprep.subr.bf16.mxu0 0
        %3160 = vmatpush1.bf16.msra.mxu0 %v1093
        %3161 = vmatprep.mubr.bf16.mxu0 %v2333
        %3162 = vmatmul.mubr.bf16.gmra.mrb[0].mxu0 %v2332
        %v3163 = vpop.f32.mrb[0].mxu0
        %v3164 = vadd.f32 %v3067, %v3163
        %v3165 = vpop.f32.mrb[0].mxu0
        %v3166 = vpop.f32.mrb[0].mxu0
        %v3167 = vadd.f32 %v3070, %v3166
        %v3168 = vpop.f32.mrb[0].mxu0
        %3169 = vmatprep.mubr.bf16.mxu0 %v2365
        %3170 = vmatmul.mubr.bf16.gmra.mrb[0].mxu0 %v2364
        %v3171 = vpop.f32.mrb[0].mxu0
        %v3172 = vadd.f32 %v3075, %v3171
        %v3173 = vpop.f32.mrb[0].mxu0
        %v3174 = vpop.f32.mrb[0].mxu0
        %v3175 = vadd.f32 %v3078, %v3174
        %v3176 = vpop.f32.mrb[0].mxu0
        %3177 = vmatprep.mubr.bf16.mxu0 %v2397
        %3178 = vmatmul.mubr.bf16.gmra.mrb[0].mxu0 %v2396
        %v3179 = vpop.f32.mrb[0].mxu0
        %v3180 = vadd.f32 %v3083, %v3179
        %v3181 = vpop.f32.mrb[0].mxu0
        %v3182 = vpop.f32.mrb[0].mxu0
        %v3183 = vadd.f32 %v3086, %v3182
        %v3184 = vpop.f32.mrb[0].mxu0
        %3185 = vmatprep.mubr.bf16.mxu0 %v2429
        %3186 = vmatmul.mubr.bf16.gmra.mrb[0].mxu0 %v2428
        %v3187 = vpop.f32.mrb[0].mxu0
        %v3188 = vadd.f32 %v3091, %v3187
        %v3189 = vpop.f32.mrb[0].mxu0
        %v3190 = vpop.f32.mrb[0].mxu0
        %v3191 = vadd.f32 %v3094, %v3190
        %v3192 = vpop.f32.mrb[0].mxu0
        %3193 = vmatprep.mubr.bf16.mxu0 %v2461
        %3194 = vmatmul.mubr.bf16.gmra.mrb[0].mxu0 %v2460
        %v3195 = vpop.f32.mrb[0].mxu0
        %v3196 = vadd.f32 %v3099, %v3195
        %v3197 = vpop.f32.mrb[0].mxu0
        %v3198 = vpop.f32.mrb[0].mxu0
        %v3199 = vadd.f32 %v3102, %v3198
        %v3200 = vpop.f32.mrb[0].mxu0
        %3201 = vmatprep.mubr.bf16.mxu0 %v2493
        %3202 = vmatmul.mubr.bf16.gmra.mrb[0].mxu0 %v2492
        %v3203 = vpop.f32.mrb[0].mxu0
        %v3204 = vadd.f32 %v3107, %v3203
        %v3205 = vpop.f32.mrb[0].mxu0
        %v3206 = vpop.f32.mrb[0].mxu0
        %v3207 = vadd.f32 %v3110, %v3206
        %v3208 = vpop.f32.mrb[0].mxu0
        %3209 = vmatprep.mubr.bf16.mxu0 %v2525
        %3210 = vmatmul.mubr.bf16.gmra.mrb[0].mxu0 %v2524
        %v3211 = vpop.f32.mrb[0].mxu0
        %v3212 = vadd.f32 %v3115, %v3211
        %v3213 = vpop.f32.mrb[0].mxu0
        %v3214 = vpop.f32.mrb[0].mxu0
        %v3215 = vadd.f32 %v3118, %v3214
        %v3216 = vpop.f32.mrb[0].mxu0
        %3217 = vmatprep.mubr.bf16.mxu0 %v2557
        %3218 = vmatmul.mubr.bf16.gmra.mrb[0].mxu0 %v2556
        %v3219 = vpop.f32.mrb[0].mxu0
        %v3220 = vadd.f32 %v3123, %v3219
        %v3221 = vpop.f32.mrb[0].mxu0
        %v3222 = vpop.f32.mrb[0].mxu0
        %v3223 = vadd.f32 %v3126, %v3222
        %v3224 = vpop.f32.mrb[0].mxu0
        %3225 = vdwg.mxu0
        %3226 = vmatprep.subr.bf16.mxu0 0
        %3227 = vmatpush1.bf16.msra.mxu0 %v1094
        %3228 = vmatprep.subr.bf16.mxu0 0
        %3229 = vmatpush1.bf16.msra.mxu0 %v1095
        %3230 = vmatprep.subr.bf16.mxu0 0
        %3231 = vmatpush1.bf16.msra.mxu0 %v1096
        %3232 = vmatprep.subr.bf16.mxu0 0
        %3233 = vmatpush1.bf16.msra.mxu0 %v1097
        %3234 = vmatprep.subr.bf16.mxu0 0
        %3235 = vmatpush1.bf16.msra.mxu0 %v1098
        %3236 = vmatprep.subr.bf16.mxu0 0
        %3237 = vmatpush1.bf16.msra.mxu0 %v1099
        %3238 = vmatprep.subr.bf16.mxu0 0
        %3239 = vmatpush1.bf16.msra.mxu0 %v1100
        %3240 = vmatprep.subr.bf16.mxu0 0
        %3241 = vmatpush1.bf16.msra.mxu0 %v1101
        %3242 = vmatprep.subr.bf16.mxu0 0
        %3243 = vmatpush1.bf16.msra.mxu0 %v1102
        %3244 = vmatprep.subr.bf16.mxu0 0
        %3245 = vmatpush1.bf16.msra.mxu0 %v1103
        %3246 = vmatprep.subr.bf16.mxu0 0
        %3247 = vmatpush1.bf16.msra.mxu0 %v1104
        %3248 = vmatprep.subr.bf16.mxu0 0
        %3249 = vmatpush1.bf16.msra.mxu0 %v1105
        %3250 = vmatprep.subr.bf16.mxu0 0
        %3251 = vmatpush1.bf16.msra.mxu0 %v1106
        %3252 = vmatprep.subr.bf16.mxu0 0
        %3253 = vmatpush1.bf16.msra.mxu0 %v1107
        %3254 = vmatprep.subr.bf16.mxu0 0
        %3255 = vmatpush1.bf16.msra.mxu0 %v1108
        %3256 = vmatprep.subr.bf16.mxu0 0
        %3257 = vmatpush1.bf16.msra.mxu0 %v1109
        %3258 = vmatprep.mubr.bf16.mxu0 %v2335
        %3259 = vmatmul.mubr.bf16.gmra.mrb[0].mxu0 %v2334
        %v3260 = vpop.f32.mrb[0].mxu0
        %v3261 = vadd.f32 %v3164, %v3260
        %v3262 = vpop.f32.mrb[0].mxu0
        %v3263 = vpop.f32.mrb[0].mxu0
        %v3264 = vadd.f32 %v3167, %v3263
        %v3265 = vpop.f32.mrb[0].mxu0
        %3266 = vmatprep.mubr.bf16.mxu0 %v2367
        %3267 = vmatmul.mubr.bf16.gmra.mrb[0].mxu0 %v2366
        %v3268 = vpop.f32.mrb[0].mxu0
        %v3269 = vadd.f32 %v3172, %v3268
        %v3270 = vpop.f32.mrb[0].mxu0
        %v3271 = vpop.f32.mrb[0].mxu0
        %v3272 = vadd.f32 %v3175, %v3271
        %v3273 = vpop.f32.mrb[0].mxu0
        %3274 = vmatprep.mubr.bf16.mxu0 %v2399
        %3275 = vmatmul.mubr.bf16.gmra.mrb[0].mxu0 %v2398
        %v3276 = vpop.f32.mrb[0].mxu0
        %v3277 = vadd.f32 %v3180, %v3276
        %v3278 = vpop.f32.mrb[0].mxu0
        %v3279 = vpop.f32.mrb[0].mxu0
        %v3280 = vadd.f32 %v3183, %v3279
        %v3281 = vpop.f32.mrb[0].mxu0
        %3282 = vmatprep.mubr.bf16.mxu0 %v2431
        %3283 = vmatmul.mubr.bf16.gmra.mrb[0].mxu0 %v2430
        %v3284 = vpop.f32.mrb[0].mxu0
        %v3285 = vadd.f32 %v3188, %v3284
        %v3286 = vpop.f32.mrb[0].mxu0
        %v3287 = vpop.f32.mrb[0].mxu0
        %v3288 = vadd.f32 %v3191, %v3287
        %v3289 = vpop.f32.mrb[0].mxu0
        %3290 = vmatprep.mubr.bf16.mxu0 %v2463
        %3291 = vmatmul.mubr.bf16.gmra.mrb[0].mxu0 %v2462
        %v3292 = vpop.f32.mrb[0].mxu0
        %v3293 = vadd.f32 %v3196, %v3292
        %v3294 = vpop.f32.mrb[0].mxu0
        %v3295 = vpop.f32.mrb[0].mxu0
        %v3296 = vadd.f32 %v3199, %v3295
        %v3297 = vpop.f32.mrb[0].mxu0
        %3298 = vmatprep.mubr.bf16.mxu0 %v2495
        %3299 = vmatmul.mubr.bf16.gmra.mrb[0].mxu0 %v2494
        %v3300 = vpop.f32.mrb[0].mxu0
        %v3301 = vadd.f32 %v3204, %v3300
        %v3302 = vpop.f32.mrb[0].mxu0
        %v3303 = vpop.f32.mrb[0].mxu0
        %v3304 = vadd.f32 %v3207, %v3303
        %v3305 = vpop.f32.mrb[0].mxu0
        %3306 = vmatprep.mubr.bf16.mxu0 %v2527
        %3307 = vmatmul.mubr.bf16.gmra.mrb[0].mxu0 %v2526
        %v3308 = vpop.f32.mrb[0].mxu0
        %v3309 = vadd.f32 %v3212, %v3308
        %v3310 = vpop.f32.mrb[0].mxu0
        %v3311 = vpop.f32.mrb[0].mxu0
        %v3312 = vadd.f32 %v3215, %v3311
        %v3313 = vpop.f32.mrb[0].mxu0
        %3314 = vmatprep.mubr.bf16.mxu0 %v2559
        %3315 = vmatmul.mubr.bf16.gmra.mrb[0].mxu0 %v2558
        %v3316 = vpop.f32.mrb[0].mxu0
        %v3317 = vadd.f32 %v3220, %v3316
        %v3318 = vpop.f32.mrb[0].mxu0
        %v3319 = vpop.f32.mrb[0].mxu0
        %v3320 = vadd.f32 %v3223, %v3319
        %v3321 = vpop.f32.mrb[0].mxu0
        %3322 = vdwg.mxu0
        %3323 = vmatprep.subr.bf16.mxu0 0
        %3324 = vmatpush1.bf16.msra.mxu0 %v1110
        %3325 = vmatprep.subr.bf16.mxu0 0
        %3326 = vmatpush1.bf16.msra.mxu0 %v1111
        %3327 = vmatprep.subr.bf16.mxu0 0
        %3328 = vmatpush1.bf16.msra.mxu0 %v1112
        %3329 = vmatprep.subr.bf16.mxu0 0
        %3330 = vmatpush1.bf16.msra.mxu0 %v1113
        %3331 = vmatprep.subr.bf16.mxu0 0
        %3332 = vmatpush1.bf16.msra.mxu0 %v1114
        %3333 = vmatprep.subr.bf16.mxu0 0
        %3334 = vmatpush1.bf16.msra.mxu0 %v1115
        %3335 = vmatprep.subr.bf16.mxu0 0
        %3336 = vmatpush1.bf16.msra.mxu0 %v1116
        %3337 = vmatprep.subr.bf16.mxu0 0
        %3338 = vmatpush1.bf16.msra.mxu0 %v1117
        %3339 = vmatprep.subr.bf16.mxu0 0
        %3340 = vmatpush1.bf16.msra.mxu0 %v1118
        %3341 = vmatprep.subr.bf16.mxu0 0
        %3342 = vmatpush1.bf16.msra.mxu0 %v1119
        %3343 = vmatprep.subr.bf16.mxu0 0
        %3344 = vmatpush1.bf16.msra.mxu0 %v1120
        %3345 = vmatprep.subr.bf16.mxu0 0
        %3346 = vmatpush1.bf16.msra.mxu0 %v1121
        %3347 = vmatprep.subr.bf16.mxu0 0
        %3348 = vmatpush1.bf16.msra.mxu0 %v1122
        %3349 = vmatprep.subr.bf16.mxu0 0
        %3350 = vmatpush1.bf16.msra.mxu0 %v1123
        %3351 = vmatprep.subr.bf16.mxu0 0
        %3352 = vmatpush1.bf16.msra.mxu0 %v1124
        %3353 = vmatprep.subr.bf16.mxu0 0
        %3354 = vmatpush1.bf16.msra.mxu0 %v1125
        %3355 = vmatprep.mubr.bf16.mxu0 %v2337
        %3356 = vmatmul.mubr.bf16.gmra.mrb[0].mxu0 %v2336
        %v3357 = vpop.f32.mrb[0].mxu0
        %v3358 = vadd.f32 %v3261, %v3357
        %v3359 = vpop.f32.mrb[0].mxu0
        %v3360 = vpop.f32.mrb[0].mxu0
        %v3361 = vadd.f32 %v3264, %v3360
        %v3362 = vpop.f32.mrb[0].mxu0
        %3363 = vmatprep.mubr.bf16.mxu0 %v2369
        %3364 = vmatmul.mubr.bf16.gmra.mrb[0].mxu0 %v2368
        %v3365 = vpop.f32.mrb[0].mxu0
        %v3366 = vadd.f32 %v3269, %v3365
        %v3367 = vpop.f32.mrb[0].mxu0
        %v3368 = vpop.f32.mrb[0].mxu0
        %v3369 = vadd.f32 %v3272, %v3368
        %v3370 = vpop.f32.mrb[0].mxu0
        %3371 = vmatprep.mubr.bf16.mxu0 %v2401
        %3372 = vmatmul.mubr.bf16.gmra.mrb[0].mxu0 %v2400
        %v3373 = vpop.f32.mrb[0].mxu0
        %v3374 = vadd.f32 %v3277, %v3373
        %v3375 = vpop.f32.mrb[0].mxu0
        %v3376 = vpop.f32.mrb[0].mxu0
        %v3377 = vadd.f32 %v3280, %v3376
        %v3378 = vpop.f32.mrb[0].mxu0
        %3379 = vmatprep.mubr.bf16.mxu0 %v2433
        %3380 = vmatmul.mubr.bf16.gmra.mrb[0].mxu0 %v2432
        %v3381 = vpop.f32.mrb[0].mxu0
        %v3382 = vadd.f32 %v3285, %v3381
        %v3383 = vpop.f32.mrb[0].mxu0
        %v3384 = vpop.f32.mrb[0].mxu0
        %v3385 = vadd.f32 %v3288, %v3384
        %v3386 = vpop.f32.mrb[0].mxu0
        %3387 = vmatprep.mubr.bf16.mxu0 %v2465
        %3388 = vmatmul.mubr.bf16.gmra.mrb[0].mxu0 %v2464
        %v3389 = vpop.f32.mrb[0].mxu0
        %v3390 = vadd.f32 %v3293, %v3389
        %v3391 = vpop.f32.mrb[0].mxu0
        %v3392 = vpop.f32.mrb[0].mxu0
        %v3393 = vadd.f32 %v3296, %v3392
        %v3394 = vpop.f32.mrb[0].mxu0
        %3395 = vmatprep.mubr.bf16.mxu0 %v2497
        %3396 = vmatmul.mubr.bf16.gmra.mrb[0].mxu0 %v2496
        %v3397 = vpop.f32.mrb[0].mxu0
        %v3398 = vadd.f32 %v3301, %v3397
        %v3399 = vpop.f32.mrb[0].mxu0
        %v3400 = vpop.f32.mrb[0].mxu0
        %v3401 = vadd.f32 %v3304, %v3400
        %v3402 = vpop.f32.mrb[0].mxu0
        %3403 = vmatprep.mubr.bf16.mxu0 %v2529
        %3404 = vmatmul.mubr.bf16.gmra.mrb[0].mxu0 %v2528
        %v3405 = vpop.f32.mrb[0].mxu0
        %v3406 = vadd.f32 %v3309, %v3405
        %v3407 = vpop.f32.mrb[0].mxu0
        %v3408 = vpop.f32.mrb[0].mxu0
        %v3409 = vadd.f32 %v3312, %v3408
        %v3410 = vpop.f32.mrb[0].mxu0
        %3411 = vmatprep.mubr.bf16.mxu0 %v2561
        %3412 = vmatmul.mubr.bf16.gmra.mrb[0].mxu0 %v2560
        %v3413 = vpop.f32.mrb[0].mxu0
        %v3414 = vadd.f32 %v3317, %v3413
        %v3415 = vpop.f32.mrb[0].mxu0
        %v3416 = vpop.f32.mrb[0].mxu0
        %v3417 = vadd.f32 %v3320, %v3416
        %v3418 = vpop.f32.mrb[0].mxu0
        %3419 = vdwg.mxu0
        %3420 = vmatprep.subr.bf16.mxu0 0
        %3421 = vmatpush1.bf16.msra.mxu0 %v1126
        %3422 = vmatprep.subr.bf16.mxu0 0
        %3423 = vmatpush1.bf16.msra.mxu0 %v1127
        %3424 = vmatprep.subr.bf16.mxu0 0
        %3425 = vmatpush1.bf16.msra.mxu0 %v1128
        %3426 = vmatprep.subr.bf16.mxu0 0
        %3427 = vmatpush1.bf16.msra.mxu0 %v1129
        %3428 = vmatprep.subr.bf16.mxu0 0
        %3429 = vmatpush1.bf16.msra.mxu0 %v1130
        %3430 = vmatprep.subr.bf16.mxu0 0
        %3431 = vmatpush1.bf16.msra.mxu0 %v1131
        %3432 = vmatprep.subr.bf16.mxu0 0
        %3433 = vmatpush1.bf16.msra.mxu0 %v1132
        %3434 = vmatprep.subr.bf16.mxu0 0
        %3435 = vmatpush1.bf16.msra.mxu0 %v1133
        %3436 = vmatprep.subr.bf16.mxu0 0
        %3437 = vmatpush1.bf16.msra.mxu0 %v1134
        %3438 = vmatprep.subr.bf16.mxu0 0
        %3439 = vmatpush1.bf16.msra.mxu0 %v1135
        %3440 = vmatprep.subr.bf16.mxu0 0
        %3441 = vmatpush1.bf16.msra.mxu0 %v1136
        %3442 = vmatprep.subr.bf16.mxu0 0
        %3443 = vmatpush1.bf16.msra.mxu0 %v1137
        %3444 = vmatprep.subr.bf16.mxu0 0
        %3445 = vmatpush1.bf16.msra.mxu0 %v1138
        %3446 = vmatprep.subr.bf16.mxu0 0
        %3447 = vmatpush1.bf16.msra.mxu0 %v1139
        %3448 = vmatprep.subr.bf16.mxu0 0
        %3449 = vmatpush1.bf16.msra.mxu0 %v1140
        %3450 = vmatprep.subr.bf16.mxu0 0
        %3451 = vmatpush1.bf16.msra.mxu0 %v1141
        %3452 = vmatprep.mubr.bf16.mxu0 %v2339
        %3453 = vmatmul.mubr.bf16.gmra.mrb[0].mxu0 %v2338
        %v3454 = vpop.f32.mrb[0].mxu0
        %v3455 = vadd.f32 %v3358, %v3454
        %v3456 = vpop.f32.mrb[0].mxu0
        %v3457 = vpop.f32.mrb[0].mxu0
        %v3458 = vadd.f32 %v3361, %v3457
        %v3459 = vpop.f32.mrb[0].mxu0
        %3460 = vmatprep.mubr.bf16.mxu0 %v2371
        %3461 = vmatmul.mubr.bf16.gmra.mrb[0].mxu0 %v2370
        %v3462 = vpop.f32.mrb[0].mxu0
        %v3463 = vadd.f32 %v3366, %v3462
        %v3464 = vpop.f32.mrb[0].mxu0
        %v3465 = vpop.f32.mrb[0].mxu0
        %v3466 = vadd.f32 %v3369, %v3465
        %v3467 = vpop.f32.mrb[0].mxu0
        %3468 = vmatprep.mubr.bf16.mxu0 %v2403
        %3469 = vmatmul.mubr.bf16.gmra.mrb[0].mxu0 %v2402
        %v3470 = vpop.f32.mrb[0].mxu0
        %v3471 = vadd.f32 %v3374, %v3470
        %v3472 = vpop.f32.mrb[0].mxu0
        %v3473 = vpop.f32.mrb[0].mxu0
        %v3474 = vadd.f32 %v3377, %v3473
        %v3475 = vpop.f32.mrb[0].mxu0
        %3476 = vmatprep.mubr.bf16.mxu0 %v2435
        %3477 = vmatmul.mubr.bf16.gmra.mrb[0].mxu0 %v2434
        %v3478 = vpop.f32.mrb[0].mxu0
        %v3479 = vadd.f32 %v3382, %v3478
        %v3480 = vpop.f32.mrb[0].mxu0
        %v3481 = vpop.f32.mrb[0].mxu0
        %v3482 = vadd.f32 %v3385, %v3481
        %v3483 = vpop.f32.mrb[0].mxu0
        %3484 = vmatprep.mubr.bf16.mxu0 %v2467
        %3485 = vmatmul.mubr.bf16.gmra.mrb[0].mxu0 %v2466
        %v3486 = vpop.f32.mrb[0].mxu0
        %v3487 = vadd.f32 %v3390, %v3486
        %v3488 = vpop.f32.mrb[0].mxu0
        %v3489 = vpop.f32.mrb[0].mxu0
        %v3490 = vadd.f32 %v3393, %v3489
        %v3491 = vpop.f32.mrb[0].mxu0
        %3492 = vmatprep.mubr.bf16.mxu0 %v2499
        %3493 = vmatmul.mubr.bf16.gmra.mrb[0].mxu0 %v2498
        %v3494 = vpop.f32.mrb[0].mxu0
        %v3495 = vadd.f32 %v3398, %v3494
        %v3496 = vpop.f32.mrb[0].mxu0
        %v3497 = vpop.f32.mrb[0].mxu0
        %v3498 = vadd.f32 %v3401, %v3497
        %v3499 = vpop.f32.mrb[0].mxu0
        %3500 = vmatprep.mubr.bf16.mxu0 %v2531
        %3501 = vmatmul.mubr.bf16.gmra.mrb[0].mxu0 %v2530
        %v3502 = vpop.f32.mrb[0].mxu0
        %v3503 = vadd.f32 %v3406, %v3502
        %v3504 = vpop.f32.mrb[0].mxu0
        %v3505 = vpop.f32.mrb[0].mxu0
        %v3506 = vadd.f32 %v3409, %v3505
        %v3507 = vpop.f32.mrb[0].mxu0
        %3508 = vmatprep.mubr.bf16.mxu0 %v2563
        %3509 = vmatmul.mubr.bf16.gmra.mrb[0].mxu0 %v2562
        %v3510 = vpop.f32.mrb[0].mxu0
        %v3511 = vadd.f32 %v3414, %v3510
        %v3512 = vpop.f32.mrb[0].mxu0
        %v3513 = vpop.f32.mrb[0].mxu0
        %v3514 = vadd.f32 %v3417, %v3513
        %v3515 = vpop.f32.mrb[0].mxu0
        %3516 = vdwg.mxu0
        %3517 = vmatprep.subr.bf16.mxu0 0
        %3518 = vmatpush1.bf16.msra.mxu0 %v1142
        %3519 = vmatprep.subr.bf16.mxu0 0
        %3520 = vmatpush1.bf16.msra.mxu0 %v1143
        %3521 = vmatprep.subr.bf16.mxu0 0
        %3522 = vmatpush1.bf16.msra.mxu0 %v1144
        %3523 = vmatprep.subr.bf16.mxu0 0
        %3524 = vmatpush1.bf16.msra.mxu0 %v1145
        %3525 = vmatprep.subr.bf16.mxu0 0
        %3526 = vmatpush1.bf16.msra.mxu0 %v1146
        %3527 = vmatprep.subr.bf16.mxu0 0
        %3528 = vmatpush1.bf16.msra.mxu0 %v1147
        %3529 = vmatprep.subr.bf16.mxu0 0
        %3530 = vmatpush1.bf16.msra.mxu0 %v1148
        %3531 = vmatprep.subr.bf16.mxu0 0
        %3532 = vmatpush1.bf16.msra.mxu0 %v1149
        %3533 = vmatprep.subr.bf16.mxu0 0
        %3534 = vmatpush1.bf16.msra.mxu0 %v1150
        %3535 = vmatprep.subr.bf16.mxu0 0
        %3536 = vmatpush1.bf16.msra.mxu0 %v1151
        %3537 = vmatprep.subr.bf16.mxu0 0
        %3538 = vmatpush1.bf16.msra.mxu0 %v1152
        %3539 = vmatprep.subr.bf16.mxu0 0
        %3540 = vmatpush1.bf16.msra.mxu0 %v1153
        %3541 = vmatprep.subr.bf16.mxu0 0
        %3542 = vmatpush1.bf16.msra.mxu0 %v1154
        %3543 = vmatprep.subr.bf16.mxu0 0
        %3544 = vmatpush1.bf16.msra.mxu0 %v1155
        %3545 = vmatprep.subr.bf16.mxu0 0
        %3546 = vmatpush1.bf16.msra.mxu0 %v1156
        %3547 = vmatprep.subr.bf16.mxu0 0
        %3548 = vmatpush1.bf16.msra.mxu0 %v1157
        %3549 = vmatprep.mubr.bf16.mxu0 %v2341
        %3550 = vmatmul.mubr.bf16.gmra.mrb[0].mxu0 %v2340
        %v3551 = vpop.f32.mrb[0].mxu0
        %v3552 = vadd.f32 %v3455, %v3551
        %v3553 = vpop.f32.mrb[0].mxu0
        %v3554 = vpop.f32.mrb[0].mxu0
        %v3555 = vadd.f32 %v3458, %v3554
        %v3556 = vpop.f32.mrb[0].mxu0
        %3557 = vmatprep.mubr.bf16.mxu0 %v2373
        %3558 = vmatmul.mubr.bf16.gmra.mrb[0].mxu0 %v2372
        %v3559 = vpop.f32.mrb[0].mxu0
        %v3560 = vadd.f32 %v3463, %v3559
        %v3561 = vpop.f32.mrb[0].mxu0
        %v3562 = vpop.f32.mrb[0].mxu0
        %v3563 = vadd.f32 %v3466, %v3562
        %v3564 = vpop.f32.mrb[0].mxu0
        %3565 = vmatprep.mubr.bf16.mxu0 %v2405
        %3566 = vmatmul.mubr.bf16.gmra.mrb[0].mxu0 %v2404
        %v3567 = vpop.f32.mrb[0].mxu0
        %v3568 = vadd.f32 %v3471, %v3567
        %v3569 = vpop.f32.mrb[0].mxu0
        %v3570 = vpop.f32.mrb[0].mxu0
        %v3571 = vadd.f32 %v3474, %v3570
        %v3572 = vpop.f32.mrb[0].mxu0
        %3573 = vmatprep.mubr.bf16.mxu0 %v2437
        %3574 = vmatmul.mubr.bf16.gmra.mrb[0].mxu0 %v2436
        %v3575 = vpop.f32.mrb[0].mxu0
        %v3576 = vadd.f32 %v3479, %v3575
        %v3577 = vpop.f32.mrb[0].mxu0
        %v3578 = vpop.f32.mrb[0].mxu0
        %v3579 = vadd.f32 %v3482, %v3578
        %v3580 = vpop.f32.mrb[0].mxu0
        %3581 = vmatprep.mubr.bf16.mxu0 %v2469
        %3582 = vmatmul.mubr.bf16.gmra.mrb[0].mxu0 %v2468
        %v3583 = vpop.f32.mrb[0].mxu0
        %v3584 = vadd.f32 %v3487, %v3583
        %v3585 = vpop.f32.mrb[0].mxu0
        %v3586 = vpop.f32.mrb[0].mxu0
        %v3587 = vadd.f32 %v3490, %v3586
        %v3588 = vpop.f32.mrb[0].mxu0
        %3589 = vmatprep.mubr.bf16.mxu0 %v2501
        %3590 = vmatmul.mubr.bf16.gmra.mrb[0].mxu0 %v2500
        %v3591 = vpop.f32.mrb[0].mxu0
        %v3592 = vadd.f32 %v3495, %v3591
        %v3593 = vpop.f32.mrb[0].mxu0
        %v3594 = vpop.f32.mrb[0].mxu0
        %v3595 = vadd.f32 %v3498, %v3594
        %v3596 = vpop.f32.mrb[0].mxu0
        %3597 = vmatprep.mubr.bf16.mxu0 %v2533
        %3598 = vmatmul.mubr.bf16.gmra.mrb[0].mxu0 %v2532
        %v3599 = vpop.f32.mrb[0].mxu0
        %v3600 = vadd.f32 %v3503, %v3599
        %v3601 = vpop.f32.mrb[0].mxu0
        %v3602 = vpop.f32.mrb[0].mxu0
        %v3603 = vadd.f32 %v3506, %v3602
        %v3604 = vpop.f32.mrb[0].mxu0
        %3605 = vmatprep.mubr.bf16.mxu0 %v2565
        %3606 = vmatmul.mubr.bf16.gmra.mrb[0].mxu0 %v2564
        %v3607 = vpop.f32.mrb[0].mxu0
        %v3608 = vadd.f32 %v3511, %v3607
        %v3609 = vpop.f32.mrb[0].mxu0
        %v3610 = vpop.f32.mrb[0].mxu0
        %v3611 = vadd.f32 %v3514, %v3610
        %v3612 = vpop.f32.mrb[0].mxu0
        %3613 = vdwg.mxu0
        %3614 = vmatprep.subr.bf16.mxu0 0
        %3615 = vmatpush1.bf16.msra.mxu0 %v1158
        %3616 = vmatprep.subr.bf16.mxu0 0
        %3617 = vmatpush1.bf16.msra.mxu0 %v1159
        %3618 = vmatprep.subr.bf16.mxu0 0
        %3619 = vmatpush1.bf16.msra.mxu0 %v1160
        %3620 = vmatprep.subr.bf16.mxu0 0
        %3621 = vmatpush1.bf16.msra.mxu0 %v1161
        %3622 = vmatprep.subr.bf16.mxu0 0
        %3623 = vmatpush1.bf16.msra.mxu0 %v1162
        %3624 = vmatprep.subr.bf16.mxu0 0
        %3625 = vmatpush1.bf16.msra.mxu0 %v1163
        %3626 = vmatprep.subr.bf16.mxu0 0
        %3627 = vmatpush1.bf16.msra.mxu0 %v1164
        %3628 = vmatprep.subr.bf16.mxu0 0
        %3629 = vmatpush1.bf16.msra.mxu0 %v1165
        %3630 = vmatprep.subr.bf16.mxu0 0
        %3631 = vmatpush1.bf16.msra.mxu0 %v1166
        %3632 = vmatprep.subr.bf16.mxu0 0
        %3633 = vmatpush1.bf16.msra.mxu0 %v1167
        %3634 = vmatprep.subr.bf16.mxu0 0
        %3635 = vmatpush1.bf16.msra.mxu0 %v1168
        %3636 = vmatprep.subr.bf16.mxu0 0
        %3637 = vmatpush1.bf16.msra.mxu0 %v1169
        %3638 = vmatprep.subr.bf16.mxu0 0
        %3639 = vmatpush1.bf16.msra.mxu0 %v1170
        %3640 = vmatprep.subr.bf16.mxu0 0
        %3641 = vmatpush1.bf16.msra.mxu0 %v1171
        %3642 = vmatprep.subr.bf16.mxu0 0
        %3643 = vmatpush1.bf16.msra.mxu0 %v1172
        %3644 = vmatprep.subr.bf16.mxu0 0
        %3645 = vmatpush1.bf16.msra.mxu0 %v1173
        %3646 = vmatprep.mubr.bf16.mxu0 %v2343
        %3647 = vmatmul.mubr.bf16.gmra.mrb[0].mxu0 %v2342
        %v3648 = vpop.f32.mrb[0].mxu0
        %v3649 = vadd.f32 %v3552, %v3648
        %v3650 = vpop.f32.mrb[0].mxu0
        %v3651 = vpop.f32.mrb[0].mxu0
        %v3652 = vadd.f32 %v3555, %v3651
        %v3653 = vpop.f32.mrb[0].mxu0
        %3654 = vmatprep.mubr.bf16.mxu0 %v2375
        %3655 = vmatmul.mubr.bf16.gmra.mrb[0].mxu0 %v2374
        %v3656 = vpop.f32.mrb[0].mxu0
        %v3657 = vadd.f32 %v3560, %v3656
        %v3658 = vpop.f32.mrb[0].mxu0
        %v3659 = vpop.f32.mrb[0].mxu0
        %v3660 = vadd.f32 %v3563, %v3659
        %v3661 = vpop.f32.mrb[0].mxu0
        %3662 = vmatprep.mubr.bf16.mxu0 %v2407
        %3663 = vmatmul.mubr.bf16.gmra.mrb[0].mxu0 %v2406
        %v3664 = vpop.f32.mrb[0].mxu0
        %v3665 = vadd.f32 %v3568, %v3664
        %v3666 = vpop.f32.mrb[0].mxu0
        %v3667 = vpop.f32.mrb[0].mxu0
        %v3668 = vadd.f32 %v3571, %v3667
        %v3669 = vpop.f32.mrb[0].mxu0
        %3670 = vmatprep.mubr.bf16.mxu0 %v2439
        %3671 = vmatmul.mubr.bf16.gmra.mrb[0].mxu0 %v2438
        %v3672 = vpop.f32.mrb[0].mxu0
        %v3673 = vadd.f32 %v3576, %v3672
        %v3674 = vpop.f32.mrb[0].mxu0
        %v3675 = vpop.f32.mrb[0].mxu0
        %v3676 = vadd.f32 %v3579, %v3675
        %v3677 = vpop.f32.mrb[0].mxu0
        %3678 = vmatprep.mubr.bf16.mxu0 %v2471
        %3679 = vmatmul.mubr.bf16.gmra.mrb[0].mxu0 %v2470
        %v3680 = vpop.f32.mrb[0].mxu0
        %v3681 = vadd.f32 %v3584, %v3680
        %v3682 = vpop.f32.mrb[0].mxu0
        %v3683 = vpop.f32.mrb[0].mxu0
        %v3684 = vadd.f32 %v3587, %v3683
        %v3685 = vpop.f32.mrb[0].mxu0
        %3686 = vmatprep.mubr.bf16.mxu0 %v2503
        %3687 = vmatmul.mubr.bf16.gmra.mrb[0].mxu0 %v2502
        %v3688 = vpop.f32.mrb[0].mxu0
        %v3689 = vadd.f32 %v3592, %v3688
        %v3690 = vpop.f32.mrb[0].mxu0
        %v3691 = vpop.f32.mrb[0].mxu0
        %v3692 = vadd.f32 %v3595, %v3691
        %v3693 = vpop.f32.mrb[0].mxu0
        %3694 = vmatprep.mubr.bf16.mxu0 %v2535
        %3695 = vmatmul.mubr.bf16.gmra.mrb[0].mxu0 %v2534
        %v3696 = vpop.f32.mrb[0].mxu0
        %v3697 = vadd.f32 %v3600, %v3696
        %v3698 = vpop.f32.mrb[0].mxu0
        %v3699 = vpop.f32.mrb[0].mxu0
        %v3700 = vadd.f32 %v3603, %v3699
        %v3701 = vpop.f32.mrb[0].mxu0
        %3702 = vmatprep.mubr.bf16.mxu0 %v2567
        %3703 = vmatmul.mubr.bf16.gmra.mrb[0].mxu0 %v2566
        %v3704 = vpop.f32.mrb[0].mxu0
        %v3705 = vadd.f32 %v3608, %v3704
        %v3706 = vpop.f32.mrb[0].mxu0
        %v3707 = vpop.f32.mrb[0].mxu0
        %v3708 = vadd.f32 %v3611, %v3707
        %v3709 = vpop.f32.mrb[0].mxu0
        %3710 = vdwg.mxu0
        %3711 = vmatprep.subr.bf16.mxu0 0
        %3712 = vmatpush1.bf16.msra.mxu0 %v1174
        %3713 = vmatprep.subr.bf16.mxu0 0
        %3714 = vmatpush1.bf16.msra.mxu0 %v1175
        %3715 = vmatprep.subr.bf16.mxu0 0
        %3716 = vmatpush1.bf16.msra.mxu0 %v1176
        %3717 = vmatprep.subr.bf16.mxu0 0
        %3718 = vmatpush1.bf16.msra.mxu0 %v1177
        %3719 = vmatprep.subr.bf16.mxu0 0
        %3720 = vmatpush1.bf16.msra.mxu0 %v1178
        %3721 = vmatprep.subr.bf16.mxu0 0
        %3722 = vmatpush1.bf16.msra.mxu0 %v1179
        %3723 = vmatprep.subr.bf16.mxu0 0
        %3724 = vmatpush1.bf16.msra.mxu0 %v1180
        %3725 = vmatprep.subr.bf16.mxu0 0
        %3726 = vmatpush1.bf16.msra.mxu0 %v1181
        %3727 = vmatprep.subr.bf16.mxu0 0
        %3728 = vmatpush1.bf16.msra.mxu0 %v1182
        %3729 = vmatprep.subr.bf16.mxu0 0
        %3730 = vmatpush1.bf16.msra.mxu0 %v1183
        %3731 = vmatprep.subr.bf16.mxu0 0
        %3732 = vmatpush1.bf16.msra.mxu0 %v1184
        %3733 = vmatprep.subr.bf16.mxu0 0
        %3734 = vmatpush1.bf16.msra.mxu0 %v1185
        %3735 = vmatprep.subr.bf16.mxu0 0
        %3736 = vmatpush1.bf16.msra.mxu0 %v1186
        %3737 = vmatprep.subr.bf16.mxu0 0
        %3738 = vmatpush1.bf16.msra.mxu0 %v1187
        %3739 = vmatprep.subr.bf16.mxu0 0
        %3740 = vmatpush1.bf16.msra.mxu0 %v1188
        %3741 = vmatprep.subr.bf16.mxu0 0
        %3742 = vmatpush1.bf16.msra.mxu0 %v1189
        %3743 = vmatprep.mubr.bf16.mxu0 %v2345
        %3744 = vmatmul.mubr.bf16.gmra.mrb[0].mxu0 %v2344
        %v3745 = vpop.f32.mrb[0].mxu0
        %v3746 = vadd.f32 %v3649, %v3745
        %v3747 = vpop.f32.mrb[0].mxu0
        %v3748 = vpop.f32.mrb[0].mxu0
        %v3749 = vadd.f32 %v3652, %v3748
        %v3750 = vpop.f32.mrb[0].mxu0
        %3751 = vmatprep.mubr.bf16.mxu0 %v2377
        %3752 = vmatmul.mubr.bf16.gmra.mrb[0].mxu0 %v2376
        %v3753 = vpop.f32.mrb[0].mxu0
        %v3754 = vadd.f32 %v3657, %v3753
        %v3755 = vpop.f32.mrb[0].mxu0
        %v3756 = vpop.f32.mrb[0].mxu0
        %v3757 = vadd.f32 %v3660, %v3756
        %v3758 = vpop.f32.mrb[0].mxu0
        %3759 = vmatprep.mubr.bf16.mxu0 %v2409
        %3760 = vmatmul.mubr.bf16.gmra.mrb[0].mxu0 %v2408
        %v3761 = vpop.f32.mrb[0].mxu0
        %v3762 = vadd.f32 %v3665, %v3761
        %v3763 = vpop.f32.mrb[0].mxu0
        %v3764 = vpop.f32.mrb[0].mxu0
        %v3765 = vadd.f32 %v3668, %v3764
        %v3766 = vpop.f32.mrb[0].mxu0
        %3767 = vmatprep.mubr.bf16.mxu0 %v2441
        %3768 = vmatmul.mubr.bf16.gmra.mrb[0].mxu0 %v2440
        %v3769 = vpop.f32.mrb[0].mxu0
        %v3770 = vadd.f32 %v3673, %v3769
        %v3771 = vpop.f32.mrb[0].mxu0
        %v3772 = vpop.f32.mrb[0].mxu0
        %v3773 = vadd.f32 %v3676, %v3772
        %v3774 = vpop.f32.mrb[0].mxu0
        %3775 = vmatprep.mubr.bf16.mxu0 %v2473
        %3776 = vmatmul.mubr.bf16.gmra.mrb[0].mxu0 %v2472
        %v3777 = vpop.f32.mrb[0].mxu0
        %v3778 = vadd.f32 %v3681, %v3777
        %v3779 = vpop.f32.mrb[0].mxu0
        %v3780 = vpop.f32.mrb[0].mxu0
        %v3781 = vadd.f32 %v3684, %v3780
        %v3782 = vpop.f32.mrb[0].mxu0
        %3783 = vmatprep.mubr.bf16.mxu0 %v2505
        %3784 = vmatmul.mubr.bf16.gmra.mrb[0].mxu0 %v2504
        %v3785 = vpop.f32.mrb[0].mxu0
        %v3786 = vadd.f32 %v3689, %v3785
        %v3787 = vpop.f32.mrb[0].mxu0
        %v3788 = vpop.f32.mrb[0].mxu0
        %v3789 = vadd.f32 %v3692, %v3788
        %v3790 = vpop.f32.mrb[0].mxu0
        %3791 = vmatprep.mubr.bf16.mxu0 %v2537
        %3792 = vmatmul.mubr.bf16.gmra.mrb[0].mxu0 %v2536
        %v3793 = vpop.f32.mrb[0].mxu0
        %v3794 = vadd.f32 %v3697, %v3793
        %v3795 = vpop.f32.mrb[0].mxu0
        %v3796 = vpop.f32.mrb[0].mxu0
        %v3797 = vadd.f32 %v3700, %v3796
        %v3798 = vpop.f32.mrb[0].mxu0
        %3799 = vmatprep.mubr.bf16.mxu0 %v2569
        %3800 = vmatmul.mubr.bf16.gmra.mrb[0].mxu0 %v2568
        %v3801 = vpop.f32.mrb[0].mxu0
        %v3802 = vadd.f32 %v3705, %v3801
        %v3803 = vpop.f32.mrb[0].mxu0
        %v3804 = vpop.f32.mrb[0].mxu0
        %v3805 = vadd.f32 %v3708, %v3804
        %v3806 = vpop.f32.mrb[0].mxu0
        %3807 = vdwg.mxu0
        %3808 = vmatprep.subr.bf16.mxu0 0
        %3809 = vmatpush1.bf16.msra.mxu0 %v1190
        %3810 = vmatprep.subr.bf16.mxu0 0
        %3811 = vmatpush1.bf16.msra.mxu0 %v1191
        %3812 = vmatprep.subr.bf16.mxu0 0
        %3813 = vmatpush1.bf16.msra.mxu0 %v1192
        %3814 = vmatprep.subr.bf16.mxu0 0
        %3815 = vmatpush1.bf16.msra.mxu0 %v1193
        %3816 = vmatprep.subr.bf16.mxu0 0
        %3817 = vmatpush1.bf16.msra.mxu0 %v1194
        %3818 = vmatprep.subr.bf16.mxu0 0
        %3819 = vmatpush1.bf16.msra.mxu0 %v1195
        %3820 = vmatprep.subr.bf16.mxu0 0
        %3821 = vmatpush1.bf16.msra.mxu0 %v1196
        %3822 = vmatprep.subr.bf16.mxu0 0
        %3823 = vmatpush1.bf16.msra.mxu0 %v1197
        %3824 = vmatprep.subr.bf16.mxu0 0
        %3825 = vmatpush1.bf16.msra.mxu0 %v1198
        %3826 = vmatprep.subr.bf16.mxu0 0
        %3827 = vmatpush1.bf16.msra.mxu0 %v1199
        %3828 = vmatprep.subr.bf16.mxu0 0
        %3829 = vmatpush1.bf16.msra.mxu0 %v1200
        %3830 = vmatprep.subr.bf16.mxu0 0
        %3831 = vmatpush1.bf16.msra.mxu0 %v1201
        %3832 = vmatprep.subr.bf16.mxu0 0
        %3833 = vmatpush1.bf16.msra.mxu0 %v1202
        %3834 = vmatprep.subr.bf16.mxu0 0
        %3835 = vmatpush1.bf16.msra.mxu0 %v1203
        %3836 = vmatprep.subr.bf16.mxu0 0
        %3837 = vmatpush1.bf16.msra.mxu0 %v1204
        %3838 = vmatprep.subr.bf16.mxu0 0
        %3839 = vmatpush1.bf16.msra.mxu0 %v1205
        %3840 = vmatprep.mubr.bf16.mxu0 %v2347
        %3841 = vmatmul.mubr.bf16.gmra.mrb[0].mxu0 %v2346
        %v3842 = vpop.f32.mrb[0].mxu0
        %v3843 = vadd.f32 %v3746, %v3842
        %v3844 = vpop.f32.mrb[0].mxu0
        %v3845 = vpop.f32.mrb[0].mxu0
        %v3846 = vadd.f32 %v3749, %v3845
        %v3847 = vpop.f32.mrb[0].mxu0
        %3848 = vmatprep.mubr.bf16.mxu0 %v2379
        %3849 = vmatmul.mubr.bf16.gmra.mrb[0].mxu0 %v2378
        %v3850 = vpop.f32.mrb[0].mxu0
        %v3851 = vadd.f32 %v3754, %v3850
        %v3852 = vpop.f32.mrb[0].mxu0
        %v3853 = vpop.f32.mrb[0].mxu0
        %v3854 = vadd.f32 %v3757, %v3853
        %v3855 = vpop.f32.mrb[0].mxu0
        %3856 = vmatprep.mubr.bf16.mxu0 %v2411
        %3857 = vmatmul.mubr.bf16.gmra.mrb[0].mxu0 %v2410
        %v3858 = vpop.f32.mrb[0].mxu0
        %v3859 = vadd.f32 %v3762, %v3858
        %v3860 = vpop.f32.mrb[0].mxu0
        %v3861 = vpop.f32.mrb[0].mxu0
        %v3862 = vadd.f32 %v3765, %v3861
        %v3863 = vpop.f32.mrb[0].mxu0
        %3864 = vmatprep.mubr.bf16.mxu0 %v2443
        %3865 = vmatmul.mubr.bf16.gmra.mrb[0].mxu0 %v2442
        %v3866 = vpop.f32.mrb[0].mxu0
        %v3867 = vadd.f32 %v3770, %v3866
        %v3868 = vpop.f32.mrb[0].mxu0
        %v3869 = vpop.f32.mrb[0].mxu0
        %v3870 = vadd.f32 %v3773, %v3869
        %v3871 = vpop.f32.mrb[0].mxu0
        %3872 = vmatprep.mubr.bf16.mxu0 %v2475
        %3873 = vmatmul.mubr.bf16.gmra.mrb[0].mxu0 %v2474
        %v3874 = vpop.f32.mrb[0].mxu0
        %v3875 = vadd.f32 %v3778, %v3874
        %v3876 = vpop.f32.mrb[0].mxu0
        %v3877 = vpop.f32.mrb[0].mxu0
        %v3878 = vadd.f32 %v3781, %v3877
        %v3879 = vpop.f32.mrb[0].mxu0
        %3880 = vmatprep.mubr.bf16.mxu0 %v2507
        %3881 = vmatmul.mubr.bf16.gmra.mrb[0].mxu0 %v2506
        %v3882 = vpop.f32.mrb[0].mxu0
        %v3883 = vadd.f32 %v3786, %v3882
        %v3884 = vpop.f32.mrb[0].mxu0
        %v3885 = vpop.f32.mrb[0].mxu0
        %v3886 = vadd.f32 %v3789, %v3885
        %v3887 = vpop.f32.mrb[0].mxu0
        %3888 = vmatprep.mubr.bf16.mxu0 %v2539
        %3889 = vmatmul.mubr.bf16.gmra.mrb[0].mxu0 %v2538
        %v3890 = vpop.f32.mrb[0].mxu0
        %v3891 = vadd.f32 %v3794, %v3890
        %v3892 = vpop.f32.mrb[0].mxu0
        %v3893 = vpop.f32.mrb[0].mxu0
        %v3894 = vadd.f32 %v3797, %v3893
        %v3895 = vpop.f32.mrb[0].mxu0
        %3896 = vmatprep.mubr.bf16.mxu0 %v2571
        %3897 = vmatmul.mubr.bf16.gmra.mrb[0].mxu0 %v2570
        %v3898 = vpop.f32.mrb[0].mxu0
        %v3899 = vadd.f32 %v3802, %v3898
        %v3900 = vpop.f32.mrb[0].mxu0
        %v3901 = vpop.f32.mrb[0].mxu0
        %v3902 = vadd.f32 %v3805, %v3901
        %v3903 = vpop.f32.mrb[0].mxu0
        %3904 = vdwg.mxu0
        %3905 = vmatprep.subr.bf16.mxu0 0
        %3906 = vmatpush1.bf16.msra.mxu0 %v1206
        %3907 = vmatprep.subr.bf16.mxu0 0
        %3908 = vmatpush1.bf16.msra.mxu0 %v1207
        %3909 = vmatprep.subr.bf16.mxu0 0
        %3910 = vmatpush1.bf16.msra.mxu0 %v1208
        %3911 = vmatprep.subr.bf16.mxu0 0
        %3912 = vmatpush1.bf16.msra.mxu0 %v1209
        %3913 = vmatprep.subr.bf16.mxu0 0
        %3914 = vmatpush1.bf16.msra.mxu0 %v1210
        %3915 = vmatprep.subr.bf16.mxu0 0
        %3916 = vmatpush1.bf16.msra.mxu0 %v1211
        %3917 = vmatprep.subr.bf16.mxu0 0
        %3918 = vmatpush1.bf16.msra.mxu0 %v1212
        %3919 = vmatprep.subr.bf16.mxu0 0
        %3920 = vmatpush1.bf16.msra.mxu0 %v1213
        %3921 = vmatprep.subr.bf16.mxu0 0
        %3922 = vmatpush1.bf16.msra.mxu0 %v1214
        %3923 = vmatprep.subr.bf16.mxu0 0
        %3924 = vmatpush1.bf16.msra.mxu0 %v1215
        %3925 = vmatprep.subr.bf16.mxu0 0
        %3926 = vmatpush1.bf16.msra.mxu0 %v1216
        %3927 = vmatprep.subr.bf16.mxu0 0
        %3928 = vmatpush1.bf16.msra.mxu0 %v1217
        %3929 = vmatprep.subr.bf16.mxu0 0
        %3930 = vmatpush1.bf16.msra.mxu0 %v1218
        %3931 = vmatprep.subr.bf16.mxu0 0
        %3932 = vmatpush1.bf16.msra.mxu0 %v1219
        %3933 = vmatprep.subr.bf16.mxu0 0
        %3934 = vmatpush1.bf16.msra.mxu0 %v1220
        %3935 = vmatprep.subr.bf16.mxu0 0
        %3936 = vmatpush1.bf16.msra.mxu0 %v1221
        %3937 = vmatprep.mubr.bf16.mxu0 %v2349
        %3938 = vmatmul.mubr.bf16.gmra.mrb[0].mxu0 %v2348
        %v3939 = vpop.f32.mrb[0].mxu0
        %v3940 = vadd.f32 %v3843, %v3939
        %v3941 = vpop.f32.mrb[0].mxu0
        %v3942 = vpop.f32.mrb[0].mxu0
        %v3943 = vadd.f32 %v3846, %v3942
        %v3944 = vpop.f32.mrb[0].mxu0
        %3945 = vmatprep.mubr.bf16.mxu0 %v2381
        %3946 = vmatmul.mubr.bf16.gmra.mrb[0].mxu0 %v2380
        %v3947 = vpop.f32.mrb[0].mxu0
        %v3948 = vadd.f32 %v3851, %v3947
        %v3949 = vpop.f32.mrb[0].mxu0
        %v3950 = vpop.f32.mrb[0].mxu0
        %v3951 = vadd.f32 %v3854, %v3950
        %v3952 = vpop.f32.mrb[0].mxu0
        %3953 = vmatprep.mubr.bf16.mxu0 %v2413
        %3954 = vmatmul.mubr.bf16.gmra.mrb[0].mxu0 %v2412
        %v3955 = vpop.f32.mrb[0].mxu0
        %v3956 = vadd.f32 %v3859, %v3955
        %v3957 = vpop.f32.mrb[0].mxu0
        %v3958 = vpop.f32.mrb[0].mxu0
        %v3959 = vadd.f32 %v3862, %v3958
        %v3960 = vpop.f32.mrb[0].mxu0
        %3961 = vmatprep.mubr.bf16.mxu0 %v2445
        %3962 = vmatmul.mubr.bf16.gmra.mrb[0].mxu0 %v2444
        %v3963 = vpop.f32.mrb[0].mxu0
        %v3964 = vadd.f32 %v3867, %v3963
        %v3965 = vpop.f32.mrb[0].mxu0
        %v3966 = vpop.f32.mrb[0].mxu0
        %v3967 = vadd.f32 %v3870, %v3966
        %v3968 = vpop.f32.mrb[0].mxu0
        %3969 = vmatprep.mubr.bf16.mxu0 %v2477
        %3970 = vmatmul.mubr.bf16.gmra.mrb[0].mxu0 %v2476
        %v3971 = vpop.f32.mrb[0].mxu0
        %v3972 = vadd.f32 %v3875, %v3971
        %v3973 = vpop.f32.mrb[0].mxu0
        %v3974 = vpop.f32.mrb[0].mxu0
        %v3975 = vadd.f32 %v3878, %v3974
        %v3976 = vpop.f32.mrb[0].mxu0
        %3977 = vmatprep.mubr.bf16.mxu0 %v2509
        %3978 = vmatmul.mubr.bf16.gmra.mrb[0].mxu0 %v2508
        %v3979 = vpop.f32.mrb[0].mxu0
        %v3980 = vadd.f32 %v3883, %v3979
        %v3981 = vpop.f32.mrb[0].mxu0
        %v3982 = vpop.f32.mrb[0].mxu0
        %v3983 = vadd.f32 %v3886, %v3982
        %v3984 = vpop.f32.mrb[0].mxu0
        %3985 = vmatprep.mubr.bf16.mxu0 %v2541
        %3986 = vmatmul.mubr.bf16.gmra.mrb[0].mxu0 %v2540
        %v3987 = vpop.f32.mrb[0].mxu0
        %v3988 = vadd.f32 %v3891, %v3987
        %v3989 = vpop.f32.mrb[0].mxu0
        %v3990 = vpop.f32.mrb[0].mxu0
        %v3991 = vadd.f32 %v3894, %v3990
        %v3992 = vpop.f32.mrb[0].mxu0
        %3993 = vmatprep.mubr.bf16.mxu0 %v2573
        %3994 = vmatmul.mubr.bf16.gmra.mrb[0].mxu0 %v2572
        %v3995 = vpop.f32.mrb[0].mxu0
        %v3996 = vadd.f32 %v3899, %v3995
        %v3997 = vpop.f32.mrb[0].mxu0
        %v3998 = vpop.f32.mrb[0].mxu0
        %v3999 = vadd.f32 %v3902, %v3998
        %v4000 = vpop.f32.mrb[0].mxu0
        %4001 = vdwg.mxu0
        %4002 = vmatprep.subr.bf16.mxu0 0
        %4003 = vmatpush1.bf16.msra.mxu0 %v1222
        %4004 = vmatprep.subr.bf16.mxu0 0
        %4005 = vmatpush1.bf16.msra.mxu0 %v1223
        %4006 = vmatprep.subr.bf16.mxu0 0
        %4007 = vmatpush1.bf16.msra.mxu0 %v1224
        %4008 = vmatprep.subr.bf16.mxu0 0
        %4009 = vmatpush1.bf16.msra.mxu0 %v1225
        %4010 = vmatprep.subr.bf16.mxu0 0
        %4011 = vmatpush1.bf16.msra.mxu0 %v1226
        %4012 = vmatprep.subr.bf16.mxu0 0
        %4013 = vmatpush1.bf16.msra.mxu0 %v1227
        %4014 = vmatprep.subr.bf16.mxu0 0
        %4015 = vmatpush1.bf16.msra.mxu0 %v1228
        %4016 = vmatprep.subr.bf16.mxu0 0
        %4017 = vmatpush1.bf16.msra.mxu0 %v1229
        %4018 = vmatprep.subr.bf16.mxu0 0
        %4019 = vmatpush1.bf16.msra.mxu0 %v1230
        %4020 = vmatprep.subr.bf16.mxu0 0
        %4021 = vmatpush1.bf16.msra.mxu0 %v1231
        %4022 = vmatprep.subr.bf16.mxu0 0
        %4023 = vmatpush1.bf16.msra.mxu0 %v1232
        %4024 = vmatprep.subr.bf16.mxu0 0
        %4025 = vmatpush1.bf16.msra.mxu0 %v1233
        %4026 = vmatprep.subr.bf16.mxu0 0
        %4027 = vmatpush1.bf16.msra.mxu0 %v1234
        %4028 = vmatprep.subr.bf16.mxu0 0
        %4029 = vmatpush1.bf16.msra.mxu0 %v1235
        %4030 = vmatprep.subr.bf16.mxu0 0
        %4031 = vmatpush1.bf16.msra.mxu0 %v1236
        %4032 = vmatprep.subr.bf16.mxu0 0
        %4033 = vmatpush1.bf16.msra.mxu0 %v1237
        %4034 = vmatprep.mubr.bf16.mxu0 %v2351
        %4035 = vmatmul.mubr.bf16.gmra.mrb[0].mxu0 %v2350
        %v4036 = vpop.f32.mrb[0].mxu0
        %v4037 = vadd.f32 %v3940, %v4036
        %v4038 = vpop.f32.mrb[0].mxu0
        %v4039 = vpop.f32.mrb[0].mxu0
        %v4040 = vadd.f32 %v3943, %v4039
        %v4041 = vpop.f32.mrb[0].mxu0
        %4042 = vmatprep.mubr.bf16.mxu0 %v2383
        %4043 = vmatmul.mubr.bf16.gmra.mrb[0].mxu0 %v2382
        %v4044 = vpop.f32.mrb[0].mxu0
        %v4045 = vadd.f32 %v3948, %v4044
        %v4046 = vpop.f32.mrb[0].mxu0
        %v4047 = vpop.f32.mrb[0].mxu0
        %v4048 = vadd.f32 %v3951, %v4047
        %v4049 = vpop.f32.mrb[0].mxu0
        %4050 = vmatprep.mubr.bf16.mxu0 %v2415
        %4051 = vmatmul.mubr.bf16.gmra.mrb[0].mxu0 %v2414
        %v4052 = vpop.f32.mrb[0].mxu0
        %v4053 = vadd.f32 %v3956, %v4052
        %v4054 = vpop.f32.mrb[0].mxu0
        %v4055 = vpop.f32.mrb[0].mxu0
        %v4056 = vadd.f32 %v3959, %v4055
        %v4057 = vpop.f32.mrb[0].mxu0
        %4058 = vmatprep.mubr.bf16.mxu0 %v2447
        %4059 = vmatmul.mubr.bf16.gmra.mrb[0].mxu0 %v2446
        %v4060 = vpop.f32.mrb[0].mxu0
        %v4061 = vadd.f32 %v3964, %v4060
        %v4062 = vpop.f32.mrb[0].mxu0
        %v4063 = vpop.f32.mrb[0].mxu0
        %v4064 = vadd.f32 %v3967, %v4063
        %v4065 = vpop.f32.mrb[0].mxu0
        %4066 = vmatprep.mubr.bf16.mxu0 %v2479
        %4067 = vmatmul.mubr.bf16.gmra.mrb[0].mxu0 %v2478
        %v4068 = vpop.f32.mrb[0].mxu0
        %v4069 = vadd.f32 %v3972, %v4068
        %v4070 = vpop.f32.mrb[0].mxu0
        %v4071 = vpop.f32.mrb[0].mxu0
        %v4072 = vadd.f32 %v3975, %v4071
        %v4073 = vpop.f32.mrb[0].mxu0
        %4074 = vmatprep.mubr.bf16.mxu0 %v2511
        %4075 = vmatmul.mubr.bf16.gmra.mrb[0].mxu0 %v2510
        %v4076 = vpop.f32.mrb[0].mxu0
        %v4077 = vadd.f32 %v3980, %v4076
        %v4078 = vpop.f32.mrb[0].mxu0
        %v4079 = vpop.f32.mrb[0].mxu0
        %v4080 = vadd.f32 %v3983, %v4079
        %v4081 = vpop.f32.mrb[0].mxu0
        %4082 = vmatprep.mubr.bf16.mxu0 %v2543
        %4083 = vmatmul.mubr.bf16.gmra.mrb[0].mxu0 %v2542
        %v4084 = vpop.f32.mrb[0].mxu0
        %v4085 = vadd.f32 %v3988, %v4084
        %v4086 = vpop.f32.mrb[0].mxu0
        %v4087 = vpop.f32.mrb[0].mxu0
        %v4088 = vadd.f32 %v3991, %v4087
        %v4089 = vpop.f32.mrb[0].mxu0
        %4090 = vmatprep.mubr.bf16.mxu0 %v2575
        %4091 = vmatmul.mubr.bf16.gmra.mrb[0].mxu0 %v2574
        %v4092 = vpop.f32.mrb[0].mxu0
        %v4093 = vadd.f32 %v3996, %v4092
        %v4094 = vpop.f32.mrb[0].mxu0
        %v4095 = vpop.f32.mrb[0].mxu0
        %v4096 = vadd.f32 %v3999, %v4095
        %v4097 = vpop.f32.mrb[0].mxu0
        %4098 = vdwg.mxu0
        %4099 = vmatprep.subr.bf16.mxu0 0
        %4100 = vmatpush1.bf16.msra.mxu0 %v1238
        %4101 = vmatprep.subr.bf16.mxu0 0
        %4102 = vmatpush1.bf16.msra.mxu0 %v1239
        %4103 = vmatprep.subr.bf16.mxu0 0
        %4104 = vmatpush1.bf16.msra.mxu0 %v1240
        %4105 = vmatprep.subr.bf16.mxu0 0
        %4106 = vmatpush1.bf16.msra.mxu0 %v1241
        %4107 = vmatprep.subr.bf16.mxu0 0
        %4108 = vmatpush1.bf16.msra.mxu0 %v1242
        %4109 = vmatprep.subr.bf16.mxu0 0
        %4110 = vmatpush1.bf16.msra.mxu0 %v1243
        %4111 = vmatprep.subr.bf16.mxu0 0
        %4112 = vmatpush1.bf16.msra.mxu0 %v1244
        %4113 = vmatprep.subr.bf16.mxu0 0
        %4114 = vmatpush1.bf16.msra.mxu0 %v1245
        %4115 = vmatprep.subr.bf16.mxu0 0
        %4116 = vmatpush1.bf16.msra.mxu0 %v1246
        %4117 = vmatprep.subr.bf16.mxu0 0
        %4118 = vmatpush1.bf16.msra.mxu0 %v1247
        %4119 = vmatprep.subr.bf16.mxu0 0
        %4120 = vmatpush1.bf16.msra.mxu0 %v1248
        %4121 = vmatprep.subr.bf16.mxu0 0
        %4122 = vmatpush1.bf16.msra.mxu0 %v1249
        %4123 = vmatprep.subr.bf16.mxu0 0
        %4124 = vmatpush1.bf16.msra.mxu0 %v1250
        %4125 = vmatprep.subr.bf16.mxu0 0
        %4126 = vmatpush1.bf16.msra.mxu0 %v1251
        %4127 = vmatprep.subr.bf16.mxu0 0
        %4128 = vmatpush1.bf16.msra.mxu0 %v1252
        %4129 = vmatprep.subr.bf16.mxu0 0
        %4130 = vmatpush1.bf16.msra.mxu0 %v1253
        %4131 = vmatprep.mubr.bf16.mxu0 %v2353
        %4132 = vmatmul.mubr.bf16.gmra.mrb[0].mxu0 %v2352
        %v4133 = vpop.f32.mrb[0].mxu0
        %v4134 = vadd.f32 %v4037, %v4133
        %v4135 = vpop.f32.mrb[0].mxu0
        %v4136 = vpop.f32.mrb[0].mxu0
        %v4137 = vadd.f32 %v4040, %v4136
        %v4138 = vpop.f32.mrb[0].mxu0
        %4139 = vmatprep.mubr.bf16.mxu0 %v2385
        %4140 = vmatmul.mubr.bf16.gmra.mrb[0].mxu0 %v2384
        %v4141 = vpop.f32.mrb[0].mxu0
        %v4142 = vadd.f32 %v4045, %v4141
        %v4143 = vpop.f32.mrb[0].mxu0
        %v4144 = vpop.f32.mrb[0].mxu0
        %v4145 = vadd.f32 %v4048, %v4144
        %v4146 = vpop.f32.mrb[0].mxu0
        %4147 = vmatprep.mubr.bf16.mxu0 %v2417
        %4148 = vmatmul.mubr.bf16.gmra.mrb[0].mxu0 %v2416
        %v4149 = vpop.f32.mrb[0].mxu0
        %v4150 = vadd.f32 %v4053, %v4149
        %v4151 = vpop.f32.mrb[0].mxu0
        %v4152 = vpop.f32.mrb[0].mxu0
        %v4153 = vadd.f32 %v4056, %v4152
        %v4154 = vpop.f32.mrb[0].mxu0
        %4155 = vmatprep.mubr.bf16.mxu0 %v2449
        %4156 = vmatmul.mubr.bf16.gmra.mrb[0].mxu0 %v2448
        %v4157 = vpop.f32.mrb[0].mxu0
        %v4158 = vadd.f32 %v4061, %v4157
        %v4159 = vpop.f32.mrb[0].mxu0
        %v4160 = vpop.f32.mrb[0].mxu0
        %v4161 = vadd.f32 %v4064, %v4160
        %v4162 = vpop.f32.mrb[0].mxu0
        %4163 = vmatprep.mubr.bf16.mxu0 %v2481
        %4164 = vmatmul.mubr.bf16.gmra.mrb[0].mxu0 %v2480
        %v4165 = vpop.f32.mrb[0].mxu0
        %v4166 = vadd.f32 %v4069, %v4165
        %v4167 = vpop.f32.mrb[0].mxu0
        %v4168 = vpop.f32.mrb[0].mxu0
        %v4169 = vadd.f32 %v4072, %v4168
        %v4170 = vpop.f32.mrb[0].mxu0
        %4171 = vmatprep.mubr.bf16.mxu0 %v2513
        %4172 = vmatmul.mubr.bf16.gmra.mrb[0].mxu0 %v2512
        %v4173 = vpop.f32.mrb[0].mxu0
        %v4174 = vadd.f32 %v4077, %v4173
        %v4175 = vpop.f32.mrb[0].mxu0
        %v4176 = vpop.f32.mrb[0].mxu0
        %v4177 = vadd.f32 %v4080, %v4176
        %v4178 = vpop.f32.mrb[0].mxu0
        %4179 = vmatprep.mubr.bf16.mxu0 %v2545
        %4180 = vmatmul.mubr.bf16.gmra.mrb[0].mxu0 %v2544
        %v4181 = vpop.f32.mrb[0].mxu0
        %v4182 = vadd.f32 %v4085, %v4181
        %v4183 = vpop.f32.mrb[0].mxu0
        %v4184 = vpop.f32.mrb[0].mxu0
        %v4185 = vadd.f32 %v4088, %v4184
        %v4186 = vpop.f32.mrb[0].mxu0
        %4187 = vmatprep.mubr.bf16.mxu0 %v2577
        %4188 = vmatmul.mubr.bf16.gmra.mrb[0].mxu0 %v2576
        %v4189 = vpop.f32.mrb[0].mxu0
        %v4190 = vadd.f32 %v4093, %v4189
        %v4191 = vpop.f32.mrb[0].mxu0
        %v4192 = vpop.f32.mrb[0].mxu0
        %v4193 = vadd.f32 %v4096, %v4192
        %v4194 = vpop.f32.mrb[0].mxu0
        %4195 = vdwg.mxu0
        %4196 = vmatprep.subr.bf16.mxu0 0
        %4197 = vmatpush1.bf16.msra.mxu0 %v1254
        %4198 = vmatprep.subr.bf16.mxu0 0
        %4199 = vmatpush1.bf16.msra.mxu0 %v1255
        %4200 = vmatprep.subr.bf16.mxu0 0
        %4201 = vmatpush1.bf16.msra.mxu0 %v1256
        %4202 = vmatprep.subr.bf16.mxu0 0
        %4203 = vmatpush1.bf16.msra.mxu0 %v1257
        %4204 = vmatprep.subr.bf16.mxu0 0
        %4205 = vmatpush1.bf16.msra.mxu0 %v1258
        %4206 = vmatprep.subr.bf16.mxu0 0
        %4207 = vmatpush1.bf16.msra.mxu0 %v1259
        %4208 = vmatprep.subr.bf16.mxu0 0
        %4209 = vmatpush1.bf16.msra.mxu0 %v1260
        %4210 = vmatprep.subr.bf16.mxu0 0
        %4211 = vmatpush1.bf16.msra.mxu0 %v1261
        %4212 = vmatprep.subr.bf16.mxu0 0
        %4213 = vmatpush1.bf16.msra.mxu0 %v1262
        %4214 = vmatprep.subr.bf16.mxu0 0
        %4215 = vmatpush1.bf16.msra.mxu0 %v1263
        %4216 = vmatprep.subr.bf16.mxu0 0
        %4217 = vmatpush1.bf16.msra.mxu0 %v1264
        %4218 = vmatprep.subr.bf16.mxu0 0
        %4219 = vmatpush1.bf16.msra.mxu0 %v1265
        %4220 = vmatprep.subr.bf16.mxu0 0
        %4221 = vmatpush1.bf16.msra.mxu0 %v1266
        %4222 = vmatprep.subr.bf16.mxu0 0
        %4223 = vmatpush1.bf16.msra.mxu0 %v1267
        %4224 = vmatprep.subr.bf16.mxu0 0
        %4225 = vmatpush1.bf16.msra.mxu0 %v1268
        %4226 = vmatprep.subr.bf16.mxu0 0
        %4227 = vmatpush1.bf16.msra.mxu0 %v1269
        %4228 = vmatprep.mubr.bf16.mxu0 %v2355
        %4229 = vmatmul.mubr.bf16.gmra.mrb[0].mxu0 %v2354
        %v4230 = vpop.f32.mrb[0].mxu0
        %v4231 = vadd.f32 %v4134, %v4230
        %v4232 = vpop.f32.mrb[0].mxu0
        %v4233 = vpop.f32.mrb[0].mxu0
        %v4234 = vadd.f32 %v4137, %v4233
        %v4235 = vpop.f32.mrb[0].mxu0
        %4236 = vmatprep.mubr.bf16.mxu0 %v2387
        %4237 = vmatmul.mubr.bf16.gmra.mrb[0].mxu0 %v2386
        %v4238 = vpop.f32.mrb[0].mxu0
        %v4239 = vadd.f32 %v4142, %v4238
        %v4240 = vpop.f32.mrb[0].mxu0
        %v4241 = vpop.f32.mrb[0].mxu0
        %v4242 = vadd.f32 %v4145, %v4241
        %v4243 = vpop.f32.mrb[0].mxu0
        %4244 = vmatprep.mubr.bf16.mxu0 %v2419
        %4245 = vmatmul.mubr.bf16.gmra.mrb[0].mxu0 %v2418
        %v4246 = vpop.f32.mrb[0].mxu0
        %v4247 = vadd.f32 %v4150, %v4246
        %v4248 = vpop.f32.mrb[0].mxu0
        %v4249 = vpop.f32.mrb[0].mxu0
        %v4250 = vadd.f32 %v4153, %v4249
        %v4251 = vpop.f32.mrb[0].mxu0
        %4252 = vmatprep.mubr.bf16.mxu0 %v2451
        %4253 = vmatmul.mubr.bf16.gmra.mrb[0].mxu0 %v2450
        %v4254 = vpop.f32.mrb[0].mxu0
        %v4255 = vadd.f32 %v4158, %v4254
        %v4256 = vpop.f32.mrb[0].mxu0
        %v4257 = vpop.f32.mrb[0].mxu0
        %v4258 = vadd.f32 %v4161, %v4257
        %v4259 = vpop.f32.mrb[0].mxu0
        %4260 = vmatprep.mubr.bf16.mxu0 %v2483
        %4261 = vmatmul.mubr.bf16.gmra.mrb[0].mxu0 %v2482
        %v4262 = vpop.f32.mrb[0].mxu0
        %v4263 = vadd.f32 %v4166, %v4262
        %v4264 = vpop.f32.mrb[0].mxu0
        %v4265 = vpop.f32.mrb[0].mxu0
        %v4266 = vadd.f32 %v4169, %v4265
        %v4267 = vpop.f32.mrb[0].mxu0
        %4268 = vmatprep.mubr.bf16.mxu0 %v2515
        %4269 = vmatmul.mubr.bf16.gmra.mrb[0].mxu0 %v2514
        %v4270 = vpop.f32.mrb[0].mxu0
        %v4271 = vadd.f32 %v4174, %v4270
        %v4272 = vpop.f32.mrb[0].mxu0
        %v4273 = vpop.f32.mrb[0].mxu0
        %v4274 = vadd.f32 %v4177, %v4273
        %v4275 = vpop.f32.mrb[0].mxu0
        %4276 = vmatprep.mubr.bf16.mxu0 %v2547
        %4277 = vmatmul.mubr.bf16.gmra.mrb[0].mxu0 %v2546
        %v4278 = vpop.f32.mrb[0].mxu0
        %v4279 = vadd.f32 %v4182, %v4278
        %v4280 = vpop.f32.mrb[0].mxu0
        %v4281 = vpop.f32.mrb[0].mxu0
        %v4282 = vadd.f32 %v4185, %v4281
        %v4283 = vpop.f32.mrb[0].mxu0
        %4284 = vmatprep.mubr.bf16.mxu0 %v2579
        %4285 = vmatmul.mubr.bf16.gmra.mrb[0].mxu0 %v2578
        %v4286 = vpop.f32.mrb[0].mxu0
        %v4287 = vadd.f32 %v4190, %v4286
        %v4288 = vpop.f32.mrb[0].mxu0
        %v4289 = vpop.f32.mrb[0].mxu0
        %v4290 = vadd.f32 %v4193, %v4289
        %v4291 = vpop.f32.mrb[0].mxu0
        %4292 = vdwg.mxu0
        %4293 = vmatprep.subr.bf16.mxu0 0
        %4294 = vmatpush1.bf16.msra.mxu0 %v1270
        %4295 = vmatprep.subr.bf16.mxu0 0
        %4296 = vmatpush1.bf16.msra.mxu0 %v1271
        %4297 = vmatprep.subr.bf16.mxu0 0
        %4298 = vmatpush1.bf16.msra.mxu0 %v1272
        %4299 = vmatprep.subr.bf16.mxu0 0
        %4300 = vmatpush1.bf16.msra.mxu0 %v1273
        %4301 = vmatprep.subr.bf16.mxu0 0
        %4302 = vmatpush1.bf16.msra.mxu0 %v1274
        %4303 = vmatprep.subr.bf16.mxu0 0
        %4304 = vmatpush1.bf16.msra.mxu0 %v1275
        %4305 = vmatprep.subr.bf16.mxu0 0
        %4306 = vmatpush1.bf16.msra.mxu0 %v1276
        %4307 = vmatprep.subr.bf16.mxu0 0
        %4308 = vmatpush1.bf16.msra.mxu0 %v1277
        %4309 = vmatprep.subr.bf16.mxu0 0
        %4310 = vmatpush1.bf16.msra.mxu0 %v1278
        %4311 = vmatprep.subr.bf16.mxu0 0
        %4312 = vmatpush1.bf16.msra.mxu0 %v1279
        %4313 = vmatprep.subr.bf16.mxu0 0
        %4314 = vmatpush1.bf16.msra.mxu0 %v1280
        %4315 = vmatprep.subr.bf16.mxu0 0
        %4316 = vmatpush1.bf16.msra.mxu0 %v1281
        %4317 = vmatprep.subr.bf16.mxu0 0
        %4318 = vmatpush1.bf16.msra.mxu0 %v1282
        %4319 = vmatprep.subr.bf16.mxu0 0
        %4320 = vmatpush1.bf16.msra.mxu0 %v1283
        %4321 = vmatprep.subr.bf16.mxu0 0
        %4322 = vmatpush1.bf16.msra.mxu0 %v1284
        %4323 = vmatprep.subr.bf16.mxu0 0
        %4324 = vmatpush1.bf16.msra.mxu0 %v1285
        %4325 = vmatprep.mubr.bf16.mxu0 %v2357
        %4326 = vmatmul.mubr.bf16.gmra.mrb[0].mxu0 %v2356
        %v4327 = vpop.f32.mrb[0].mxu0
        %v4328 = vadd.f32 %v4231, %v4327
        %v4329 = vpop.f32.mrb[0].mxu0
        %v4330 = vpop.f32.mrb[0].mxu0
        %v4331 = vadd.f32 %v4234, %v4330
        %v4332 = vpop.f32.mrb[0].mxu0
        %4333 = vmatprep.mubr.bf16.mxu0 %v2389
        %4334 = vmatmul.mubr.bf16.gmra.mrb[0].mxu0 %v2388
        %v4335 = vpop.f32.mrb[0].mxu0
        %v4336 = vadd.f32 %v4239, %v4335
        %v4337 = vpop.f32.mrb[0].mxu0
        %v4338 = vpop.f32.mrb[0].mxu0
        %v4339 = vadd.f32 %v4242, %v4338
        %v4340 = vpop.f32.mrb[0].mxu0
        %4341 = vmatprep.mubr.bf16.mxu0 %v2421
        %4342 = vmatmul.mubr.bf16.gmra.mrb[0].mxu0 %v2420
        %v4343 = vpop.f32.mrb[0].mxu0
        %v4344 = vadd.f32 %v4247, %v4343
        %v4345 = vpop.f32.mrb[0].mxu0
        %v4346 = vpop.f32.mrb[0].mxu0
        %v4347 = vadd.f32 %v4250, %v4346
        %v4348 = vpop.f32.mrb[0].mxu0
        %4349 = vmatprep.mubr.bf16.mxu0 %v2453
        %4350 = vmatmul.mubr.bf16.gmra.mrb[0].mxu0 %v2452
        %v4351 = vpop.f32.mrb[0].mxu0
        %v4352 = vadd.f32 %v4255, %v4351
        %v4353 = vpop.f32.mrb[0].mxu0
        %v4354 = vpop.f32.mrb[0].mxu0
        %v4355 = vadd.f32 %v4258, %v4354
        %v4356 = vpop.f32.mrb[0].mxu0
        %4357 = vmatprep.mubr.bf16.mxu0 %v2485
        %4358 = vmatmul.mubr.bf16.gmra.mrb[0].mxu0 %v2484
        %v4359 = vpop.f32.mrb[0].mxu0
        %v4360 = vadd.f32 %v4263, %v4359
        %v4361 = vpop.f32.mrb[0].mxu0
        %v4362 = vpop.f32.mrb[0].mxu0
        %v4363 = vadd.f32 %v4266, %v4362
        %v4364 = vpop.f32.mrb[0].mxu0
        %4365 = vmatprep.mubr.bf16.mxu0 %v2517
        %4366 = vmatmul.mubr.bf16.gmra.mrb[0].mxu0 %v2516
        %v4367 = vpop.f32.mrb[0].mxu0
        %v4368 = vadd.f32 %v4271, %v4367
        %v4369 = vpop.f32.mrb[0].mxu0
        %v4370 = vpop.f32.mrb[0].mxu0
        %v4371 = vadd.f32 %v4274, %v4370
        %v4372 = vpop.f32.mrb[0].mxu0
        %4373 = vmatprep.mubr.bf16.mxu0 %v2549
        %4374 = vmatmul.mubr.bf16.gmra.mrb[0].mxu0 %v2548
        %v4375 = vpop.f32.mrb[0].mxu0
        %v4376 = vadd.f32 %v4279, %v4375
        %v4377 = vpop.f32.mrb[0].mxu0
        %v4378 = vpop.f32.mrb[0].mxu0
        %v4379 = vadd.f32 %v4282, %v4378
        %v4380 = vpop.f32.mrb[0].mxu0
        %4381 = vmatprep.mubr.bf16.mxu0 %v2581
        %4382 = vmatmul.mubr.bf16.gmra.mrb[0].mxu0 %v2580
        %v4383 = vpop.f32.mrb[0].mxu0
        %v4384 = vadd.f32 %v4287, %v4383
        %v4385 = vpop.f32.mrb[0].mxu0
        %v4386 = vpop.f32.mrb[0].mxu0
        %v4387 = vadd.f32 %v4290, %v4386
        %v4388 = vpop.f32.mrb[0].mxu0
        %4389 = vdwg.mxu0
        %v4390 = vadd.f32 %v1286, %v4328
        %v4391 = vadd.f32 %v1287, %v4331
        %v4392 = vadd.f32 %v1288, %v4336
        %v4393 = vadd.f32 %v1289, %v4339
        %v4394 = vadd.f32 %v1290, %v4344
        %v4395 = vadd.f32 %v1291, %v4347
        %v4396 = vadd.f32 %v1292, %v4352
        %v4397 = vadd.f32 %v1293, %v4355
        %v4398 = vadd.f32 %v1294, %v4360
        %v4399 = vadd.f32 %v1295, %v4363
        %v4400 = vadd.f32 %v1296, %v4368
        %v4401 = vadd.f32 %v1297, %v4371
        %v4402 = vadd.f32 %v1298, %v4376
        %v4403 = vadd.f32 %v1299, %v4379
        %v4404 = vadd.f32 %v1300, %v4384
        %v4405 = vadd.f32 %v1301, %v4387
        %4406 = vst [vmem:[#allocation2] sm:$0xff] %v4390
        %4407 = vst [vmem:[#allocation2 + $0x8] sm:$0xff] %v4391
        %4408 = vst [vmem:[#allocation2 + $0x10] sm:$0xff] %v4392
        %4409 = vst [vmem:[#allocation2 + $0x18] sm:$0xff] %v4393
        %4410 = vst [vmem:[#allocation2 + $0x20] sm:$0xff] %v4394
        %4411 = vst [vmem:[#allocation2 + $0x28] sm:$0xff] %v4395
        %4412 = vst [vmem:[#allocation2 + $0x30] sm:$0xff] %v4396
        %4413 = vst [vmem:[#allocation2 + $0x38] sm:$0xff] %v4397
        %4414 = vst [vmem:[#allocation2 + $0x40] sm:$0xff] %v4398
        %4415 = vst [vmem:[#allocation2 + $0x48] sm:$0xff] %v4399
        %4416 = vst [vmem:[#allocation2 + $0x50] sm:$0xff] %v4400
        %4417 = vst [vmem:[#allocation2 + $0x58] sm:$0xff] %v4401
        %4418 = vst [vmem:[#allocation2 + $0x60] sm:$0xff] %v4402
        %4419 = vst [vmem:[#allocation2 + $0x68] sm:$0xff] %v4403
        %4420 = vst [vmem:[#allocation2 + $0x70] sm:$0xff] %v4404
        %4421 = vst [vmem:[#allocation2 + $0x78] sm:$0xff] %v4405
        %p4422 = scmp.eq.s32.totalorder %s23, 3
        // Predicated region
        $region127: #{multiplicative_composition.1} parent=109 // pred_check
          %p4423 = pneg %p4422
        $region128: #{multiplicative_composition.1} parent=109 // pred_check_branch
          %4425 = sbr.rel (%p4423) target = $region130
        $region129: #{multiplicative_composition.1} parent=109 // pred_region
          %v4426 = vld [vmem:[#allocation2] sm:$0xff]
          %v4427 = vld [vmem:[#allocation2 + $0x8] sm:$0xff]
          %v4428 = vld [vmem:[#allocation2 + $0x10] sm:$0xff]
          %v4429 = vld [vmem:[#allocation2 + $0x18] sm:$0xff]
          %v4430 = vld [vmem:[#allocation2 + $0x20] sm:$0xff]
          %v4431 = vld [vmem:[#allocation2 + $0x28] sm:$0xff]
          %v4432 = vld [vmem:[#allocation2 + $0x30] sm:$0xff]
          %v4433 = vld [vmem:[#allocation2 + $0x38] sm:$0xff]
          %v4434 = vld [vmem:[#allocation2 + $0x40] sm:$0xff]
          %v4435 = vld [vmem:[#allocation2 + $0x48] sm:$0xff]
          %v4436 = vld [vmem:[#allocation2 + $0x50] sm:$0xff]
          %v4437 = vld [vmem:[#allocation2 + $0x58] sm:$0xff]
          %v4438 = vld [vmem:[#allocation2 + $0x60] sm:$0xff]
          %v4439 = vld [vmem:[#allocation2 + $0x68] sm:$0xff]
          %v4440 = vld [vmem:[#allocation2 + $0x70] sm:$0xff]
          %v4441 = vld [vmem:[#allocation2 + $0x78] sm:$0xff]
          %v4442 = vld [vmem:[%s3] sm:$0xff]
          %v4443 = vld [vmem:[%s3 + $0x8] sm:$0xff]
          %v4444 = vld [vmem:[%s3 + $0x10] sm:$0xff]
          %v4445 = vld [vmem:[%s3 + $0x18] sm:$0xff]
          %v4446 = vld [vmem:[%s3 + $0x20] sm:$0xff]
          %v4447 = vld [vmem:[%s3 + $0x28] sm:$0xff]
          %v4448 = vld [vmem:[%s3 + $0x30] sm:$0xff]
          %v4449 = vld [vmem:[%s3 + $0x38] sm:$0xff]
          %v4450 = vld [vmem:[%s3 + $0x40] sm:$0xff]
          %v4451 = vld [vmem:[%s3 + $0x48] sm:$0xff]
          %v4452 = vld [vmem:[%s3 + $0x50] sm:$0xff]
          %v4453 = vld [vmem:[%s3 + $0x58] sm:$0xff]
          %v4454 = vld [vmem:[%s3 + $0x60] sm:$0xff]
          %v4455 = vld [vmem:[%s3 + $0x68] sm:$0xff]
          %v4456 = vld [vmem:[%s3 + $0x70] sm:$0xff]
          %v4457 = vld [vmem:[%s3 + $0x78] sm:$0xff]
          %4459 = vset.pattern.permute.xlu0 0
          %4460 = vperm.xlu0 %4459, %v4442
          %v4461 = vpop.permute.xlu0 %4460
          %4464 = vset.pattern.permute.xlu0 0
          %4465 = vperm.xlu0 %4464, %v4443
          %v4466 = vpop.permute.xlu0 %4465
          %4469 = vset.pattern.permute.xlu0 0
          %4470 = vperm.xlu0 %4469, %v4444
          %v4471 = vpop.permute.xlu0 %4470
          %4474 = vset.pattern.permute.xlu0 0
          %4475 = vperm.xlu0 %4474, %v4445
          %v4476 = vpop.permute.xlu0 %4475
          %4479 = vset.pattern.permute.xlu0 0
          %4480 = vperm.xlu0 %4479, %v4446
          %v4481 = vpop.permute.xlu0 %4480
          %4484 = vset.pattern.permute.xlu0 0
          %4485 = vperm.xlu0 %4484, %v4447
          %v4486 = vpop.permute.xlu0 %4485
          %4489 = vset.pattern.permute.xlu0 0
          %4490 = vperm.xlu0 %4489, %v4448
          %v4491 = vpop.permute.xlu0 %4490
          %4494 = vset.pattern.permute.xlu0 0
          %4495 = vperm.xlu0 %4494, %v4449
          %v4496 = vpop.permute.xlu0 %4495
          %4499 = vset.pattern.permute.xlu0 0
          %4500 = vperm.xlu0 %4499, %v4450
          %v4501 = vpop.permute.xlu0 %4500
          %4504 = vset.pattern.permute.xlu0 0
          %4505 = vperm.xlu0 %4504, %v4451
          %v4506 = vpop.permute.xlu0 %4505
          %4509 = vset.pattern.permute.xlu0 0
          %4510 = vperm.xlu0 %4509, %v4452
          %v4511 = vpop.permute.xlu0 %4510
          %4514 = vset.pattern.permute.xlu0 0
          %4515 = vperm.xlu0 %4514, %v4453
          %v4516 = vpop.permute.xlu0 %4515
          %4519 = vset.pattern.permute.xlu0 0
          %4520 = vperm.xlu0 %4519, %v4454
          %v4521 = vpop.permute.xlu0 %4520
          %4524 = vset.pattern.permute.xlu0 0
          %4525 = vperm.xlu0 %4524, %v4455
          %v4526 = vpop.permute.xlu0 %4525
          %4529 = vset.pattern.permute.xlu0 0
          %4530 = vperm.xlu0 %4529, %v4456
          %v4531 = vpop.permute.xlu0 %4530
          %4534 = vset.pattern.permute.xlu0 0
          %4535 = vperm.xlu0 %4534, %v4457
          %v4536 = vpop.permute.xlu0 %4535
          %v4538 = vadd.f32 %v4426, %v4461
          %v4539 = vadd.f32 %v4427, %v4466
          %v4540 = vadd.f32 %v4428, %v4471
          %v4541 = vadd.f32 %v4429, %v4476
          %v4542 = vadd.f32 %v4430, %v4481
          %v4543 = vadd.f32 %v4431, %v4486
          %v4544 = vadd.f32 %v4432, %v4491
          %v4545 = vadd.f32 %v4433, %v4496
          %v4546 = vadd.f32 %v4434, %v4501
          %v4547 = vadd.f32 %v4435, %v4506
          %v4548 = vadd.f32 %v4436, %v4511
          %v4549 = vadd.f32 %v4437, %v4516
          %v4550 = vadd.f32 %v4438, %v4521
          %v4551 = vadd.f32 %v4439, %v4526
          %v4552 = vadd.f32 %v4440, %v4531
          %v4553 = vadd.f32 %v4441, %v4536
          %4554 = vst [vmem:[%s422] sm:$0xff] %v4538
          %4555 = vst [vmem:[%s422 + $0x8] sm:$0xff] %v4539
          %4556 = vst [vmem:[%s422 + $0x10] sm:$0xff] %v4540
          %4557 = vst [vmem:[%s422 + $0x18] sm:$0xff] %v4541
          %4558 = vst [vmem:[%s422 + $0x20] sm:$0xff] %v4542
          %4559 = vst [vmem:[%s422 + $0x28] sm:$0xff] %v4543
          %4560 = vst [vmem:[%s422 + $0x30] sm:$0xff] %v4544
          %4561 = vst [vmem:[%s422 + $0x38] sm:$0xff] %v4545
          %4562 = vst [vmem:[%s422 + $0x40] sm:$0xff] %v4546
          %4563 = vst [vmem:[%s422 + $0x48] sm:$0xff] %v4547
          %4564 = vst [vmem:[%s422 + $0x50] sm:$0xff] %v4548
          %4565 = vst [vmem:[%s422 + $0x58] sm:$0xff] %v4549
          %4566 = vst [vmem:[%s422 + $0x60] sm:$0xff] %v4550
          %4567 = vst [vmem:[%s422 + $0x68] sm:$0xff] %v4551
          %4568 = vst [vmem:[%s422 + $0x70] sm:$0xff] %v4552
          %4569 = vst [vmem:[%s422 + $0x78] sm:$0xff] %v4553
        $region130: #{multiplicative_composition.1} parent=109 // pred_fallthru
          _
        %s4570 = sand.u32 %s139, 1
        %s4571 = sand.u32 %s139, 1
        %s4572 = smul.addr %s4571, 128
        %s4573 = scalar_lea.vmem [#allocation7], %s4572
        // Predicated region
        $region131: #{multiplicative_composition.1} parent=109 // pred_check
          %p4574 = pneg %p149
        $region132: #{multiplicative_composition.1} parent=109 // pred_check_branch
          %4576 = sbr.rel (%p4574) target = $region134
        $region133: #{multiplicative_composition.1} parent=109 // pred_region
          %s4577 = smul.addr %s22, 8
          %s4578 = scalar_lea.vmem %s4, %s4577
          // Predicated region
          $region135: #{multiplicative_composition.1} parent=133 // pred_check
            _
          $region136: #{multiplicative_composition.1} parent=133 // pred_check_branch
            %4580 = sbr.rel (0) target = $region138
          $region137: #{multiplicative_composition.1} parent=133 // pred_region
            // Predicated region
            $region139: #{multiplicative_composition.1} parent=137 // pred_check
              _
            $region140: #{multiplicative_composition.1} parent=137 // pred_check_branch
              %4582 = sbr.rel (0) target = $region142
            $region141: #{multiplicative_composition.1} parent=137 // pred_region
              // Predicated region
              $region154: #{multiplicative_composition.1} parent=141 // pred_check
                _
              $region155: #{multiplicative_composition.1} parent=141 // pred_check_branch
                %4627 = sbr.rel (0) target = $region157
              $region156: #{multiplicative_composition.1} parent=141 // pred_region
                loop: start=0, step=1, limit=1
                $region158: #{multiplicative_composition.1} parent=156 // loop_pre_header
                  _
                $region159: #{multiplicative_composition.1} parent=156 // loop_header
                  %s4629 = sphi 0, %s4633
                  %p4630 = scmp.ge.s32.totalorder %s4629, 1
                  %s4634 = sphi %s4573, %s4573
                  %s4635 = sphi %s4578, %s4578
                $region160: #{multiplicative_composition.1} parent=156 // loop_header_branch
                  %4632 = sbr.rel (%p4630) target = $region164
                $region161: #{multiplicative_composition.1} parent=156 // loop_body
                  %v4636 = vld [vmem:[%s4634] sm:$0xff]
                  %4637 = vst [vmem:[%s4635] sm:$0xff] %v4636
                  %v4638 = vld [vmem:[%s4634 + $0x8] sm:$0xff]
                  %4639 = vst [vmem:[%s4635 + $0x10] sm:$0xff] %v4638
                  %v4640 = vld [vmem:[%s4634 + $0x10] sm:$0xff]
                  %4641 = vst [vmem:[%s4635 + $0x20] sm:$0xff] %v4640
                  %v4642 = vld [vmem:[%s4634 + $0x18] sm:$0xff]
                  %4643 = vst [vmem:[%s4635 + $0x30] sm:$0xff] %v4642
                  %v4644 = vld [vmem:[%s4634 + $0x20] sm:$0xff]
                  %4645 = vst [vmem:[%s4635 + $0x40] sm:$0xff] %v4644
                  %v4646 = vld [vmem:[%s4634 + $0x28] sm:$0xff]
                  %4647 = vst [vmem:[%s4635 + $0x50] sm:$0xff] %v4646
                  %v4648 = vld [vmem:[%s4634 + $0x30] sm:$0xff]
                  %4649 = vst [vmem:[%s4635 + $0x60] sm:$0xff] %v4648
                  %v4650 = vld [vmem:[%s4634 + $0x38] sm:$0xff]
                  %4651 = vst [vmem:[%s4635 + $0x70] sm:$0xff] %v4650
                  %v4652 = vld [vmem:[%s4634 + $0x40] sm:$0xff]
                  %4653 = vst [vmem:[%s4635 + $0x80] sm:$0xff] %v4652
                  %v4654 = vld [vmem:[%s4634 + $0x48] sm:$0xff]
                  %4655 = vst [vmem:[%s4635 + $0x90] sm:$0xff] %v4654
                  %v4656 = vld [vmem:[%s4634 + $0x50] sm:$0xff]
                  %4657 = vst [vmem:[%s4635 + $0xa0] sm:$0xff] %v4656
                  %v4658 = vld [vmem:[%s4634 + $0x58] sm:$0xff]
                  %4659 = vst [vmem:[%s4635 + $0xb0] sm:$0xff] %v4658
                  %v4660 = vld [vmem:[%s4634 + $0x60] sm:$0xff]
                  %4661 = vst [vmem:[%s4635 + $0xc0] sm:$0xff] %v4660
                  %v4662 = vld [vmem:[%s4634 + $0x68] sm:$0xff]
                  %4663 = vst [vmem:[%s4635 + $0xd0] sm:$0xff] %v4662
                  %v4664 = vld [vmem:[%s4634 + $0x70] sm:$0xff]
                  %4665 = vst [vmem:[%s4635 + $0xe0] sm:$0xff] %v4664
                  %v4666 = vld [vmem:[%s4634 + $0x78] sm:$0xff]
                  %4667 = vst [vmem:[%s4635 + $0xf0] sm:$0xff] %v4666
                $region162: #{multiplicative_composition.1} parent=156 // loop_footer
                  %s4633 = sadd.s32 1, %s4629
                $region163: #{multiplicative_composition.1} parent=156 // loop_footer_branch
                  %4628 = sbr.rel target = $region159
                $region164: #{multiplicative_composition.1} parent=156 // loop_exit
                  _
              $region157: #{multiplicative_composition.1} parent=141 // pred_fallthru
                _
              // Predicated region
              $region165: #{multiplicative_composition.1} parent=141 // pred_check
                _
              $region166: #{multiplicative_composition.1} parent=141 // pred_check_branch
                %4669 = sbr.rel target = $region168
              $region167: #{multiplicative_composition.1} parent=141 // pred_region
                _
              $region168: #{multiplicative_composition.1} parent=141 // pred_fallthru
                _
            $region142: #{multiplicative_composition.1} parent=137 // pred_fallthru
              _
            // Predicated region
            $region143: #{multiplicative_composition.1} parent=137 // pred_check
              _
            $region144: #{multiplicative_composition.1} parent=137 // pred_check_branch
              %4584 = sbr.rel target = $region146
            $region145: #{multiplicative_composition.1} parent=137 // pred_region
              loop: start=0, step=1, limit=1
              $region147: #{multiplicative_composition.1} parent=145 // loop_pre_header
                _
              $region148: #{multiplicative_composition.1} parent=145 // loop_header
                %s4587 = sphi 0, %s4591
                %p4588 = scmp.ge.s32.totalorder %s4587, 1
                %s4592 = sphi %s4573, %s4573
                %s4593 = sphi %s4578, %s4578
              $region149: #{multiplicative_composition.1} parent=145 // loop_header_branch
                %4590 = sbr.rel (%p4588) target = $region153
              $region150: #{multiplicative_composition.1} parent=145 // loop_body
                %v4594 = vld [vmem:[%s4592] sm:$0xff]
                %4595 = vst [vmem:[%s4593] sm:$0xff] %v4594
                %v4596 = vld [vmem:[%s4592 + $0x8] sm:$0xff]
                %4597 = vst [vmem:[%s4593 + $0x10] sm:$0xff] %v4596
                %v4598 = vld [vmem:[%s4592 + $0x10] sm:$0xff]
                %4599 = vst [vmem:[%s4593 + $0x20] sm:$0xff] %v4598
                %v4600 = vld [vmem:[%s4592 + $0x18] sm:$0xff]
                %4601 = vst [vmem:[%s4593 + $0x30] sm:$0xff] %v4600
                %v4602 = vld [vmem:[%s4592 + $0x20] sm:$0xff]
                %4603 = vst [vmem:[%s4593 + $0x40] sm:$0xff] %v4602
                %v4604 = vld [vmem:[%s4592 + $0x28] sm:$0xff]
                %4605 = vst [vmem:[%s4593 + $0x50] sm:$0xff] %v4604
                %v4606 = vld [vmem:[%s4592 + $0x30] sm:$0xff]
                %4607 = vst [vmem:[%s4593 + $0x60] sm:$0xff] %v4606
                %v4608 = vld [vmem:[%s4592 + $0x38] sm:$0xff]
                %4609 = vst [vmem:[%s4593 + $0x70] sm:$0xff] %v4608
                %v4610 = vld [vmem:[%s4592 + $0x40] sm:$0xff]
                %4611 = vst [vmem:[%s4593 + $0x80] sm:$0xff] %v4610
                %v4612 = vld [vmem:[%s4592 + $0x48] sm:$0xff]
                %4613 = vst [vmem:[%s4593 + $0x90] sm:$0xff] %v4612
                %v4614 = vld [vmem:[%s4592 + $0x50] sm:$0xff]
                %4615 = vst [vmem:[%s4593 + $0xa0] sm:$0xff] %v4614
                %v4616 = vld [vmem:[%s4592 + $0x58] sm:$0xff]
                %4617 = vst [vmem:[%s4593 + $0xb0] sm:$0xff] %v4616
                %v4618 = vld [vmem:[%s4592 + $0x60] sm:$0xff]
                %4619 = vst [vmem:[%s4593 + $0xc0] sm:$0xff] %v4618
                %v4620 = vld [vmem:[%s4592 + $0x68] sm:$0xff]
                %4621 = vst [vmem:[%s4593 + $0xd0] sm:$0xff] %v4620
                %v4622 = vld [vmem:[%s4592 + $0x70] sm:$0xff]
                %4623 = vst [vmem:[%s4593 + $0xe0] sm:$0xff] %v4622
                %v4624 = vld [vmem:[%s4592 + $0x78] sm:$0xff]
                %4625 = vst [vmem:[%s4593 + $0xf0] sm:$0xff] %v4624
              $region151: #{multiplicative_composition.1} parent=145 // loop_footer
                %s4591 = sadd.s32 1, %s4587
              $region152: #{multiplicative_composition.1} parent=145 // loop_footer_branch
                %4586 = sbr.rel target = $region148
              $region153: #{multiplicative_composition.1} parent=145 // loop_exit
                _
            $region146: #{multiplicative_composition.1} parent=137 // pred_fallthru
              _
          $region138: #{multiplicative_composition.1} parent=133 // pred_fallthru
            _
          %4670 = vnop
        $region134: #{multiplicative_composition.1} parent=109 // pred_fallthru
          _
      $region110: #{multiplicative_composition.1} parent=5 // pred_fallthru
        _
      %p4671 = scmp.le.s32.totalorder 2, %s13
      // Predicated region
      $region169: #{multiplicative_composition.1} parent=5 // pred_check
        %p4672 = pneg %p4671
      $region170: #{multiplicative_composition.1} parent=5 // pred_check_branch
        %4674 = sbr.rel (%p4672) target = $region172
      $region171: #{multiplicative_composition.1} parent=5 // pred_region
        %s4675 = ssub.s32 %s13, 2
        // Predicated region
        $region173: #{multiplicative_composition.1} parent=171 // pred_check
          %p4676 = pneg %p155
        $region174: #{multiplicative_composition.1} parent=171 // pred_check_branch
          %4678 = sbr.rel (%p4676) target = $region176
        $region175: #{multiplicative_composition.1} parent=171 // pred_region
          %s4679 = sand.u32 %s140, 1
          %s4680 = sand.u32 %s140, 1
          %s4681 = smul.addr %s4680, 128
          %s4682 = scalar_lea.vmem [#allocation7], %s4681
        $region176: #{multiplicative_composition.1} parent=171 // pred_fallthru
          _
      $region172: #{multiplicative_composition.1} parent=5 // pred_fallthru
        _
    $region6: #{multiplicative_composition.1} parent=1 // loop_footer
      %s17 = sadd.s32 1, %s13
    $region7: #{multiplicative_composition.1} parent=1 // loop_footer_branch
      %12 = sbr.rel target = $region3
    $region8: #{multiplicative_composition.1} parent=1 // loop_exit
      _
    %4683 = vsyncpa [#allocation6], 1
    %s4684 = scalar_lea.sflag [#allocation6], 1
    %4685 = vsyncpa %s4684, 1

</llo_original>
